<compile_context>
chip_gen: v7x
topology: tpu7x:2x2x1
jax: 0.10.0
libtpu: 0.0.40
codegen_flags: <defaults>
</compile_context>

<pallas_src>
import functools

import numpy as np
import jax
import jax.numpy as jnp
from jax import lax
from jax.experimental import pallas as pl
from jax.experimental.pallas import tpu as pltpu

LANES = 128              # channels live on lanes, padded/replicated to 128
ROW_PAD = 16             # zero-halo rows above/below the staged grid (>= G+1)
MAX_IMGS_PER_STEP = 8    # images folded into the M (row) dim per grid step


# ---------------------------------------------------------------------------
# Fused encoder kernel (one grid step == n_img images)
# ---------------------------------------------------------------------------
def _encoder_kernel(a1_ref, m1_ref, vp_ref,
                    w1_ref, b1_ref, w2_ref, b2_ref, w3_ref, b3_ref,
                    rw3_ref, rb3_ref, rw1_ref, rb1_ref,
                    out_ref, buf_ref,
                    *, num_res_layers, packs2, packs3, seg2, seg3):
    M = out_ref.shape[0]                                   # n_img * m_rows
    lane = lax.broadcasted_iota(jnp.int32, (M, LANES), 1)  # hoisted once

    # Zero only the halo rows; the interior is fully re-staged before every conv
    # and the halos are the convs' implicit zero padding.
    buf_ref[0:ROW_PAD, :] = jnp.zeros((ROW_PAD, LANES), buf_ref.dtype)
    buf_ref[ROW_PAD + M:2 * ROW_PAD + M, :] = jnp.zeros((ROW_PAD, LANES),
                                                        buf_ref.dtype)

    vp = vp_ref[...]                                       # 1.0 on valid rows

    def window(d):                                         # shifted row window
        return buf_ref[ROW_PAD + d:ROW_PAD + d + M, :]

    def packed_conv(x_f32, get_w, packs, seg_w, bias):
        # Stage once as bf16, then ONE MXU dot per pack of taps: tap s of a
        # pack occupies K lanes [s*seg_w, (s+1)*seg_w).  The staged activation
        # is channel-replicated across lane groups (done for free by the
        # weight packing of the producing conv), so the wide-K LHS is just a
        # constant-lane select between row-shifted windows.
        buf_ref[ROW_PAD:ROW_PAD + M, :] = x_f32.astype(jnp.bfloat16)
        acc = None
        for k, pack in enumerate(packs):
            lhs = window(pack[-1])
            for s in range(len(pack) - 2, -1, -1):
                lhs = jnp.where(lane < (s + 1) * seg_w, window(pack[s]), lhs)
            d = jnp.dot(lhs, get_w(k), preferred_element_type=jnp.float32)
            acc = d if acc is None else acc + d            # straight += chain
        return acc + bias

    # conv_1 (4x4, stride 2): all taps folded into one patch matmul.
    y = jnp.dot(a1_ref[...], w1_ref[...], preferred_element_type=jnp.float32)
    y = jnp.maximum(y + b1_ref[...], 0.0) * m1_ref[...]

    # conv_2 (4x4, stride 2) == 2x2 VALID conv on the parity grid; 2 taps/dot.
    y = packed_conv(y, lambda k: w2_ref[k], packs2, seg2, b2_ref[...])
    y = jnp.maximum(y, 0.0) * vp

    # conv_3 (3x3, stride 1, pad 1); 4 taps/dot.
    y = packed_conv(y, lambda k: w3_ref[k], packs3, seg3, b3_ref[...])
    y = jnp.maximum(y, 0.0) * vp

    # Residual stack: x + conv1x1(relu(conv3x3(relu(x)))), then final ReLU.
    for l in range(num_res_layers):
        h = packed_conv(jnp.maximum(y, 0.0),
                        lambda k, l=l: rw3_ref[l, k], packs3, seg3, rb3_ref[l])
        h = jnp.maximum(h, 0.0)
        y = (y + jnp.dot(h.astype(jnp.bfloat16), rw1_ref[l],
                         preferred_element_type=jnp.float32) + rb1_ref[l]) * vp

    out_ref[...] = jnp.maximum(y, 0.0)


# ---------------------------------------------------------------------------
# One-time weight packing (hoisted out of the per-call forward path)
# ---------------------------------------------------------------------------
def _chunk(seq, n):
    return tuple(tuple(seq[i:i + n]) for i in range(0, len(seq), n))


def _pack_tap_block(tap_mats, seg_w, rep):
    """Stack tap matrices [cin, cout] into a (128,128) K-packed MXU weight.

    Tap s occupies K rows [s*seg_w, s*seg_w+cin); output columns are tiled
    `rep` times so the produced activation is already channel-replicated for
    the next conv's K packing."""
    blk = jnp.zeros((LANES, LANES), jnp.float32)
    for s, t in enumerate(tap_mats):
        w = jnp.tile(t, (1, rep)) if rep > 1 else t
        blk = blk.at[s * seg_w:s * seg_w + t.shape[0], :w.shape[1]].set(w)
    return blk


def _rep_bias(b, rep):
    v = jnp.tile(b, rep) if rep > 1 else b
    return jnp.zeros((1, LANES), jnp.float32).at[0, :v.shape[0]].set(v)


def _build_masks(G, V, H1, H2, m_rows, rep1):
    p = np.arange(G)
    a = np.arange(2)
    r = 2 * p[:, None] + a[None, :]                       # padded conv_1 row
    vr = ((r >= 1) & (r <= H1)).astype(np.float32)
    mpq = vr[:, None, :, None] * vr[None, :, None, :]     # [G,G,2,2]
    m1 = np.repeat(mpq.reshape(G, G, 4), H2, axis=-1).reshape(G * G, 4 * H2)
    m1 = np.tile(m1, (1, rep1))
    mask1 = np.zeros((m_rows, LANES), np.float32)
    mask1[:G * G, :m1.shape[1]] = m1
    vpos = ((p[:, None] < V) & (p[None, :] < V)).astype(np.float32)
    vp = np.zeros((m_rows, LANES), np.float32)
    vp[:G * G, :] = vpos.reshape(G * G, 1)
    return jnp.asarray(mask1), jnp.asarray(vp)


def pack_encoder_params(params, image_size):
    H = image_size
    c1w, c1b = params["conv1"]
    c2w, c2b = params["conv2"]
    c3w, c3b = params["conv3"]
    H2, Cin = c1w.shape[0], c1w.shape[1]
    NH = c2w.shape[0]
    L = len(params["res"])
    C_res = params["res"][0][0][0].shape[0] if L else 1

    assert H % 4 == 0, "spatial size must be a multiple of 4"
    V = H // 4                      # conv_2 / conv_3 output side
    G = V + 1                       # parity-grid side
    assert G + 1 <= ROW_PAD, "image too large for the fixed halo"
    m_rows = pl.cdiv(G * G + G + 1, 8) * 8        # per-image rows incl. margin
    assert NH <= 64 and LANES % NH == 0 and LANES % (4 * H2) == 0

    rep1 = LANES // (4 * H2)        # conv_1 output replication (= taps/dot in conv_2)
    rep_nh = LANES // NH            # NH-channel replication (= taps/dot in 3x3)

    # conv_1: 4x4 stride-2 folded into one patch matmul (4 parities block-diag).
    w1mat = jnp.transpose(c1w, (2, 3, 1, 0)).reshape(16 * Cin, H2)
    w1big = jnp.kron(jnp.eye(4, dtype=w1mat.dtype), w1mat)   # [64*Cin, 4*H2]
    kp = pl.cdiv(w1big.shape[0], LANES) * LANES
    w1 = jnp.zeros((kp, LANES), jnp.float32)
    w1 = w1.at[:w1big.shape[0], :rep1 * 4 * H2].set(jnp.tile(w1big, (1, rep1)))
    b1 = _rep_bias(jnp.tile(c1b, 4), rep1)

    # conv_2: 2x2 VALID conv on the parity grid, taps K-packed in pairs.
    seg2 = 4 * H2
    tpp2 = LANES // seg2
    w2r = c2w.reshape(NH, H2, 2, 2, 2, 2)          # [co, ci, qi, a, qj, b]
    taps2, shifts2 = [], []
    for qi in range(2):
        for qj in range(2):
            t = jnp.transpose(w2r[:, :, qi, :, qj, :], (2, 3, 1, 0)).reshape(seg2, NH)
            taps2.append(t)
            shifts2.append(qi * G + qj)
    packs2 = _chunk(shifts2, tpp2)
    w2 = jnp.stack([_pack_tap_block(taps2[i:i + tpp2], seg2, rep_nh)
                    for i in range(0, len(taps2), tpp2)])
    b2 = _rep_bias(c2b, rep_nh)

    # 3x3 stride-1 convs (conv_3 + residual blocks), taps K-packed 4 at a time.
    seg3 = NH
    tpp3 = LANES // NH
    shifts3 = [(ti - 1) * G + (tj - 1) for ti in range(3) for tj in range(3)]
    packs3 = _chunk(shifts3, tpp3)

    def pack_3x3(w, rep):
        taps = [jnp.transpose(w[:, :, ti, tj], (1, 0))
                for ti in range(3) for tj in range(3)]
        return jnp.stack([_pack_tap_block(taps[i:i + tpp3], seg3, rep)
                          for i in range(0, len(taps), tpp3)])

    w3 = pack_3x3(c3w, rep_nh)
    b3 = _rep_bias(c3b, rep_nh)

    if L:
        rw3 = jnp.stack([pack_3x3(w, 1) for (w, _), _ in params["res"]])
        rb3 = jnp.stack([_rep_bias(b, 1) for (_, b), _ in params["res"]])
        rw1 = jnp.stack([
            jnp.zeros((LANES, LANES), jnp.float32)
               .at[:C_res, :].set(jnp.tile(jnp.transpose(w[:, :, 0, 0], (1, 0)),
                                           (1, rep_nh)))
            for _, (w, _) in params["res"]])
        rb1 = jnp.stack([_rep_bias(b, rep_nh) for _, (_, b) in params["res"]])
    else:  # dummies keep the pallas_call signature static when L == 0
        rw3 = jnp.zeros((1, len(packs3), LANES, LANES), jnp.float32)
        rb3 = jnp.zeros((1, 1, LANES), jnp.float32)
        rw1 = jnp.zeros((1, LANES, LANES), jnp.float32)
        rb1 = jnp.zeros((1, 1, LANES), jnp.float32)

    mask1, vp = _build_masks(G, V, H // 2, H2, m_rows, rep1)

    arrays = dict(
        w1=w1.astype(jnp.bfloat16), b1=b1,
        w2=w2.astype(jnp.bfloat16), b2=b2,
        w3=w3.astype(jnp.bfloat16), b3=b3,
        rw3=rw3.astype(jnp.bfloat16), rb3=rb3,
        rw1=rw1.astype(jnp.bfloat16), rb1=rb1,
        mask1=mask1, vp=vp)
    static = dict(G=G, V=V, m_rows=m_rows, kp=kp, NH=NH, L=L,
                  packs2=packs2, packs3=packs3, seg2=seg2, seg3=seg3)
    return static, arrays


# ---------------------------------------------------------------------------
# conv_1 patch matrix (reads the raw HBM input anyway)
# ---------------------------------------------------------------------------
def _build_a1(x_nchw, G, m_rows, kp):
    # TODO(synk): for large images, form these patches in-kernel from the raw
    # NHWC input instead of this host-side im2col (16x HBM duplication).
    x = jnp.transpose(x_nchw, (0, 2, 3, 1)).astype(jnp.float32)      # NHWC
    N, H, W, C = x.shape
    H1, W1 = H // 2, W // 2
    xp = jnp.pad(x, ((0, 0), (1, 1), (1, 1), (0, 0)))
    cols = [xp[:, i:i + 2 * H1:2, j:j + 2 * W1:2, :]
            for i in range(4) for j in range(4)]
    patches = jnp.concatenate(cols, axis=-1)                  # [N,H1,W1,16C]
    pp = jnp.pad(patches, ((0, 0), (1, 1), (1, 1), (0, 0)))   # [N,2G,2G,16C]
    a = pp.reshape(N, G, 2, G, 2, 16 * C).transpose(0, 1, 3, 2, 4, 5)
    a = a.reshape(N, G * G, 64 * C)
    a = jnp.pad(a, ((0, 0), (0, m_rows - G * G), (0, kp - 64 * C)))
    return a.reshape(N * m_rows, kp).astype(jnp.bfloat16)


# ---------------------------------------------------------------------------
# Forward wrapper (weights already packed; only the kernel + a1 build per call)
# ---------------------------------------------------------------------------
def make_encoder_forward(static):
    G, V, m_rows, kp, NH, L = (static["G"], static["V"], static["m_rows"],
                               static["kp"], static["NH"], static["L"])
    packs2, packs3 = static["packs2"], static["packs3"]
    seg2, seg3 = static["seg2"], static["seg3"]
    P2, P3, lp = len(packs2), len(packs3), max(L, 1)

    kernel = functools.partial(_encoder_kernel, num_res_layers=L,
                               packs2=packs2, packs3=packs3,
                               seg2=seg2, seg3=seg3)

    @jax.jit
    def forward(arrays, x_nchw):
        N = x_nchw.shape[0]
        n_img = min(N, MAX_IMGS_PER_STEP)       # fold batch into the M (row) dim
        while N % n_img:
            n_img -= 1
        n_steps = N // n_img
        M = n_img * m_rows

        a1 = _build_a1(x_nchw, G, m_rows, kp)
        mask1 = jnp.tile(arrays["mask1"], (n_img, 1))
        vp = jnp.tile(arrays["vp"], (n_img, 1))

        def _bcast(shape):
            # Grid-invariant operands: constant index map, so Pallas never
            # re-fetches them after the first step.  pl.Buffered(1) would only
            # drop the second VMEM buffer (~1 MiB total here) -- skipped.
            rank = len(shape)
            return pl.BlockSpec(shape, lambda n, r=rank: (0,) * r)

        out = pl.pallas_call(
            kernel,
            out_shape=jax.ShapeDtypeStruct((n_steps * M, LANES), jnp.float32),
            grid=(n_steps,),
            in_specs=[
                pl.BlockSpec((M, kp), lambda n: (n, 0)),          # conv_1 patches
                _bcast((M, LANES)),                               # mask1
                _bcast((M, LANES)),                               # valid-pos mask
                _bcast((kp, LANES)), _bcast((1, LANES)),          # conv_1 w, b
                _bcast((P2, LANES, LANES)), _bcast((1, LANES)),   # conv_2 packs, b
                _bcast((P3, LANES, LANES)), _bcast((1, LANES)),   # conv_3 packs, b
                _bcast((lp, P3, LANES, LANES)), _bcast((lp, 1, LANES)),  # res 3x3
                _bcast((lp, LANES, LANES)), _bcast((lp, 1, LANES)),      # res 1x1
            ],
            out_specs=pl.BlockSpec((M, LANES), lambda n: (n, 0)),
            scratch_shapes=[pltpu.VMEM((M + 2 * ROW_PAD, LANES), jnp.bfloat16)],
            compiler_params=pltpu.CompilerParams(
                dimension_semantics=("parallel",)),  # steps shard across TCs
        )(a1, mask1, vp, arrays["w1"], arrays["b1"], arrays["w2"], arrays["b2"],
          arrays["w3"], arrays["b3"], arrays["rw3"], arrays["rb3"],
          arrays["rw1"], arrays["rb1"])

        y = out.reshape(N, m_rows, LANES)[:, :G * G, :].reshape(N, G, G, LANES)
        y = y[:, :V, :V, :NH]                     # drop dead rows / padded lanes
        return jnp.transpose(y, (0, 3, 1, 2))     # NHWC -> NCHW

    return forward


# ---------------------------------------------------------------------------
# Parameter init (PyTorch Conv2d default: U(-1/sqrt(fan_in), +1/sqrt(fan_in)))
# ---------------------------------------------------------------------------
def _conv_init(key, cout, cin, kh, kw):
    k1, k2 = jax.random.split(key)
    fan_in = cin * kh * kw
    bound = 1.0 / jnp.sqrt(jnp.float32(fan_in))
    w = jax.random.uniform(k1, (cout, cin, kh, kw), jnp.float32, -bound, bound)
    b = jax.random.uniform(k2, (cout,), jnp.float32, -bound, bound)
    return w, b


def init_params(key, in_channels, num_hiddens, num_residual_layers,
                num_residual_hiddens):
    keys = jax.random.split(key, 3 + 2 * num_residual_layers)
    params = {
        "conv1": _conv_init(keys[0], num_hiddens // 2, in_channels, 4, 4),
        "conv2": _conv_init(keys[1], num_hiddens, num_hiddens // 2, 4, 4),
        "conv3": _conv_init(keys[2], num_hiddens, num_hiddens, 3, 3),
        "res": [],
    }
    for i in range(num_residual_layers):
        w3, b3 = _conv_init(keys[3 + 2 * i], num_residual_hiddens, num_hiddens, 3, 3)
        w1, b1 = _conv_init(keys[4 + 2 * i], num_hiddens, num_residual_hiddens, 1, 1)
        params["res"].append(((w3, b3), (w1, b1)))
    return params


if __name__ == "__main__":
    key = jax.random.PRNGKey(0)
    kx, kparam = jax.random.split(key)

    in_channels = 4
    num_hiddens = 32
    num_residual_layers = 2
    num_residual_hiddens = 8

    x = jax.random.normal(kx, (2, in_channels, 16, 16), jnp.float32)
    params = init_params(kparam, in_channels, num_hiddens,
                         num_residual_layers, num_residual_hiddens)

    # Pack weights ONCE, outside the per-call path.
    static, arrays = pack_encoder_params(params, image_size=16)
    encoder_forward = make_encoder_forward(static)

    out = encoder_forward(arrays, x)
    out = jax.block_until_ready(out)
    assert out.shape == (2, num_hiddens, 4, 4), out.shape
    assert bool(jnp.all(out >= 0.0))          # final ReLU of the residual stack
    print("KERNEL_OK")
</pallas_src>

<mosaic_0001>
module attributes {stable_mosaic.version = 11 : i64} {
  func.func @_encoder_kernel(%arg0: i32, %arg1: memref<64x256xbf16, #tpu.memory_space<vmem>>, %arg2: memref<64x128xf32, #tpu.memory_space<vmem>>, %arg3: memref<64x128xf32, #tpu.memory_space<vmem>>, %arg4: memref<256x128xbf16, #tpu.memory_space<vmem>>, %arg5: memref<1x128xf32, #tpu.memory_space<vmem>>, %arg6: memref<2x128x128xbf16, #tpu.memory_space<vmem>>, %arg7: memref<1x128xf32, #tpu.memory_space<vmem>>, %arg8: memref<3x128x128xbf16, #tpu.memory_space<vmem>>, %arg9: memref<1x128xf32, #tpu.memory_space<vmem>>, %arg10: memref<2x3x128x128xbf16, #tpu.memory_space<vmem>>, %arg11: memref<2x1x128xf32, #tpu.memory_space<vmem>>, %arg12: memref<2x128x128xbf16, #tpu.memory_space<vmem>>, %arg13: memref<2x1x128xf32, #tpu.memory_space<vmem>>, %arg14: memref<64x128xf32, #tpu.memory_space<vmem>>, %arg15: memref<96x128xbf16, #tpu.memory_space<vmem>>) attributes {dimension_semantics = [#tpu.dimension_semantics<parallel>], iteration_bounds = array<i64: 1>, scalar_prefetch = 0 : i64, scratch_operands = 1 : i64, tpu.core_type = #tpu.core_type<tc>, window_params = [{transform_indices = @transform_0, window_bounds = array<i64: 64, 256>}, {pipeline_mode = #tpu.pipeline_mode<synchronous>, transform_indices = @transform_1, window_bounds = array<i64: 64, 128>}, {pipeline_mode = #tpu.pipeline_mode<synchronous>, transform_indices = @transform_2, window_bounds = array<i64: 64, 128>}, {pipeline_mode = #tpu.pipeline_mode<synchronous>, transform_indices = @transform_3, window_bounds = array<i64: 256, 128>}, {pipeline_mode = #tpu.pipeline_mode<synchronous>, transform_indices = @transform_4, window_bounds = array<i64: 1, 128>}, {pipeline_mode = #tpu.pipeline_mode<synchronous>, transform_indices = @transform_5, window_bounds = array<i64: 2, 128, 128>}, {pipeline_mode = #tpu.pipeline_mode<synchronous>, transform_indices = @transform_6, window_bounds = array<i64: 1, 128>}, {pipeline_mode = #tpu.pipeline_mode<synchronous>, transform_indices = @transform_7, window_bounds = array<i64: 3, 128, 128>}, {pipeline_mode = #tpu.pipeline_mode<synchronous>, transform_indices = @transform_8, window_bounds = array<i64: 1, 128>}, {pipeline_mode = #tpu.pipeline_mode<synchronous>, transform_indices = @transform_9, window_bounds = array<i64: 2, 3, 128, 128>}, {pipeline_mode = #tpu.pipeline_mode<synchronous>, transform_indices = @transform_10, window_bounds = array<i64: 2, 1, 128>}, {pipeline_mode = #tpu.pipeline_mode<synchronous>, transform_indices = @transform_11, window_bounds = array<i64: 2, 128, 128>}, {pipeline_mode = #tpu.pipeline_mode<synchronous>, transform_indices = @transform_12, window_bounds = array<i64: 2, 1, 128>}, {transform_indices = @transform_13, window_bounds = array<i64: 64, 128>}]} {
    %0 = tpu.iota {dimensions = array<i32: 1>} : vector<64x128xi32>
    %cst = arith.constant 0.000000e+00 : bf16
    %1 = vector.broadcast %cst : bf16 to vector<16x128xbf16>
    %c0 = arith.constant 0 : index
    %c0_0 = arith.constant 0 : index
    %2 = vector.load %arg15[%c0, %c0_0] : memref<96x128xbf16, #tpu.memory_space<vmem>>, vector<16x128xbf16>
    tpu.vector_store %arg15[%c0, %c0_0], %1 {strides = array<i32>} : memref<96x128xbf16, #tpu.memory_space<vmem>>, vector<16x128xbf16>,
    %cst_1 = arith.constant 0.000000e+00 : bf16
    %3 = vector.broadcast %cst_1 : bf16 to vector<16x128xbf16>
    %c80 = arith.constant 80 : index
    %c0_2 = arith.constant 0 : index
    %4 = vector.load %arg15[%c80, %c0_2] : memref<96x128xbf16, #tpu.memory_space<vmem>>, vector<16x128xbf16>
    tpu.vector_store %arg15[%c80, %c0_2], %3 {strides = array<i32>} : memref<96x128xbf16, #tpu.memory_space<vmem>>, vector<16x128xbf16>,
    %c0_3 = arith.constant 0 : index
    %c0_4 = arith.constant 0 : index
    %5 = vector.load %arg3[%c0_3, %c0_4] : memref<64x128xf32, #tpu.memory_space<vmem>>, vector<64x128xf32>
    %c0_5 = arith.constant 0 : index
    %c0_6 = arith.constant 0 : index
    %6 = vector.load %arg1[%c0_5, %c0_6] : memref<64x256xbf16, #tpu.memory_space<vmem>>, vector<64x256xbf16>
    %c0_7 = arith.constant 0 : index
    %c0_8 = arith.constant 0 : index
    %7 = vector.load %arg4[%c0_7, %c0_8] : memref<256x128xbf16, #tpu.memory_space<vmem>>, vector<256x128xbf16>
    %cst_9 = arith.constant dense<0.000000e+00> : vector<64x128xf32>
    %8 = tpu.matmul %6, %7, %cst_9 {dimension_numbers = #tpu.dot_dimension_numbers<[1], [0], [0], [1], [0, 0, 1, 1], [], []>} : vector<64x256xbf16>, vector<256x128xbf16>, vector<64x128xf32> -> vector<64x128xf32>
    %c0_10 = arith.constant 0 : index
    %c0_11 = arith.constant 0 : index
    %9 = vector.load %arg5[%c0_10, %c0_11] : memref<1x128xf32, #tpu.memory_space<vmem>>, vector<1x128xf32>
    %10 = vector.broadcast %9 : vector<1x128xf32> to vector<64x128xf32>
    %11 = arith.addf %8, %10 : vector<64x128xf32>
    %cst_12 = arith.constant 0.000000e+00 : f32
    %12 = vector.broadcast %cst_12 : f32 to vector<64x128xf32>
    %13 = arith.maximumf %11, %12 : vector<64x128xf32>
    %c0_13 = arith.constant 0 : index
    %c0_14 = arith.constant 0 : index
    %14 = vector.load %arg2[%c0_13, %c0_14] : memref<64x128xf32, #tpu.memory_space<vmem>>, vector<64x128xf32>
    %15 = arith.mulf %13, %14 : vector<64x128xf32>
    %c0_15 = arith.constant 0 : index
    %c0_16 = arith.constant 0 : index
    %16 = vector.load %arg7[%c0_15, %c0_16] : memref<1x128xf32, #tpu.memory_space<vmem>>, vector<1x128xf32>
    %17 = arith.truncf %15 : vector<64x128xf32> to vector<64x128xbf16>
    %c16 = arith.constant 16 : index
    %c0_17 = arith.constant 0 : index
    %18 = vector.load %arg15[%c16, %c0_17] : memref<96x128xbf16, #tpu.memory_space<vmem>>, vector<64x128xbf16>
    tpu.vector_store %arg15[%c16, %c0_17], %17 {strides = array<i32>} : memref<96x128xbf16, #tpu.memory_space<vmem>>, vector<64x128xbf16>,
    %c17 = arith.constant 17 : index
    %c0_18 = arith.constant 0 : index
    %19 = vector.load %arg15[%c17, %c0_18] : memref<96x128xbf16, #tpu.memory_space<vmem>>, vector<64x128xbf16>
    %c64_i32 = arith.constant 64 : i32
    %20 = vector.broadcast %c64_i32 : i32 to vector<64x128xi32>
    %21 = arith.cmpi slt, %0, %20 : vector<64x128xi32>
    %c16_19 = arith.constant 16 : index
    %c0_20 = arith.constant 0 : index
    %22 = vector.load %arg15[%c16_19, %c0_20] : memref<96x128xbf16, #tpu.memory_space<vmem>>, vector<64x128xbf16>
    %23 = arith.select %21, %22, %19 : vector<64x128xi1>, vector<64x128xbf16>
    %c0_21 = arith.constant 0 : index
    %c0_22 = arith.constant 0 : index
    %c0_23 = arith.constant 0 : index
    %24 = vector.load %arg6[%c0_21, %c0_22, %c0_23] : memref<2x128x128xbf16, #tpu.memory_space<vmem>>, vector<1x128x128xbf16>
    %25 = vector.shape_cast %24 : vector<1x128x128xbf16> to vector<128x128xbf16>
    %cst_24 = arith.constant dense<0.000000e+00> : vector<64x128xf32>
    %26 = tpu.matmul %23, %25, %cst_24 {dimension_numbers = #tpu.dot_dimension_numbers<[1], [0], [0], [1], [0, 0, 1, 1], [], []>} : vector<64x128xbf16>, vector<128x128xbf16>, vector<64x128xf32> -> vector<64x128xf32>
    %c22 = arith.constant 22 : index
    %c0_25 = arith.constant 0 : index
    %27 = vector.load %arg15[%c22, %c0_25] : memref<96x128xbf16, #tpu.memory_space<vmem>>, vector<64x128xbf16>
    %c64_i32_26 = arith.constant 64 : i32
    %28 = vector.broadcast %c64_i32_26 : i32 to vector<64x128xi32>
    %29 = arith.cmpi slt, %0, %28 : vector<64x128xi32>
    %c21 = arith.constant 21 : index
    %c0_27 = arith.constant 0 : index
    %30 = vector.load %arg15[%c21, %c0_27] : memref<96x128xbf16, #tpu.memory_space<vmem>>, vector<64x128xbf16>
    %31 = arith.select %29, %30, %27 : vector<64x128xi1>, vector<64x128xbf16>
    %c1 = arith.constant 1 : index
    %c0_28 = arith.constant 0 : index
    %c0_29 = arith.constant 0 : index
    %32 = vector.load %arg6[%c1, %c0_28, %c0_29] : memref<2x128x128xbf16, #tpu.memory_space<vmem>>, vector<1x128x128xbf16>
    %33 = vector.shape_cast %32 : vector<1x128x128xbf16> to vector<128x128xbf16>
    %cst_30 = arith.constant dense<0.000000e+00> : vector<64x128xf32>
    %34 = tpu.matmul %31, %33, %cst_30 {dimension_numbers = #tpu.dot_dimension_numbers<[1], [0], [0], [1], [0, 0, 1, 1], [], []>} : vector<64x128xbf16>, vector<128x128xbf16>, vector<64x128xf32> -> vector<64x128xf32>
    %35 = arith.addf %26, %34 : vector<64x128xf32>
    %36 = vector.broadcast %16 : vector<1x128xf32> to vector<64x128xf32>
    %37 = arith.addf %35, %36 : vector<64x128xf32>
    %cst_31 = arith.constant 0.000000e+00 : f32
    %38 = vector.broadcast %cst_31 : f32 to vector<64x128xf32>
    %39 = arith.maximumf %37, %38 : vector<64x128xf32>
    %40 = arith.mulf %39, %5 : vector<64x128xf32>
    %c0_32 = arith.constant 0 : index
    %c0_33 = arith.constant 0 : index
    %41 = vector.load %arg9[%c0_32, %c0_33] : memref<1x128xf32, #tpu.memory_space<vmem>>, vector<1x128xf32>
    %42 = arith.truncf %40 : vector<64x128xf32> to vector<64x128xbf16>
    %c16_34 = arith.constant 16 : index
    %c0_35 = arith.constant 0 : index
    %43 = vector.load %arg15[%c16_34, %c0_35] : memref<96x128xbf16, #tpu.memory_space<vmem>>, vector<64x128xbf16>
    tpu.vector_store %arg15[%c16_34, %c0_35], %42 {strides = array<i32>} : memref<96x128xbf16, #tpu.memory_space<vmem>>, vector<64x128xbf16>,
    %c15 = arith.constant 15 : index
    %c0_36 = arith.constant 0 : index
    %44 = vector.load %arg15[%c15, %c0_36] : memref<96x128xbf16, #tpu.memory_space<vmem>>, vector<64x128xbf16>
    %c96_i32 = arith.constant 96 : i32
    %45 = vector.broadcast %c96_i32 : i32 to vector<64x128xi32>
    %46 = arith.cmpi slt, %0, %45 : vector<64x128xi32>
    %c12 = arith.constant 12 : index
    %c0_37 = arith.constant 0 : index
    %47 = vector.load %arg15[%c12, %c0_37] : memref<96x128xbf16, #tpu.memory_space<vmem>>, vector<64x128xbf16>
    %48 = arith.select %46, %47, %44 : vector<64x128xi1>, vector<64x128xbf16>
    %c64_i32_38 = arith.constant 64 : i32
    %49 = vector.broadcast %c64_i32_38 : i32 to vector<64x128xi32>
    %50 = arith.cmpi slt, %0, %49 : vector<64x128xi32>
    %c11 = arith.constant 11 : index
    %c0_39 = arith.constant 0 : index
    %51 = vector.load %arg15[%c11, %c0_39] : memref<96x128xbf16, #tpu.memory_space<vmem>>, vector<64x128xbf16>
    %52 = arith.select %50, %51, %48 : vector<64x128xi1>, vector<64x128xbf16>
    %c32_i32 = arith.constant 32 : i32
    %53 = vector.broadcast %c32_i32 : i32 to vector<64x128xi32>
    %54 = arith.cmpi slt, %0, %53 : vector<64x128xi32>
    %c10 = arith.constant 10 : index
    %c0_40 = arith.constant 0 : index
    %55 = vector.load %arg15[%c10, %c0_40] : memref<96x128xbf16, #tpu.memory_space<vmem>>, vector<64x128xbf16>
    %56 = arith.select %54, %55, %52 : vector<64x128xi1>, vector<64x128xbf16>
    %c0_41 = arith.constant 0 : index
    %c0_42 = arith.constant 0 : index
    %c0_43 = arith.constant 0 : index
    %57 = vector.load %arg8[%c0_41, %c0_42, %c0_43] : memref<3x128x128xbf16, #tpu.memory_space<vmem>>, vector<1x128x128xbf16>
    %58 = vector.shape_cast %57 : vector<1x128x128xbf16> to vector<128x128xbf16>
    %cst_44 = arith.constant dense<0.000000e+00> : vector<64x128xf32>
    %59 = tpu.matmul %56, %58, %cst_44 {dimension_numbers = #tpu.dot_dimension_numbers<[1], [0], [0], [1], [0, 0, 1, 1], [], []>} : vector<64x128xbf16>, vector<128x128xbf16>, vector<64x128xf32> -> vector<64x128xf32>
    %c21_45 = arith.constant 21 : index
    %c0_46 = arith.constant 0 : index
    %60 = vector.load %arg15[%c21_45, %c0_46] : memref<96x128xbf16, #tpu.memory_space<vmem>>, vector<64x128xbf16>
    %c96_i32_47 = arith.constant 96 : i32
    %61 = vector.broadcast %c96_i32_47 : i32 to vector<64x128xi32>
    %62 = arith.cmpi slt, %0, %61 : vector<64x128xi32>
    %c20 = arith.constant 20 : index
    %c0_48 = arith.constant 0 : index
    %63 = vector.load %arg15[%c20, %c0_48] : memref<96x128xbf16, #tpu.memory_space<vmem>>, vector<64x128xbf16>
    %64 = arith.select %62, %63, %60 : vector<64x128xi1>, vector<64x128xbf16>
    %c64_i32_49 = arith.constant 64 : i32
    %65 = vector.broadcast %c64_i32_49 : i32 to vector<64x128xi32>
    %66 = arith.cmpi slt, %0, %65 : vector<64x128xi32>
    %c17_50 = arith.constant 17 : index
    %c0_51 = arith.constant 0 : index
    %67 = vector.load %arg15[%c17_50, %c0_51] : memref<96x128xbf16, #tpu.memory_space<vmem>>, vector<64x128xbf16>
    %68 = arith.select %66, %67, %64 : vector<64x128xi1>, vector<64x128xbf16>
    %c32_i32_52 = arith.constant 32 : i32
    %69 = vector.broadcast %c32_i32_52 : i32 to vector<64x128xi32>
    %70 = arith.cmpi slt, %0, %69 : vector<64x128xi32>
    %c16_53 = arith.constant 16 : index
    %c0_54 = arith.constant 0 : index
    %71 = vector.load %arg15[%c16_53, %c0_54] : memref<96x128xbf16, #tpu.memory_space<vmem>>, vector<64x128xbf16>
    %72 = arith.select %70, %71, %68 : vector<64x128xi1>, vector<64x128xbf16>
    %c1_55 = arith.constant 1 : index
    %c0_56 = arith.constant 0 : index
    %c0_57 = arith.constant 0 : index
    %73 = vector.load %arg8[%c1_55, %c0_56, %c0_57] : memref<3x128x128xbf16, #tpu.memory_space<vmem>>, vector<1x128x128xbf16>
    %74 = vector.shape_cast %73 : vector<1x128x128xbf16> to vector<128x128xbf16>
    %cst_58 = arith.constant dense<0.000000e+00> : vector<64x128xf32>
    %75 = tpu.matmul %72, %74, %cst_58 {dimension_numbers = #tpu.dot_dimension_numbers<[1], [0], [0], [1], [0, 0, 1, 1], [], []>} : vector<64x128xbf16>, vector<128x128xbf16>, vector<64x128xf32> -> vector<64x128xf32>
    %76 = arith.addf %59, %75 : vector<64x128xf32>
    %c22_59 = arith.constant 22 : index
    %c0_60 = arith.constant 0 : index
    %77 = vector.load %arg15[%c22_59, %c0_60] : memref<96x128xbf16, #tpu.memory_space<vmem>>, vector<64x128xbf16>
    %c2 = arith.constant 2 : index
    %c0_61 = arith.constant 0 : index
    %c0_62 = arith.constant 0 : index
    %78 = vector.load %arg8[%c2, %c0_61, %c0_62] : memref<3x128x128xbf16, #tpu.memory_space<vmem>>, vector<1x128x128xbf16>
    %79 = vector.shape_cast %78 : vector<1x128x128xbf16> to vector<128x128xbf16>
    %cst_63 = arith.constant dense<0.000000e+00> : vector<64x128xf32>
    %80 = tpu.matmul %77, %79, %cst_63 {dimension_numbers = #tpu.dot_dimension_numbers<[1], [0], [0], [1], [0, 0, 1, 1], [], []>} : vector<64x128xbf16>, vector<128x128xbf16>, vector<64x128xf32> -> vector<64x128xf32>
    %81 = arith.addf %76, %80 : vector<64x128xf32>
    %82 = vector.broadcast %41 : vector<1x128xf32> to vector<64x128xf32>
    %83 = arith.addf %81, %82 : vector<64x128xf32>
    %cst_64 = arith.constant 0.000000e+00 : f32
    %84 = vector.broadcast %cst_64 : f32 to vector<64x128xf32>
    %85 = arith.maximumf %83, %84 : vector<64x128xf32>
    %86 = arith.mulf %85, %5 : vector<64x128xf32>
    %cst_65 = arith.constant 0.000000e+00 : f32
    %87 = vector.broadcast %cst_65 : f32 to vector<64x128xf32>
    %88 = arith.maximumf %86, %87 : vector<64x128xf32>
    %c0_66 = arith.constant 0 : index
    %c0_67 = arith.constant 0 : index
    %c0_68 = arith.constant 0 : index
    %89 = vector.load %arg11[%c0_66, %c0_67, %c0_68] : memref<2x1x128xf32, #tpu.memory_space<vmem>>, vector<1x1x128xf32>
    %90 = vector.shape_cast %89 : vector<1x1x128xf32> to vector<1x128xf32>
    %91 = arith.truncf %88 : vector<64x128xf32> to vector<64x128xbf16>
    %c16_69 = arith.constant 16 : index
    %c0_70 = arith.constant 0 : index
    %92 = vector.load %arg15[%c16_69, %c0_70] : memref<96x128xbf16, #tpu.memory_space<vmem>>, vector<64x128xbf16>
    tpu.vector_store %arg15[%c16_69, %c0_70], %91 {strides = array<i32>} : memref<96x128xbf16, #tpu.memory_space<vmem>>, vector<64x128xbf16>,
    %c15_71 = arith.constant 15 : index
    %c0_72 = arith.constant 0 : index
    %93 = vector.load %arg15[%c15_71, %c0_72] : memref<96x128xbf16, #tpu.memory_space<vmem>>, vector<64x128xbf16>
    %c96_i32_73 = arith.constant 96 : i32
    %94 = vector.broadcast %c96_i32_73 : i32 to vector<64x128xi32>
    %95 = arith.cmpi slt, %0, %94 : vector<64x128xi32>
    %c12_74 = arith.constant 12 : index
    %c0_75 = arith.constant 0 : index
    %96 = vector.load %arg15[%c12_74, %c0_75] : memref<96x128xbf16, #tpu.memory_space<vmem>>, vector<64x128xbf16>
    %97 = arith.select %95, %96, %93 : vector<64x128xi1>, vector<64x128xbf16>
    %c64_i32_76 = arith.constant 64 : i32
    %98 = vector.broadcast %c64_i32_76 : i32 to vector<64x128xi32>
    %99 = arith.cmpi slt, %0, %98 : vector<64x128xi32>
    %c11_77 = arith.constant 11 : index
    %c0_78 = arith.constant 0 : index
    %100 = vector.load %arg15[%c11_77, %c0_78] : memref<96x128xbf16, #tpu.memory_space<vmem>>, vector<64x128xbf16>
    %101 = arith.select %99, %100, %97 : vector<64x128xi1>, vector<64x128xbf16>
    %c32_i32_79 = arith.constant 32 : i32
    %102 = vector.broadcast %c32_i32_79 : i32 to vector<64x128xi32>
    %103 = arith.cmpi slt, %0, %102 : vector<64x128xi32>
    %c10_80 = arith.constant 10 : index
    %c0_81 = arith.constant 0 : index
    %104 = vector.load %arg15[%c10_80, %c0_81] : memref<96x128xbf16, #tpu.memory_space<vmem>>, vector<64x128xbf16>
    %105 = arith.select %103, %104, %101 : vector<64x128xi1>, vector<64x128xbf16>
    %c0_82 = arith.constant 0 : index
    %c0_83 = arith.constant 0 : index
    %c0_84 = arith.constant 0 : index
    %c0_85 = arith.constant 0 : index
    %106 = vector.load %arg10[%c0_82, %c0_83, %c0_84, %c0_85] : memref<2x3x128x128xbf16, #tpu.memory_space<vmem>>, vector<1x1x128x128xbf16>
    %107 = vector.shape_cast %106 : vector<1x1x128x128xbf16> to vector<128x128xbf16>
    %cst_86 = arith.constant dense<0.000000e+00> : vector<64x128xf32>
    %108 = tpu.matmul %105, %107, %cst_86 {dimension_numbers = #tpu.dot_dimension_numbers<[1], [0], [0], [1], [0, 0, 1, 1], [], []>} : vector<64x128xbf16>, vector<128x128xbf16>, vector<64x128xf32> -> vector<64x128xf32>
    %c21_87 = arith.constant 21 : index
    %c0_88 = arith.constant 0 : index
    %109 = vector.load %arg15[%c21_87, %c0_88] : memref<96x128xbf16, #tpu.memory_space<vmem>>, vector<64x128xbf16>
    %c96_i32_89 = arith.constant 96 : i32
    %110 = vector.broadcast %c96_i32_89 : i32 to vector<64x128xi32>
    %111 = arith.cmpi slt, %0, %110 : vector<64x128xi32>
    %c20_90 = arith.constant 20 : index
    %c0_91 = arith.constant 0 : index
    %112 = vector.load %arg15[%c20_90, %c0_91] : memref<96x128xbf16, #tpu.memory_space<vmem>>, vector<64x128xbf16>
    %113 = arith.select %111, %112, %109 : vector<64x128xi1>, vector<64x128xbf16>
    %c64_i32_92 = arith.constant 64 : i32
    %114 = vector.broadcast %c64_i32_92 : i32 to vector<64x128xi32>
    %115 = arith.cmpi slt, %0, %114 : vector<64x128xi32>
    %c17_93 = arith.constant 17 : index
    %c0_94 = arith.constant 0 : index
    %116 = vector.load %arg15[%c17_93, %c0_94] : memref<96x128xbf16, #tpu.memory_space<vmem>>, vector<64x128xbf16>
    %117 = arith.select %115, %116, %113 : vector<64x128xi1>, vector<64x128xbf16>
    %c32_i32_95 = arith.constant 32 : i32
    %118 = vector.broadcast %c32_i32_95 : i32 to vector<64x128xi32>
    %119 = arith.cmpi slt, %0, %118 : vector<64x128xi32>
    %c16_96 = arith.constant 16 : index
    %c0_97 = arith.constant 0 : index
    %120 = vector.load %arg15[%c16_96, %c0_97] : memref<96x128xbf16, #tpu.memory_space<vmem>>, vector<64x128xbf16>
    %121 = arith.select %119, %120, %117 : vector<64x128xi1>, vector<64x128xbf16>
    %c0_98 = arith.constant 0 : index
    %c1_99 = arith.constant 1 : index
    %c0_100 = arith.constant 0 : index
    %c0_101 = arith.constant 0 : index
    %122 = vector.load %arg10[%c0_98, %c1_99, %c0_100, %c0_101] : memref<2x3x128x128xbf16, #tpu.memory_space<vmem>>, vector<1x1x128x128xbf16>
    %123 = vector.shape_cast %122 : vector<1x1x128x128xbf16> to vector<128x128xbf16>
    %cst_102 = arith.constant dense<0.000000e+00> : vector<64x128xf32>
    %124 = tpu.matmul %121, %123, %cst_102 {dimension_numbers = #tpu.dot_dimension_numbers<[1], [0], [0], [1], [0, 0, 1, 1], [], []>} : vector<64x128xbf16>, vector<128x128xbf16>, vector<64x128xf32> -> vector<64x128xf32>
    %125 = arith.addf %108, %124 : vector<64x128xf32>
    %c22_103 = arith.constant 22 : index
    %c0_104 = arith.constant 0 : index
    %126 = vector.load %arg15[%c22_103, %c0_104] : memref<96x128xbf16, #tpu.memory_space<vmem>>, vector<64x128xbf16>
    %c0_105 = arith.constant 0 : index
    %c2_106 = arith.constant 2 : index
    %c0_107 = arith.constant 0 : index
    %c0_108 = arith.constant 0 : index
    %127 = vector.load %arg10[%c0_105, %c2_106, %c0_107, %c0_108] : memref<2x3x128x128xbf16, #tpu.memory_space<vmem>>, vector<1x1x128x128xbf16>
    %128 = vector.shape_cast %127 : vector<1x1x128x128xbf16> to vector<128x128xbf16>
    %cst_109 = arith.constant dense<0.000000e+00> : vector<64x128xf32>
    %129 = tpu.matmul %126, %128, %cst_109 {dimension_numbers = #tpu.dot_dimension_numbers<[1], [0], [0], [1], [0, 0, 1, 1], [], []>} : vector<64x128xbf16>, vector<128x128xbf16>, vector<64x128xf32> -> vector<64x128xf32>
    %130 = arith.addf %125, %129 : vector<64x128xf32>
    %131 = vector.broadcast %90 : vector<1x128xf32> to vector<64x128xf32>
    %132 = arith.addf %130, %131 : vector<64x128xf32>
    %cst_110 = arith.constant 0.000000e+00 : f32
    %133 = vector.broadcast %cst_110 : f32 to vector<64x128xf32>
    %134 = arith.maximumf %132, %133 : vector<64x128xf32>
    %135 = arith.truncf %134 : vector<64x128xf32> to vector<64x128xbf16>
    %c0_111 = arith.constant 0 : index
    %c0_112 = arith.constant 0 : index
    %c0_113 = arith.constant 0 : index
    %136 = vector.load %arg12[%c0_111, %c0_112, %c0_113] : memref<2x128x128xbf16, #tpu.memory_space<vmem>>, vector<1x128x128xbf16>
    %137 = vector.shape_cast %136 : vector<1x128x128xbf16> to vector<128x128xbf16>
    %cst_114 = arith.constant dense<0.000000e+00> : vector<64x128xf32>
    %138 = tpu.matmul %135, %137, %cst_114 {dimension_numbers = #tpu.dot_dimension_numbers<[1], [0], [0], [1], [0, 0, 1, 1], [], []>} : vector<64x128xbf16>, vector<128x128xbf16>, vector<64x128xf32> -> vector<64x128xf32>
    %139 = arith.addf %86, %138 : vector<64x128xf32>
    %c0_115 = arith.constant 0 : index
    %c0_116 = arith.constant 0 : index
    %c0_117 = arith.constant 0 : index
    %140 = vector.load %arg13[%c0_115, %c0_116, %c0_117] : memref<2x1x128xf32, #tpu.memory_space<vmem>>, vector<1x1x128xf32>
    %141 = vector.shape_cast %140 : vector<1x1x128xf32> to vector<1x128xf32>
    %142 = vector.broadcast %141 : vector<1x128xf32> to vector<64x128xf32>
    %143 = arith.addf %139, %142 : vector<64x128xf32>
    %144 = arith.mulf %143, %5 : vector<64x128xf32>
    %cst_118 = arith.constant 0.000000e+00 : f32
    %145 = vector.broadcast %cst_118 : f32 to vector<64x128xf32>
    %146 = arith.maximumf %144, %145 : vector<64x128xf32>
    %c1_119 = arith.constant 1 : index
    %c0_120 = arith.constant 0 : index
    %c0_121 = arith.constant 0 : index
    %147 = vector.load %arg11[%c1_119, %c0_120, %c0_121] : memref<2x1x128xf32, #tpu.memory_space<vmem>>, vector<1x1x128xf32>
    %148 = vector.shape_cast %147 : vector<1x1x128xf32> to vector<1x128xf32>
    %149 = arith.truncf %146 : vector<64x128xf32> to vector<64x128xbf16>
    %c16_122 = arith.constant 16 : index
    %c0_123 = arith.constant 0 : index
    %150 = vector.load %arg15[%c16_122, %c0_123] : memref<96x128xbf16, #tpu.memory_space<vmem>>, vector<64x128xbf16>
    tpu.vector_store %arg15[%c16_122, %c0_123], %149 {strides = array<i32>} : memref<96x128xbf16, #tpu.memory_space<vmem>>, vector<64x128xbf16>,
    %c15_124 = arith.constant 15 : index
    %c0_125 = arith.constant 0 : index
    %151 = vector.load %arg15[%c15_124, %c0_125] : memref<96x128xbf16, #tpu.memory_space<vmem>>, vector<64x128xbf16>
    %c96_i32_126 = arith.constant 96 : i32
    %152 = vector.broadcast %c96_i32_126 : i32 to vector<64x128xi32>
    %153 = arith.cmpi slt, %0, %152 : vector<64x128xi32>
    %c12_127 = arith.constant 12 : index
    %c0_128 = arith.constant 0 : index
    %154 = vector.load %arg15[%c12_127, %c0_128] : memref<96x128xbf16, #tpu.memory_space<vmem>>, vector<64x128xbf16>
    %155 = arith.select %153, %154, %151 : vector<64x128xi1>, vector<64x128xbf16>
    %c64_i32_129 = arith.constant 64 : i32
    %156 = vector.broadcast %c64_i32_129 : i32 to vector<64x128xi32>
    %157 = arith.cmpi slt, %0, %156 : vector<64x128xi32>
    %c11_130 = arith.constant 11 : index
    %c0_131 = arith.constant 0 : index
    %158 = vector.load %arg15[%c11_130, %c0_131] : memref<96x128xbf16, #tpu.memory_space<vmem>>, vector<64x128xbf16>
    %159 = arith.select %157, %158, %155 : vector<64x128xi1>, vector<64x128xbf16>
    %c32_i32_132 = arith.constant 32 : i32
    %160 = vector.broadcast %c32_i32_132 : i32 to vector<64x128xi32>
    %161 = arith.cmpi slt, %0, %160 : vector<64x128xi32>
    %c10_133 = arith.constant 10 : index
    %c0_134 = arith.constant 0 : index
    %162 = vector.load %arg15[%c10_133, %c0_134] : memref<96x128xbf16, #tpu.memory_space<vmem>>, vector<64x128xbf16>
    %163 = arith.select %161, %162, %159 : vector<64x128xi1>, vector<64x128xbf16>
    %c1_135 = arith.constant 1 : index
    %c0_136 = arith.constant 0 : index
    %c0_137 = arith.constant 0 : index
    %c0_138 = arith.constant 0 : index
    %164 = vector.load %arg10[%c1_135, %c0_136, %c0_137, %c0_138] : memref<2x3x128x128xbf16, #tpu.memory_space<vmem>>, vector<1x1x128x128xbf16>
    %165 = vector.shape_cast %164 : vector<1x1x128x128xbf16> to vector<128x128xbf16>
    %cst_139 = arith.constant dense<0.000000e+00> : vector<64x128xf32>
    %166 = tpu.matmul %163, %165, %cst_139 {dimension_numbers = #tpu.dot_dimension_numbers<[1], [0], [0], [1], [0, 0, 1, 1], [], []>} : vector<64x128xbf16>, vector<128x128xbf16>, vector<64x128xf32> -> vector<64x128xf32>
    %c21_140 = arith.constant 21 : index
    %c0_141 = arith.constant 0 : index
    %167 = vector.load %arg15[%c21_140, %c0_141] : memref<96x128xbf16, #tpu.memory_space<vmem>>, vector<64x128xbf16>
    %c96_i32_142 = arith.constant 96 : i32
    %168 = vector.broadcast %c96_i32_142 : i32 to vector<64x128xi32>
    %169 = arith.cmpi slt, %0, %168 : vector<64x128xi32>
    %c20_143 = arith.constant 20 : index
    %c0_144 = arith.constant 0 : index
    %170 = vector.load %arg15[%c20_143, %c0_144] : memref<96x128xbf16, #tpu.memory_space<vmem>>, vector<64x128xbf16>
    %171 = arith.select %169, %170, %167 : vector<64x128xi1>, vector<64x128xbf16>
    %c64_i32_145 = arith.constant 64 : i32
    %172 = vector.broadcast %c64_i32_145 : i32 to vector<64x128xi32>
    %173 = arith.cmpi slt, %0, %172 : vector<64x128xi32>
    %c17_146 = arith.constant 17 : index
    %c0_147 = arith.constant 0 : index
    %174 = vector.load %arg15[%c17_146, %c0_147] : memref<96x128xbf16, #tpu.memory_space<vmem>>, vector<64x128xbf16>
    %175 = arith.select %173, %174, %171 : vector<64x128xi1>, vector<64x128xbf16>
    %c32_i32_148 = arith.constant 32 : i32
    %176 = vector.broadcast %c32_i32_148 : i32 to vector<64x128xi32>
    %177 = arith.cmpi slt, %0, %176 : vector<64x128xi32>
    %c16_149 = arith.constant 16 : index
    %c0_150 = arith.constant 0 : index
    %178 = vector.load %arg15[%c16_149, %c0_150] : memref<96x128xbf16, #tpu.memory_space<vmem>>, vector<64x128xbf16>
    %179 = arith.select %177, %178, %175 : vector<64x128xi1>, vector<64x128xbf16>
    %c1_151 = arith.constant 1 : index
    %c1_152 = arith.constant 1 : index
    %c0_153 = arith.constant 0 : index
    %c0_154 = arith.constant 0 : index
    %180 = vector.load %arg10[%c1_151, %c1_152, %c0_153, %c0_154] : memref<2x3x128x128xbf16, #tpu.memory_space<vmem>>, vector<1x1x128x128xbf16>
    %181 = vector.shape_cast %180 : vector<1x1x128x128xbf16> to vector<128x128xbf16>
    %cst_155 = arith.constant dense<0.000000e+00> : vector<64x128xf32>
    %182 = tpu.matmul %179, %181, %cst_155 {dimension_numbers = #tpu.dot_dimension_numbers<[1], [0], [0], [1], [0, 0, 1, 1], [], []>} : vector<64x128xbf16>, vector<128x128xbf16>, vector<64x128xf32> -> vector<64x128xf32>
    %183 = arith.addf %166, %182 : vector<64x128xf32>
    %c22_156 = arith.constant 22 : index
    %c0_157 = arith.constant 0 : index
    %184 = vector.load %arg15[%c22_156, %c0_157] : memref<96x128xbf16, #tpu.memory_space<vmem>>, vector<64x128xbf16>
    %c1_158 = arith.constant 1 : index
    %c2_159 = arith.constant 2 : index
    %c0_160 = arith.constant 0 : index
    %c0_161 = arith.constant 0 : index
    %185 = vector.load %arg10[%c1_158, %c2_159, %c0_160, %c0_161] : memref<2x3x128x128xbf16, #tpu.memory_space<vmem>>, vector<1x1x128x128xbf16>
    %186 = vector.shape_cast %185 : vector<1x1x128x128xbf16> to vector<128x128xbf16>
    %cst_162 = arith.constant dense<0.000000e+00> : vector<64x128xf32>
    %187 = tpu.matmul %184, %186, %cst_162 {dimension_numbers = #tpu.dot_dimension_numbers<[1], [0], [0], [1], [0, 0, 1, 1], [], []>} : vector<64x128xbf16>, vector<128x128xbf16>, vector<64x128xf32> -> vector<64x128xf32>
    %188 = arith.addf %183, %187 : vector<64x128xf32>
    %189 = vector.broadcast %148 : vector<1x128xf32> to vector<64x128xf32>
    %190 = arith.addf %188, %189 : vector<64x128xf32>
    %cst_163 = arith.constant 0.000000e+00 : f32
    %191 = vector.broadcast %cst_163 : f32 to vector<64x128xf32>
    %192 = arith.maximumf %190, %191 : vector<64x128xf32>
    %193 = arith.truncf %192 : vector<64x128xf32> to vector<64x128xbf16>
    %c1_164 = arith.constant 1 : index
    %c0_165 = arith.constant 0 : index
    %c0_166 = arith.constant 0 : index
    %194 = vector.load %arg12[%c1_164, %c0_165, %c0_166] : memref<2x128x128xbf16, #tpu.memory_space<vmem>>, vector<1x128x128xbf16>
    %195 = vector.shape_cast %194 : vector<1x128x128xbf16> to vector<128x128xbf16>
    %cst_167 = arith.constant dense<0.000000e+00> : vector<64x128xf32>
    %196 = tpu.matmul %193, %195, %cst_167 {dimension_numbers = #tpu.dot_dimension_numbers<[1], [0], [0], [1], [0, 0, 1, 1], [], []>} : vector<64x128xbf16>, vector<128x128xbf16>, vector<64x128xf32> -> vector<64x128xf32>
    %197 = arith.addf %144, %196 : vector<64x128xf32>
    %c1_168 = arith.constant 1 : index
    %c0_169 = arith.constant 0 : index
    %c0_170 = arith.constant 0 : index
    %198 = vector.load %arg13[%c1_168, %c0_169, %c0_170] : memref<2x1x128xf32, #tpu.memory_space<vmem>>, vector<1x1x128xf32>
    %199 = vector.shape_cast %198 : vector<1x1x128xf32> to vector<1x128xf32>
    %200 = vector.broadcast %199 : vector<1x128xf32> to vector<64x128xf32>
    %201 = arith.addf %197, %200 : vector<64x128xf32>
    %202 = arith.mulf %201, %5 : vector<64x128xf32>
    %cst_171 = arith.constant 0.000000e+00 : f32
    %203 = vector.broadcast %cst_171 : f32 to vector<64x128xf32>
    %204 = arith.maximumf %202, %203 : vector<64x128xf32>
    %c0_172 = arith.constant 0 : index
    %c0_173 = arith.constant 0 : index
    %205 = vector.load %arg14[%c0_172, %c0_173] : memref<64x128xf32, #tpu.memory_space<vmem>>, vector<64x128xf32>
    tpu.vector_store %arg14[%c0_172, %c0_173], %204 {strides = array<i32>} : memref<64x128xf32, #tpu.memory_space<vmem>>, vector<64x128xf32>,
    return
  }
  func.func @transform_0(%arg0: i32) -> (i32, i32) {
    %c0_i32 = arith.constant 0 : i32
    %c0_i32_0 = arith.constant 0 : i32
    return %arg0, %c0_i32 : i32, i32
  }
  func.func @transform_1(%arg0: i32) -> (i32, i32) {
    %c0_i32 = arith.constant 0 : i32
    %c0_i32_0 = arith.constant 0 : i32
    %c0_i32_1 = arith.constant 0 : i32
    return %c0_i32, %c0_i32_0 : i32, i32
  }
  func.func @transform_2(%arg0: i32) -> (i32, i32) {
    %c0_i32 = arith.constant 0 : i32
    %c0_i32_0 = arith.constant 0 : i32
    %c0_i32_1 = arith.constant 0 : i32
    return %c0_i32, %c0_i32_0 : i32, i32
  }
  func.func @transform_3(%arg0: i32) -> (i32, i32) {
    %c0_i32 = arith.constant 0 : i32
    %c0_i32_0 = arith.constant 0 : i32
    %c0_i32_1 = arith.constant 0 : i32
    return %c0_i32, %c0_i32_0 : i32, i32
  }
  func.func @transform_4(%arg0: i32) -> (i32, i32) {
    %c0_i32 = arith.constant 0 : i32
    %c0_i32_0 = arith.constant 0 : i32
    %c0_i32_1 = arith.constant 0 : i32
    return %c0_i32, %c0_i32_0 : i32, i32
  }
  func.func @transform_5(%arg0: i32) -> (i32, i32, i32) {
    %c0_i32 = arith.constant 0 : i32
    %c0_i32_0 = arith.constant 0 : i32
    %c0_i32_1 = arith.constant 0 : i32
    %c0_i32_2 = arith.constant 0 : i32
    return %c0_i32, %c0_i32_0, %c0_i32_1 : i32, i32, i32
  }
  func.func @transform_6(%arg0: i32) -> (i32, i32) {
    %c0_i32 = arith.constant 0 : i32
    %c0_i32_0 = arith.constant 0 : i32
    %c0_i32_1 = arith.constant 0 : i32
    return %c0_i32, %c0_i32_0 : i32, i32
  }
  func.func @transform_7(%arg0: i32) -> (i32, i32, i32) {
    %c0_i32 = arith.constant 0 : i32
    %c0_i32_0 = arith.constant 0 : i32
    %c0_i32_1 = arith.constant 0 : i32
    %c0_i32_2 = arith.constant 0 : i32
    return %c0_i32, %c0_i32_0, %c0_i32_1 : i32, i32, i32
  }
  func.func @transform_8(%arg0: i32) -> (i32, i32) {
    %c0_i32 = arith.constant 0 : i32
    %c0_i32_0 = arith.constant 0 : i32
    %c0_i32_1 = arith.constant 0 : i32
    return %c0_i32, %c0_i32_0 : i32, i32
  }
  func.func @transform_9(%arg0: i32) -> (i32, i32, i32, i32) {
    %c0_i32 = arith.constant 0 : i32
    %c0_i32_0 = arith.constant 0 : i32
    %c0_i32_1 = arith.constant 0 : i32
    %c0_i32_2 = arith.constant 0 : i32
    %c0_i32_3 = arith.constant 0 : i32
    return %c0_i32, %c0_i32_0, %c0_i32_1, %c0_i32_2 : i32, i32, i32, i32
  }
  func.func @transform_10(%arg0: i32) -> (i32, i32, i32) {
    %c0_i32 = arith.constant 0 : i32
    %c0_i32_0 = arith.constant 0 : i32
    %c0_i32_1 = arith.constant 0 : i32
    %c0_i32_2 = arith.constant 0 : i32
    return %c0_i32, %c0_i32_0, %c0_i32_1 : i32, i32, i32
  }
  func.func @transform_11(%arg0: i32) -> (i32, i32, i32) {
    %c0_i32 = arith.constant 0 : i32
    %c0_i32_0 = arith.constant 0 : i32
    %c0_i32_1 = arith.constant 0 : i32
    %c0_i32_2 = arith.constant 0 : i32
    return %c0_i32, %c0_i32_0, %c0_i32_1 : i32, i32, i32
  }
  func.func @transform_12(%arg0: i32) -> (i32, i32, i32) {
    %c0_i32 = arith.constant 0 : i32
    %c0_i32_0 = arith.constant 0 : i32
    %c0_i32_1 = arith.constant 0 : i32
    %c0_i32_2 = arith.constant 0 : i32
    return %c0_i32, %c0_i32_0, %c0_i32_1 : i32, i32, i32
  }
  func.func @transform_13(%arg0: i32) -> (i32, i32) {
    %c0_i32 = arith.constant 0 : i32
    %c0_i32_0 = arith.constant 0 : i32
    return %arg0, %c0_i32 : i32, i32
  }
}

</mosaic_0001>

<llo_original>
// kernel: forward.1
$region0: #{forward.1}
  #allocation0 [shape = 'u32[]', space=smem, size = 0x4, offset = 0x4, fixed_abs, tag = 'smem constant byte address 0x4 - core index']
  #allocation1 [shape = 'u32[144,128]{1,0:T(1,128)}', space=vmem, size = 0x12000, scoped, tag = 'internal scratch']
  #allocation2 [shape = 'bf16[96,128]{1,0:T(16,128)(2,1)}', space=vmem, size = 0x6000, scoped, tag = 'scratch operand']
  %s0 = inlined_call_operand.vmem [shape: bf16[64,256], index: 0, kind: input, shape index: {}]
  %s1 = inlined_call_operand.vmem [shape: f32[64,128], index: 1, kind: input, shape index: {}]
  %s2 = inlined_call_operand.vmem [shape: f32[64,128], index: 2, kind: input, shape index: {}]
  %s3 = inlined_call_operand.vmem [shape: bf16[256,128], index: 3, kind: input, shape index: {}]
  %s4 = inlined_call_operand.vmem [shape: f32[1,128], index: 4, kind: input, shape index: {}]
  %s5 = inlined_call_operand.vmem [shape: bf16[2,128,128], index: 5, kind: input, shape index: {}]
  %s6 = inlined_call_operand.vmem [shape: f32[1,128], index: 6, kind: input, shape index: {}]
  %s7 = inlined_call_operand.vmem [shape: bf16[3,128,128], index: 7, kind: input, shape index: {}]
  %s8 = inlined_call_operand.vmem [shape: f32[1,128], index: 8, kind: input, shape index: {}]
  %s9 = inlined_call_operand.vmem [shape: bf16[2,3,128,128], index: 9, kind: input, shape index: {}]
  %s10 = inlined_call_operand.vmem [shape: f32[2,1,128], index: 10, kind: input, shape index: {}]
  %s11 = inlined_call_operand.vmem [shape: bf16[2,128,128], index: 11, kind: input, shape index: {}]
  %s12 = inlined_call_operand.vmem [shape: f32[2,1,128], index: 12, kind: input, shape index: {}]
  %s13 = inlined_call_operand.vmem [shape: f32[64,128], index: 13, kind: output, shape index: {}]
  %s14 = sld [smem:[#allocation0]]
  $region62: #{forward.1} parent=0
    _
  %s16 = ssub.s32 1, %s14
  %s17 = scalar_select 0, %s16, %s14
  // Predicated region
  $region2: #{forward.1} parent=0 // pred_check
    _
  $region3: #{forward.1} parent=0 // pred_check_branch
    %19 = sbr.rel (0) target = $region5
  $region4: #{forward.1} parent=0 // pred_region
    _
  $region5: #{forward.1} parent=0 // pred_fallthru
    _
  // Predicated region
  $region6: #{forward.1} parent=0 // pred_check
    _
  $region7: #{forward.1} parent=0 // pred_check_branch
    %21 = sbr.rel (0) target = $region9
  $region8: #{forward.1} parent=0 // pred_region
    _
  $region9: #{forward.1} parent=0 // pred_fallthru
    _
  // Predicated region
  $region10: #{forward.1} parent=0 // pred_check
    _
  $region11: #{forward.1} parent=0 // pred_check_branch
    %23 = sbr.rel (0) target = $region13
  $region12: #{forward.1} parent=0 // pred_region
    _
  $region13: #{forward.1} parent=0 // pred_fallthru
    _
  // Predicated region
  $region14: #{forward.1} parent=0 // pred_check
    _
  $region15: #{forward.1} parent=0 // pred_check_branch
    %25 = sbr.rel (0) target = $region17
  $region16: #{forward.1} parent=0 // pred_region
    _
  $region17: #{forward.1} parent=0 // pred_fallthru
    _
  // Predicated region
  $region18: #{forward.1} parent=0 // pred_check
    _
  $region19: #{forward.1} parent=0 // pred_check_branch
    %27 = sbr.rel (0) target = $region21
  $region20: #{forward.1} parent=0 // pred_region
    _
  $region21: #{forward.1} parent=0 // pred_fallthru
    _
  // Predicated region
  $region22: #{forward.1} parent=0 // pred_check
    _
  $region23: #{forward.1} parent=0 // pred_check_branch
    %29 = sbr.rel (0) target = $region25
  $region24: #{forward.1} parent=0 // pred_region
    _
  $region25: #{forward.1} parent=0 // pred_fallthru
    _
  // Predicated region
  $region26: #{forward.1} parent=0 // pred_check
    _
  $region27: #{forward.1} parent=0 // pred_check_branch
    %31 = sbr.rel (0) target = $region29
  $region28: #{forward.1} parent=0 // pred_region
    _
  $region29: #{forward.1} parent=0 // pred_fallthru
    _
  // Predicated region
  $region30: #{forward.1} parent=0 // pred_check
    _
  $region31: #{forward.1} parent=0 // pred_check_branch
    %33 = sbr.rel (0) target = $region33
  $region32: #{forward.1} parent=0 // pred_region
    _
  $region33: #{forward.1} parent=0 // pred_fallthru
    _
  // Predicated region
  $region34: #{forward.1} parent=0 // pred_check
    _
  $region35: #{forward.1} parent=0 // pred_check_branch
    %35 = sbr.rel (0) target = $region37
  $region36: #{forward.1} parent=0 // pred_region
    _
  $region37: #{forward.1} parent=0 // pred_fallthru
    _
  // Predicated region
  $region38: #{forward.1} parent=0 // pred_check
    _
  $region39: #{forward.1} parent=0 // pred_check_branch
    %37 = sbr.rel (0) target = $region41
  $region40: #{forward.1} parent=0 // pred_region
    _
  $region41: #{forward.1} parent=0 // pred_fallthru
    _
  // Predicated region
  $region42: #{forward.1} parent=0 // pred_check
    _
  $region43: #{forward.1} parent=0 // pred_check_branch
    %39 = sbr.rel (0) target = $region45
  $region44: #{forward.1} parent=0 // pred_region
    _
  $region45: #{forward.1} parent=0 // pred_fallthru
    _
  // Predicated region
  $region46: #{forward.1} parent=0 // pred_check
    _
  $region47: #{forward.1} parent=0 // pred_check_branch
    %41 = sbr.rel (0) target = $region49
  $region48: #{forward.1} parent=0 // pred_region
    _
  $region49: #{forward.1} parent=0 // pred_fallthru
    _
  // Predicated region
  $region50: #{forward.1} parent=0 // pred_check
    _
  $region51: #{forward.1} parent=0 // pred_check_branch
    %43 = sbr.rel (0) target = $region53
  $region52: #{forward.1} parent=0 // pred_region
    _
  $region53: #{forward.1} parent=0 // pred_fallthru
    _
  %v47 = vlaneseq
  %v48 = vand.u32 %v47, 127
  %49 = vst [vmem:[#allocation2] sm:$0xff] 0
  %50 = vst [vmem:[#allocation2 + $0x28] sm:$0xff] 0
  %v51 = vld [vmem:[%s2] sm:$0xff]
  %v52 = vld [vmem:[%s2 + $0x8] sm:$0xff]
  %v53 = vld [vmem:[%s2 + $0x10] sm:$0xff]
  %v54 = vld [vmem:[%s2 + $0x18] sm:$0xff]
  %v55 = vld [vmem:[%s2 + $0x20] sm:$0xff]
  %v56 = vld [vmem:[%s2 + $0x28] sm:$0xff]
  %v57 = vld [vmem:[%s2 + $0x30] sm:$0xff]
  %v58 = vld [vmem:[%s2 + $0x38] sm:$0xff]
  %v59 = vld [vmem:[%s0] sm:$0xff]
  %v60 = vld [vmem:[%s0 + $0x8] sm:$0xff]
  %v61 = vld [vmem:[%s0 + $0x10] sm:$0xff]
  %v62 = vld [vmem:[%s0 + $0x18] sm:$0xff]
  %v63 = vld [vmem:[%s0 + $0x20] sm:$0xff]
  %v64 = vld [vmem:[%s0 + $0x28] sm:$0xff]
  %v65 = vld [vmem:[%s0 + $0x30] sm:$0xff]
  %v66 = vld [vmem:[%s0 + $0x38] sm:$0xff]
  %v67 = vld [vmem:[%s3] sm:$0xf]
  %v68 = vld [vmem:[%s3 + $0x4] sm:$0xf]
  %v69 = vld [vmem:[%s3 + $0x8] sm:$0xf]
  %v70 = vld [vmem:[%s3 + $0xc] sm:$0xf]
  %v71 = vld [vmem:[%s3 + $0x10] sm:$0xf]
  %v72 = vld [vmem:[%s3 + $0x14] sm:$0xf]
  %v73 = vld [vmem:[%s3 + $0x18] sm:$0xf]
  %v74 = vld [vmem:[%s3 + $0x1c] sm:$0xf]
  %v75 = vld [vmem:[%s3 + $0x20] sm:$0xf]
  %v76 = vld [vmem:[%s3 + $0x24] sm:$0xf]
  %v77 = vld [vmem:[%s3 + $0x28] sm:$0xf]
  %v78 = vld [vmem:[%s3 + $0x2c] sm:$0xf]
  %v79 = vld [vmem:[%s3 + $0x30] sm:$0xf]
  %v80 = vld [vmem:[%s3 + $0x34] sm:$0xf]
  %v81 = vld [vmem:[%s3 + $0x38] sm:$0xf]
  %v82 = vld [vmem:[%s3 + $0x3c] sm:$0xf]
  %v83 = vld [vmem:[%s3 + $0x40] sm:$0xf]
  %v84 = vld [vmem:[%s3 + $0x44] sm:$0xf]
  %v85 = vld [vmem:[%s3 + $0x48] sm:$0xf]
  %v86 = vld [vmem:[%s3 + $0x4c] sm:$0xf]
  %v87 = vld [vmem:[%s3 + $0x50] sm:$0xf]
  %v88 = vld [vmem:[%s3 + $0x54] sm:$0xf]
  %v89 = vld [vmem:[%s3 + $0x58] sm:$0xf]
  %v90 = vld [vmem:[%s3 + $0x5c] sm:$0xf]
  %v91 = vld [vmem:[%s3 + $0x60] sm:$0xf]
  %v92 = vld [vmem:[%s3 + $0x64] sm:$0xf]
  %v93 = vld [vmem:[%s3 + $0x68] sm:$0xf]
  %v94 = vld [vmem:[%s3 + $0x6c] sm:$0xf]
  %v95 = vld [vmem:[%s3 + $0x70] sm:$0xf]
  %v96 = vld [vmem:[%s3 + $0x74] sm:$0xf]
  %v97 = vld [vmem:[%s3 + $0x78] sm:$0xf]
  %v98 = vld [vmem:[%s3 + $0x7c] sm:$0xf]
  %v99 = vld [vmem:[%s4] sm:$0x1]
  %v101 = vlaneseq
  %v102 = vshrl.u32 %v101, 7
  %v103 = vsub.s32 0, %v102
  %v104 = vrot.slane %v99, %v103
  %v114 = vunpack.c.l.b16 %v59
  %v115 = vunpack.c.h.b16 %v59
  %v116 = vunpack.c.l.b16 %v60
  %v117 = vunpack.c.h.b16 %v60
  %v118 = vunpack.c.l.b16 %v61
  %v119 = vunpack.c.h.b16 %v61
  %v120 = vunpack.c.l.b16 %v62
  %v121 = vunpack.c.h.b16 %v62
  %v122 = vunpack.c.l.b16 %v63
  %v123 = vunpack.c.h.b16 %v63
  %v124 = vunpack.c.l.b16 %v64
  %v125 = vunpack.c.h.b16 %v64
  %v126 = vunpack.c.l.b16 %v65
  %v127 = vunpack.c.h.b16 %v65
  %v128 = vunpack.c.l.b16 %v66
  %v129 = vunpack.c.h.b16 %v66
  %v130 = vpack.c.b16 %v116, %v114
  %v131 = vpack.c.b16 %v117, %v115
  %v132 = vpack.c.b16 %v120, %v118
  %v133 = vpack.c.b16 %v121, %v119
  %v134 = vpack.c.b16 %v124, %v122
  %v135 = vpack.c.b16 %v125, %v123
  %v136 = vpack.c.b16 %v128, %v126
  %v137 = vpack.c.b16 %v129, %v127
  %v178 = vunpack.c.l.b16 %v67
  %v179 = vunpack.c.l.b16 %v68
  %v180 = vunpack.c.l.b16 %v69
  %v181 = vunpack.c.l.b16 %v70
  %v182 = vunpack.c.l.b16 %v71
  %v183 = vunpack.c.l.b16 %v72
  %v184 = vunpack.c.l.b16 %v73
  %v185 = vunpack.c.l.b16 %v74
  %v186 = vunpack.c.l.b16 %v75
  %v187 = vunpack.c.l.b16 %v76
  %v188 = vunpack.c.l.b16 %v77
  %v189 = vunpack.c.l.b16 %v78
  %v190 = vunpack.c.l.b16 %v79
  %v191 = vunpack.c.l.b16 %v80
  %v192 = vunpack.c.l.b16 %v81
  %v193 = vunpack.c.l.b16 %v82
  %v194 = vunpack.c.l.b16 %v83
  %v195 = vunpack.c.l.b16 %v84
  %v196 = vunpack.c.l.b16 %v85
  %v197 = vunpack.c.l.b16 %v86
  %v198 = vunpack.c.l.b16 %v87
  %v199 = vunpack.c.l.b16 %v88
  %v200 = vunpack.c.l.b16 %v89
  %v201 = vunpack.c.l.b16 %v90
  %v202 = vunpack.c.l.b16 %v91
  %v203 = vunpack.c.l.b16 %v92
  %v204 = vunpack.c.l.b16 %v93
  %v205 = vunpack.c.l.b16 %v94
  %v206 = vunpack.c.l.b16 %v95
  %v207 = vunpack.c.l.b16 %v96
  %v208 = vunpack.c.l.b16 %v97
  %v209 = vunpack.c.l.b16 %v98
  %v210 = vpack.c.b16 %v179, %v178
  %v211 = vpack.c.b16 %v181, %v180
  %v212 = vpack.c.b16 %v183, %v182
  %v213 = vpack.c.b16 %v185, %v184
  %v214 = vpack.c.b16 %v187, %v186
  %v215 = vpack.c.b16 %v189, %v188
  %v216 = vpack.c.b16 %v191, %v190
  %v217 = vpack.c.b16 %v193, %v192
  %v218 = vpack.c.b16 %v195, %v194
  %v219 = vpack.c.b16 %v197, %v196
  %v220 = vpack.c.b16 %v199, %v198
  %v221 = vpack.c.b16 %v201, %v200
  %v222 = vpack.c.b16 %v203, %v202
  %v223 = vpack.c.b16 %v205, %v204
  %v224 = vpack.c.b16 %v207, %v206
  %v225 = vpack.c.b16 %v209, %v208
  %242 = vmatprep.subr.bf16.mxu0 0
  %243 = vmatpush1.bf16.msra.mxu0 %v210
  %244 = vmatprep.subr.bf16.mxu0 0
  %245 = vmatpush1.bf16.msra.mxu0 %v211
  %246 = vmatprep.subr.bf16.mxu0 0
  %247 = vmatpush1.bf16.msra.mxu0 %v212
  %248 = vmatprep.subr.bf16.mxu0 0
  %249 = vmatpush1.bf16.msra.mxu0 %v213
  %250 = vmatprep.subr.bf16.mxu0 0
  %251 = vmatpush1.bf16.msra.mxu0 %v214
  %252 = vmatprep.subr.bf16.mxu0 0
  %253 = vmatpush1.bf16.msra.mxu0 %v215
  %254 = vmatprep.subr.bf16.mxu0 0
  %255 = vmatpush1.bf16.msra.mxu0 %v216
  %256 = vmatprep.subr.bf16.mxu0 0
  %257 = vmatpush1.bf16.msra.mxu0 %v217
  %258 = vmatprep.subr.bf16.mxu0 0
  %259 = vmatpush1.bf16.msra.mxu0 %v218
  %260 = vmatprep.subr.bf16.mxu0 0
  %261 = vmatpush1.bf16.msra.mxu0 %v219
  %262 = vmatprep.subr.bf16.mxu0 0
  %263 = vmatpush1.bf16.msra.mxu0 %v220
  %264 = vmatprep.subr.bf16.mxu0 0
  %265 = vmatpush1.bf16.msra.mxu0 %v221
  %266 = vmatprep.subr.bf16.mxu0 0
  %267 = vmatpush1.bf16.msra.mxu0 %v222
  %268 = vmatprep.subr.bf16.mxu0 0
  %269 = vmatpush1.bf16.msra.mxu0 %v223
  %270 = vmatprep.subr.bf16.mxu0 0
  %271 = vmatpush1.bf16.msra.mxu0 %v224
  %272 = vmatprep.subr.bf16.mxu0 0
  %273 = vmatpush1.bf16.msra.mxu0 %v225
  %274 = vmatprep.mubr.bf16.mxu0 %v131
  %275 = vmatmul.mubr.bf16.gmra.mrb[0].mxu0 %v130
  %v276 = vpop.f32.mrb[0].mxu0
  %v277 = vadd.f32 %v104, %v276
  %v278 = vpop.f32.mrb[0].mxu0
  %v279 = vpop.f32.mrb[0].mxu0
  %v280 = vadd.f32 %v104, %v279
  %v281 = vpop.f32.mrb[0].mxu0
  %282 = vmatprep.mubr.bf16.mxu0 %v133
  %283 = vmatmul.mubr.bf16.gmra.mrb[0].mxu0 %v132
  %v284 = vpop.f32.mrb[0].mxu0
  %v285 = vadd.f32 %v104, %v284
  %v286 = vpop.f32.mrb[0].mxu0
  %v287 = vpop.f32.mrb[0].mxu0
  %v288 = vadd.f32 %v104, %v287
  %v289 = vpop.f32.mrb[0].mxu0
  %290 = vmatprep.mubr.bf16.mxu0 %v135
  %291 = vmatmul.mubr.bf16.gmra.mrb[0].mxu0 %v134
  %v292 = vpop.f32.mrb[0].mxu0
  %v293 = vadd.f32 %v104, %v292
  %v294 = vpop.f32.mrb[0].mxu0
  %v295 = vpop.f32.mrb[0].mxu0
  %v296 = vadd.f32 %v104, %v295
  %v297 = vpop.f32.mrb[0].mxu0
  %298 = vmatprep.mubr.bf16.mxu0 %v137
  %299 = vmatmul.mubr.bf16.gmra.mrb[0].mxu0 %v136
  %v300 = vpop.f32.mrb[0].mxu0
  %v301 = vadd.f32 %v104, %v300
  %v302 = vpop.f32.mrb[0].mxu0
  %v303 = vpop.f32.mrb[0].mxu0
  %v304 = vadd.f32 %v104, %v303
  %v305 = vpop.f32.mrb[0].mxu0
  %306 = vdwg.mxu0
  %v307 = vmax.f32 %v277, 0.0
  %v308 = vmax.f32 %v280, 0.0
  %v309 = vmax.f32 %v285, 0.0
  %v310 = vmax.f32 %v288, 0.0
  %v311 = vmax.f32 %v293, 0.0
  %v312 = vmax.f32 %v296, 0.0
  %v313 = vmax.f32 %v301, 0.0
  %v314 = vmax.f32 %v304, 0.0
  %v315 = vld [vmem:[%s1] sm:$0xff]
  %v316 = vld [vmem:[%s1 + $0x8] sm:$0xff]
  %v317 = vld [vmem:[%s1 + $0x10] sm:$0xff]
  %v318 = vld [vmem:[%s1 + $0x18] sm:$0xff]
  %v319 = vld [vmem:[%s1 + $0x20] sm:$0xff]
  %v320 = vld [vmem:[%s1 + $0x28] sm:$0xff]
  %v321 = vld [vmem:[%s1 + $0x30] sm:$0xff]
  %v322 = vld [vmem:[%s1 + $0x38] sm:$0xff]
  %v323 = vmul.f32 %v307, %v315
  %v324 = vmul.f32 %v308, %v316
  %v325 = vmul.f32 %v309, %v317
  %v326 = vmul.f32 %v310, %v318
  %v327 = vmul.f32 %v311, %v319
  %v328 = vmul.f32 %v312, %v320
  %v329 = vmul.f32 %v313, %v321
  %v330 = vmul.f32 %v314, %v322
  %v331 = vld [vmem:[%s6] sm:$0x1]
  %v332 = vpack.c.bf16 %v324, %v323
  %v333 = vpack.c.bf16 %v326, %v325
  %v334 = vpack.c.bf16 %v328, %v327
  %v335 = vpack.c.bf16 %v330, %v329
  %336 = vst [vmem:[#allocation2 + $0x8] sm:$0xff] %v332
  %337 = vst [vmem:[#allocation2 + $0x10] sm:$0xff] %v333
  %338 = vst [vmem:[#allocation2 + $0x18] sm:$0xff] %v334
  %339 = vst [vmem:[#allocation2 + $0x20] sm:$0xff] %v335
  %v340 = vld [vmem:[#allocation2 + $0x8] sm:$0xff]
  %v341 = vld [vmem:[#allocation2 + $0x10] sm:$0xff]
  %v342 = vld [vmem:[#allocation2 + $0x18] sm:$0xff]
  %v343 = vld [vmem:[#allocation2 + $0x20] sm:$0xff]
  %v344 = vld [vmem:[#allocation2 + $0x28] sm:$0x1]
  %vm345 = vcmp.lt.s32.totalorder %v48, 64
  %v346 = vld [vmem:[#allocation2 + $0x8] sm:$0xff]
  %v347 = vld [vmem:[#allocation2 + $0x10] sm:$0xff]
  %v348 = vld [vmem:[#allocation2 + $0x18] sm:$0xff]
  %v349 = vld [vmem:[#allocation2 + $0x20] sm:$0xff]
  %vm350 = vmpackc.low %vm345, %vm345
  %v351 = vsel %vm350, 65537, 0
  %v352 = vlaneseq
  %v353 = vshrl.u32 %v352, 7
  %v354 = vsub.s32 0, %v353
  %v355 = vrot.slane %v351, %v354
  %vm356 = vcmp.ne.s16.totalorder %v355, 0
  %vm357 = vsmask.f32 7424
  %v359 = vshrl.u32 %v340, 16
  %v361 = vshll.u32 %v340, 16
  %v363 = vrot.slane %v361, 1
  %v364 = vor.u32 %v359, %v363
  %v366 = vshll.u32 %v341, 16
  %v368 = vrot.slane %v366, 1
  %v369 = vsel %vm357, %v364, %v368
  %v370 = vshrl.u32 %v341, 16
  %v372 = vor.u32 %v370, %v368
  %v374 = vshll.u32 %v342, 16
  %v376 = vrot.slane %v374, 1
  %v377 = vsel %vm357, %v372, %v376
  %v378 = vshrl.u32 %v342, 16
  %v380 = vor.u32 %v378, %v376
  %v382 = vshll.u32 %v343, 16
  %v384 = vrot.slane %v382, 1
  %v385 = vsel %vm357, %v380, %v384
  %v386 = vshrl.u32 %v343, 16
  %v388 = vor.u32 %v386, %v384
  %v390 = vshll.u32 %v344, 16
  %v392 = vrot.slane %v390, 1
  %v393 = vsel %vm357, %v388, %v392
  %v398 = vsel %vm356, %v346, %v369
  %v399 = vsel %vm356, %v347, %v377
  %v400 = vsel %vm356, %v348, %v385
  %v401 = vsel %vm356, %v349, %v393
  %v402 = vld [vmem:[%s5] sm:$0xf]
  %v403 = vld [vmem:[%s5 + $0x4] sm:$0xf]
  %v404 = vld [vmem:[%s5 + $0x8] sm:$0xf]
  %v405 = vld [vmem:[%s5 + $0xc] sm:$0xf]
  %v406 = vld [vmem:[%s5 + $0x10] sm:$0xf]
  %v407 = vld [vmem:[%s5 + $0x14] sm:$0xf]
  %v408 = vld [vmem:[%s5 + $0x18] sm:$0xf]
  %v409 = vld [vmem:[%s5 + $0x1c] sm:$0xf]
  %v410 = vld [vmem:[%s5 + $0x20] sm:$0xf]
  %v411 = vld [vmem:[%s5 + $0x24] sm:$0xf]
  %v412 = vld [vmem:[%s5 + $0x28] sm:$0xf]
  %v413 = vld [vmem:[%s5 + $0x2c] sm:$0xf]
  %v414 = vld [vmem:[%s5 + $0x30] sm:$0xf]
  %v415 = vld [vmem:[%s5 + $0x34] sm:$0xf]
  %v416 = vld [vmem:[%s5 + $0x38] sm:$0xf]
  %v417 = vld [vmem:[%s5 + $0x3c] sm:$0xf]
  %v418 = vld [vmem:[#allocation2 + $0x8] sm:$0xf8]
  %v419 = vld [vmem:[#allocation2 + $0x28] sm:$0x7]
  %v420 = vld [vmem:[#allocation2 + $0x8] sm:$0xfc]
  %v422 = vshrl.u32 %v418, 16
  %v424 = vshll.u32 %v418, 16
  %v426 = vrot.slane %v424, 1
  %v427 = vor.u32 %v422, %v426
  %v428 = vsel %vm357, %v427, %v368
  %v430 = vshll.u32 %v419, 16
  %v432 = vrot.slane %v430, 1
  %v433 = vsel %vm357, %v388, %v432
  %v434 = vshrl.u32 %v419, 16
  %v436 = vor.u32 %v434, %v432
  %v440 = vsel %vm356, %v420, %v428
  %v441 = vsel %vm356, %v341, %v377
  %v442 = vsel %vm356, %v342, %v385
  %v443 = vsel %vm356, %v343, %v433
  %v444 = vsel %vm356, %v419, %v436
  %s445 = scalar_lea.vmem %s5, 64
  %v446 = vld [vmem:[%s445] sm:$0xf]
  %v447 = vld [vmem:[%s445 + $0x4] sm:$0xf]
  %v448 = vld [vmem:[%s445 + $0x8] sm:$0xf]
  %v449 = vld [vmem:[%s445 + $0xc] sm:$0xf]
  %v450 = vld [vmem:[%s445 + $0x10] sm:$0xf]
  %v451 = vld [vmem:[%s445 + $0x14] sm:$0xf]
  %v452 = vld [vmem:[%s445 + $0x18] sm:$0xf]
  %v453 = vld [vmem:[%s445 + $0x1c] sm:$0xf]
  %v454 = vld [vmem:[%s445 + $0x20] sm:$0xf]
  %v455 = vld [vmem:[%s445 + $0x24] sm:$0xf]
  %v456 = vld [vmem:[%s445 + $0x28] sm:$0xf]
  %v457 = vld [vmem:[%s445 + $0x2c] sm:$0xf]
  %v458 = vld [vmem:[%s445 + $0x30] sm:$0xf]
  %v459 = vld [vmem:[%s445 + $0x34] sm:$0xf]
  %v460 = vld [vmem:[%s445 + $0x38] sm:$0xf]
  %v461 = vld [vmem:[%s445 + $0x3c] sm:$0xf]
  %vm462 = vsmask.f32 5376
  %v464 = vshrl.u32 %v440, 16
  %v466 = vrot.slane %v464, 2
  %v467 = vshll.u32 %v440, 16
  %v469 = vrot.slane %v467, 3
  %v470 = vor.u32 %v466, %v469
  %v472 = vshrl.u32 %v441, 16
  %v474 = vrot.slane %v472, 2
  %v475 = vshll.u32 %v441, 16
  %v477 = vrot.slane %v475, 3
  %v478 = vor.u32 %v474, %v477
  %v479 = vsel %vm462, %v470, %v478
  %v481 = vshrl.u32 %v442, 16
  %v483 = vrot.slane %v481, 2
  %v484 = vshll.u32 %v442, 16
  %v486 = vrot.slane %v484, 3
  %v487 = vor.u32 %v483, %v486
  %v488 = vsel %vm462, %v478, %v487
  %v490 = vshrl.u32 %v443, 16
  %v492 = vrot.slane %v490, 2
  %v493 = vshll.u32 %v443, 16
  %v495 = vrot.slane %v493, 3
  %v496 = vor.u32 %v492, %v495
  %v497 = vsel %vm462, %v487, %v496
  %v499 = vshrl.u32 %v444, 16
  %v501 = vrot.slane %v499, 2
  %v502 = vshll.u32 %v444, 16
  %v504 = vrot.slane %v502, 3
  %v505 = vor.u32 %v501, %v504
  %v506 = vsel %vm462, %v496, %v505
  %v527 = vunpack.c.l.b16 %v446
  %v528 = vunpack.c.l.b16 %v447
  %v529 = vunpack.c.l.b16 %v448
  %v530 = vunpack.c.l.b16 %v449
  %v531 = vunpack.c.l.b16 %v450
  %v532 = vunpack.c.l.b16 %v451
  %v533 = vunpack.c.l.b16 %v452
  %v534 = vunpack.c.l.b16 %v453
  %v535 = vunpack.c.l.b16 %v454
  %v536 = vunpack.c.l.b16 %v455
  %v537 = vunpack.c.l.b16 %v456
  %v538 = vunpack.c.l.b16 %v457
  %v539 = vunpack.c.l.b16 %v458
  %v540 = vunpack.c.l.b16 %v459
  %v541 = vunpack.c.l.b16 %v460
  %v542 = vunpack.c.l.b16 %v461
  %v543 = vpack.c.b16 %v528, %v527
  %v544 = vpack.c.b16 %v530, %v529
  %v545 = vpack.c.b16 %v532, %v531
  %v546 = vpack.c.b16 %v534, %v533
  %v547 = vpack.c.b16 %v536, %v535
  %v548 = vpack.c.b16 %v538, %v537
  %v549 = vpack.c.b16 %v540, %v539
  %v550 = vpack.c.b16 %v542, %v541
  %559 = vmatprep.subr.bf16.mxu0 0
  %560 = vmatpush1.bf16.msra.mxu0 %v543
  %561 = vmatprep.subr.bf16.mxu0 0
  %562 = vmatpush1.bf16.msra.mxu0 %v544
  %563 = vmatprep.subr.bf16.mxu0 0
  %564 = vmatpush1.bf16.msra.mxu0 %v545
  %565 = vmatprep.subr.bf16.mxu0 0
  %566 = vmatpush1.bf16.msra.mxu0 %v546
  %567 = vmatprep.subr.bf16.mxu0 0
  %568 = vmatpush1.bf16.msra.mxu0 %v547
  %569 = vmatprep.subr.bf16.mxu0 0
  %570 = vmatpush1.bf16.msra.mxu0 %v548
  %571 = vmatprep.subr.bf16.mxu0 0
  %572 = vmatpush1.bf16.msra.mxu0 %v549
  %573 = vmatprep.subr.bf16.mxu0 0
  %574 = vmatpush1.bf16.msra.mxu0 %v550
  %575 = vmatprep.subr.bf16.mxu0 0
  %576 = vmatpush1.bf16.msra.mxu0 0
  %577 = vmatprep.subr.bf16.mxu0 0
  %578 = vmatpush1.bf16.msra.mxu0 0
  %579 = vmatprep.subr.bf16.mxu0 0
  %580 = vmatpush1.bf16.msra.mxu0 0
  %581 = vmatprep.subr.bf16.mxu0 0
  %582 = vmatpush1.bf16.msra.mxu0 0
  %583 = vmatprep.subr.bf16.mxu0 0
  %584 = vmatpush1.bf16.msra.mxu0 0
  %585 = vmatprep.subr.bf16.mxu0 0
  %586 = vmatpush1.bf16.msra.mxu0 0
  %587 = vmatprep.subr.bf16.mxu0 0
  %588 = vmatpush1.bf16.msra.mxu0 0
  %589 = vmatprep.subr.bf16.mxu0 0
  %590 = vmatpush1.bf16.msra.mxu0 0
  %591 = vmatprep.mubr.bf16.mxu0 0
  %592 = vmatmul.mubr.bf16.gmra.mrb[0].mxu0 %v479
  %v593 = vpop.f32.mrb[0].mxu0
  %v594 = vadd.f32 0.0, %v593
  %v595 = vpop.f32.mrb[0].mxu0
  %v596 = vpop.f32.mrb[0].mxu0
  %v597 = vadd.f32 0.0, %v596
  %v598 = vpop.f32.mrb[0].mxu0
  %599 = vmatprep.mubr.bf16.mxu0 0
  %600 = vmatmul.mubr.bf16.gmra.mrb[0].mxu0 %v488
  %v601 = vpop.f32.mrb[0].mxu0
  %v602 = vadd.f32 0.0, %v601
  %v603 = vpop.f32.mrb[0].mxu0
  %v604 = vpop.f32.mrb[0].mxu0
  %v605 = vadd.f32 0.0, %v604
  %v606 = vpop.f32.mrb[0].mxu0
  %607 = vmatprep.mubr.bf16.mxu0 0
  %608 = vmatmul.mubr.bf16.gmra.mrb[0].mxu0 %v497
  %v609 = vpop.f32.mrb[0].mxu0
  %v610 = vadd.f32 0.0, %v609
  %v611 = vpop.f32.mrb[0].mxu0
  %v612 = vpop.f32.mrb[0].mxu0
  %v613 = vadd.f32 0.0, %v612
  %v614 = vpop.f32.mrb[0].mxu0
  %615 = vmatprep.mubr.bf16.mxu0 0
  %616 = vmatmul.mubr.bf16.gmra.mrb[0].mxu0 %v506
  %v617 = vpop.f32.mrb[0].mxu0
  %v618 = vadd.f32 0.0, %v617
  %v619 = vpop.f32.mrb[0].mxu0
  %v620 = vpop.f32.mrb[0].mxu0
  %v621 = vadd.f32 0.0, %v620
  %v622 = vpop.f32.mrb[0].mxu0
  %623 = vdwg.mxu0
  %v640 = vunpack.c.l.b16 %v402
  %v641 = vunpack.c.l.b16 %v403
  %v642 = vunpack.c.l.b16 %v404
  %v643 = vunpack.c.l.b16 %v405
  %v644 = vunpack.c.l.b16 %v406
  %v645 = vunpack.c.l.b16 %v407
  %v646 = vunpack.c.l.b16 %v408
  %v647 = vunpack.c.l.b16 %v409
  %v648 = vunpack.c.l.b16 %v410
  %v649 = vunpack.c.l.b16 %v411
  %v650 = vunpack.c.l.b16 %v412
  %v651 = vunpack.c.l.b16 %v413
  %v652 = vunpack.c.l.b16 %v414
  %v653 = vunpack.c.l.b16 %v415
  %v654 = vunpack.c.l.b16 %v416
  %v655 = vunpack.c.l.b16 %v417
  %v656 = vpack.c.b16 %v641, %v640
  %v657 = vpack.c.b16 %v643, %v642
  %v658 = vpack.c.b16 %v645, %v644
  %v659 = vpack.c.b16 %v647, %v646
  %v660 = vpack.c.b16 %v649, %v648
  %v661 = vpack.c.b16 %v651, %v650
  %v662 = vpack.c.b16 %v653, %v652
  %v663 = vpack.c.b16 %v655, %v654
  %672 = vmatprep.subr.bf16.mxu0 0
  %673 = vmatpush1.bf16.msra.mxu0 %v656
  %674 = vmatprep.subr.bf16.mxu0 0
  %675 = vmatpush1.bf16.msra.mxu0 %v657
  %676 = vmatprep.subr.bf16.mxu0 0
  %677 = vmatpush1.bf16.msra.mxu0 %v658
  %678 = vmatprep.subr.bf16.mxu0 0
  %679 = vmatpush1.bf16.msra.mxu0 %v659
  %680 = vmatprep.subr.bf16.mxu0 0
  %681 = vmatpush1.bf16.msra.mxu0 %v660
  %682 = vmatprep.subr.bf16.mxu0 0
  %683 = vmatpush1.bf16.msra.mxu0 %v661
  %684 = vmatprep.subr.bf16.mxu0 0
  %685 = vmatpush1.bf16.msra.mxu0 %v662
  %686 = vmatprep.subr.bf16.mxu0 0
  %687 = vmatpush1.bf16.msra.mxu0 %v663
  %688 = vmatprep.subr.bf16.mxu0 0
  %689 = vmatpush1.bf16.msra.mxu0 0
  %690 = vmatprep.subr.bf16.mxu0 0
  %691 = vmatpush1.bf16.msra.mxu0 0
  %692 = vmatprep.subr.bf16.mxu0 0
  %693 = vmatpush1.bf16.msra.mxu0 0
  %694 = vmatprep.subr.bf16.mxu0 0
  %695 = vmatpush1.bf16.msra.mxu0 0
  %696 = vmatprep.subr.bf16.mxu0 0
  %697 = vmatpush1.bf16.msra.mxu0 0
  %698 = vmatprep.subr.bf16.mxu0 0
  %699 = vmatpush1.bf16.msra.mxu0 0
  %700 = vmatprep.subr.bf16.mxu0 0
  %701 = vmatpush1.bf16.msra.mxu0 0
  %702 = vmatprep.subr.bf16.mxu0 0
  %703 = vmatpush1.bf16.msra.mxu0 0
  %704 = vmatprep.mubr.bf16.mxu0 0
  %705 = vmatmul.mubr.bf16.gmra.mrb[0].mxu0 %v398
  %v706 = vpop.f32.mrb[0].mxu0
  %v707 = vadd.f32 %v594, %v706
  %v708 = vpop.f32.mrb[0].mxu0
  %v709 = vpop.f32.mrb[0].mxu0
  %v710 = vadd.f32 %v597, %v709
  %v711 = vpop.f32.mrb[0].mxu0
  %712 = vmatprep.mubr.bf16.mxu0 0
  %713 = vmatmul.mubr.bf16.gmra.mrb[0].mxu0 %v399
  %v714 = vpop.f32.mrb[0].mxu0
  %v715 = vadd.f32 %v602, %v714
  %v716 = vpop.f32.mrb[0].mxu0
  %v717 = vpop.f32.mrb[0].mxu0
  %v718 = vadd.f32 %v605, %v717
  %v719 = vpop.f32.mrb[0].mxu0
  %720 = vmatprep.mubr.bf16.mxu0 0
  %721 = vmatmul.mubr.bf16.gmra.mrb[0].mxu0 %v400
  %v722 = vpop.f32.mrb[0].mxu0
  %v723 = vadd.f32 %v610, %v722
  %v724 = vpop.f32.mrb[0].mxu0
  %v725 = vpop.f32.mrb[0].mxu0
  %v726 = vadd.f32 %v613, %v725
  %v727 = vpop.f32.mrb[0].mxu0
  %728 = vmatprep.mubr.bf16.mxu0 0
  %729 = vmatmul.mubr.bf16.gmra.mrb[0].mxu0 %v401
  %v730 = vpop.f32.mrb[0].mxu0
  %v731 = vadd.f32 %v618, %v730
  %v732 = vpop.f32.mrb[0].mxu0
  %v733 = vpop.f32.mrb[0].mxu0
  %v734 = vadd.f32 %v621, %v733
  %v735 = vpop.f32.mrb[0].mxu0
  %736 = vdwg.mxu0
  %v738 = vlaneseq
  %v739 = vshrl.u32 %v738, 7
  %v740 = vsub.s32 0, %v739
  %v741 = vrot.slane %v331, %v740
  %v743 = vadd.f32 %v707, %v741
  %v744 = vadd.f32 %v710, %v741
  %v745 = vadd.f32 %v715, %v741
  %v746 = vadd.f32 %v718, %v741
  %v747 = vadd.f32 %v723, %v741
  %v748 = vadd.f32 %v726, %v741
  %v749 = vadd.f32 %v731, %v741
  %v750 = vadd.f32 %v734, %v741
  %v751 = vmax.f32 %v743, 0.0
  %v752 = vmax.f32 %v744, 0.0
  %v753 = vmax.f32 %v745, 0.0
  %v754 = vmax.f32 %v746, 0.0
  %v755 = vmax.f32 %v747, 0.0
  %v756 = vmax.f32 %v748, 0.0
  %v757 = vmax.f32 %v749, 0.0
  %v758 = vmax.f32 %v750, 0.0
  %v759 = vmul.f32 %v751, %v51
  %v760 = vmul.f32 %v752, %v52
  %v761 = vmul.f32 %v753, %v53
  %v762 = vmul.f32 %v754, %v54
  %v763 = vmul.f32 %v755, %v55
  %v764 = vmul.f32 %v756, %v56
  %v765 = vmul.f32 %v757, %v57
  %v766 = vmul.f32 %v758, %v58
  %v767 = vld [vmem:[%s8] sm:$0x1]
  %v768 = vpack.c.bf16 %v760, %v759
  %v769 = vpack.c.bf16 %v762, %v761
  %v770 = vpack.c.bf16 %v764, %v763
  %v771 = vpack.c.bf16 %v766, %v765
  %772 = vst [vmem:[#allocation2 + $0x8] sm:$0xff] %v768
  %773 = vst [vmem:[#allocation2 + $0x10] sm:$0xff] %v769
  %774 = vst [vmem:[#allocation2 + $0x18] sm:$0xff] %v770
  %775 = vst [vmem:[#allocation2 + $0x20] sm:$0xff] %v771
  %v776 = vld [vmem:[#allocation2] sm:$0x80]
  %v777 = vld [vmem:[#allocation2 + $0x8] sm:$0xff]
  %v778 = vld [vmem:[#allocation2 + $0x10] sm:$0xff]
  %v779 = vld [vmem:[#allocation2 + $0x18] sm:$0xff]
  %v780 = vld [vmem:[#allocation2 + $0x20] sm:$0xff]
  %vm781 = vcmp.lt.s32.totalorder %v48, 96
  %v782 = vld [vmem:[#allocation2] sm:$0xc0]
  %v783 = vld [vmem:[#allocation2 + $0x20] sm:$0x3f]
  %vm784 = vmpackc.low %vm781, %vm781
  %v785 = vsel %vm784, 65537, 0
  %v786 = vlaneseq
  %v787 = vshrl.u32 %v786, 7
  %v788 = vsub.s32 0, %v787
  %v789 = vrot.slane %v785, %v788
  %vm790 = vcmp.ne.s16.totalorder %v789, 0
  %vm791 = vsmask.f32 6400
  %v793 = vshrl.u32 %v776, 16
  %v795 = vrot.slane %v793, 1
  %v797 = vshrl.u32 %v777, 16
  %v799 = vrot.slane %v797, 1
  %v800 = vshll.u32 %v777, 16
  %v802 = vrot.slane %v800, 2
  %v803 = vor.u32 %v799, %v802
  %v804 = vsel %vm791, %v795, %v803
  %v806 = vshrl.u32 %v778, 16
  %v808 = vrot.slane %v806, 1
  %v809 = vshll.u32 %v778, 16
  %v811 = vrot.slane %v809, 2
  %v812 = vor.u32 %v808, %v811
  %v813 = vsel %vm791, %v803, %v812
  %v815 = vshrl.u32 %v779, 16
  %v817 = vrot.slane %v815, 1
  %v818 = vshll.u32 %v779, 16
  %v820 = vrot.slane %v818, 2
  %v821 = vor.u32 %v817, %v820
  %v822 = vsel %vm791, %v812, %v821
  %v824 = vshrl.u32 %v780, 16
  %v826 = vrot.slane %v824, 1
  %v827 = vshll.u32 %v780, 16
  %v829 = vrot.slane %v827, 2
  %v830 = vor.u32 %v826, %v829
  %v831 = vsel %vm791, %v821, %v830
  %v837 = vsel %vm790, %v782, %v804
  %v838 = vsel %vm790, %v777, %v813
  %v839 = vsel %vm790, %v778, %v822
  %v840 = vsel %vm790, %v779, %v831
  %v841 = vsel %vm790, %v783, %v830
  %v842 = vld [vmem:[#allocation2] sm:$0xe0]
  %v844 = vshrl.u32 %v837, 16
  %v846 = vshll.u32 %v837, 16
  %v848 = vrot.slane %v846, 1
  %v849 = vor.u32 %v844, %v848
  %v851 = vshll.u32 %v838, 16
  %v853 = vrot.slane %v851, 1
  %v854 = vsel %vm357, %v849, %v853
  %v855 = vshrl.u32 %v838, 16
  %v857 = vor.u32 %v855, %v853
  %v859 = vshll.u32 %v839, 16
  %v861 = vrot.slane %v859, 1
  %v862 = vsel %vm357, %v857, %v861
  %v863 = vshrl.u32 %v839, 16
  %v865 = vor.u32 %v863, %v861
  %v867 = vshll.u32 %v840, 16
  %v869 = vrot.slane %v867, 1
  %v870 = vsel %vm357, %v865, %v869
  %v871 = vshrl.u32 %v840, 16
  %v873 = vor.u32 %v871, %v869
  %v875 = vshll.u32 %v841, 16
  %v877 = vrot.slane %v875, 1
  %v878 = vsel %vm357, %v873, %v877
  %v879 = vshrl.u32 %v841, 16
  %v881 = vor.u32 %v879, %v877
  %v887 = vsel %vm356, %v842, %v854
  %v888 = vsel %vm356, %v777, %v862
  %v889 = vsel %vm356, %v778, %v870
  %v890 = vsel %vm356, %v779, %v878
  %v891 = vsel %vm356, %v783, %v881
  %vm892 = vcmp.lt.s32.totalorder %v48, 32
  %v893 = vld [vmem:[#allocation2 + $0x20] sm:$0x1f]
  %vm894 = vmpackc.low %vm892, %vm892
  %v895 = vsel %vm894, 65537, 0
  %v896 = vlaneseq
  %v897 = vshrl.u32 %v896, 7
  %v898 = vsub.s32 0, %v897
  %v899 = vrot.slane %v895, %v898
  %vm900 = vcmp.ne.s16.totalorder %v899, 0
  %v902 = vshrl.u32 %v887, 16
  %v904 = vshll.u32 %v887, 16
  %v906 = vrot.slane %v904, 1
  %v907 = vor.u32 %v902, %v906
  %v909 = vshll.u32 %v888, 16
  %v911 = vrot.slane %v909, 1
  %v912 = vsel %vm357, %v907, %v911
  %v913 = vshrl.u32 %v888, 16
  %v915 = vor.u32 %v913, %v911
  %v917 = vshll.u32 %v889, 16
  %v919 = vrot.slane %v917, 1
  %v920 = vsel %vm357, %v915, %v919
  %v921 = vshrl.u32 %v889, 16
  %v923 = vor.u32 %v921, %v919
  %v925 = vshll.u32 %v890, 16
  %v927 = vrot.slane %v925, 1
  %v928 = vsel %vm357, %v923, %v927
  %v929 = vshrl.u32 %v890, 16
  %v931 = vor.u32 %v929, %v927
  %v933 = vshll.u32 %v891, 16
  %v935 = vrot.slane %v933, 1
  %v936 = vsel %vm357, %v931, %v935
  %v937 = vshrl.u32 %v891, 16
  %v939 = vor.u32 %v937, %v935
  %v945 = vsel %vm900, %v842, %v912
  %v946 = vsel %vm900, %v777, %v920
  %v947 = vsel %vm900, %v778, %v928
  %v948 = vsel %vm900, %v779, %v936
  %v949 = vsel %vm900, %v893, %v939
  %v950 = vld [vmem:[%s7] sm:$0xf]
  %v951 = vld [vmem:[%s7 + $0x4] sm:$0xf]
  %v952 = vld [vmem:[%s7 + $0x8] sm:$0xf]
  %v953 = vld [vmem:[%s7 + $0xc] sm:$0xf]
  %v954 = vld [vmem:[%s7 + $0x10] sm:$0xf]
  %v955 = vld [vmem:[%s7 + $0x14] sm:$0xf]
  %v956 = vld [vmem:[%s7 + $0x18] sm:$0xf]
  %v957 = vld [vmem:[%s7 + $0x1c] sm:$0xf]
  %v958 = vld [vmem:[%s7 + $0x20] sm:$0xf]
  %v959 = vld [vmem:[%s7 + $0x24] sm:$0xf]
  %v960 = vld [vmem:[%s7 + $0x28] sm:$0xf]
  %v961 = vld [vmem:[%s7 + $0x2c] sm:$0xf]
  %v962 = vld [vmem:[%s7 + $0x30] sm:$0xf]
  %v963 = vld [vmem:[%s7 + $0x34] sm:$0xf]
  %v964 = vld [vmem:[%s7 + $0x38] sm:$0xf]
  %v965 = vld [vmem:[%s7 + $0x3c] sm:$0xf]
  %v966 = vld [vmem:[#allocation2 + $0x8] sm:$0xfc]
  %v967 = vld [vmem:[#allocation2 + $0x10] sm:$0xff]
  %v968 = vld [vmem:[#allocation2 + $0x18] sm:$0xff]
  %v969 = vld [vmem:[#allocation2 + $0x20] sm:$0xff]
  %v970 = vld [vmem:[#allocation2 + $0x28] sm:$0x7]
  %v971 = vld [vmem:[#allocation2 + $0x28] sm:$0x3]
  %v973 = vshrl.u32 %v966, 16
  %v975 = vshll.u32 %v966, 16
  %v977 = vrot.slane %v975, 1
  %v978 = vor.u32 %v973, %v977
  %v980 = vshll.u32 %v967, 16
  %v982 = vrot.slane %v980, 1
  %v983 = vsel %vm357, %v978, %v982
  %v984 = vshrl.u32 %v967, 16
  %v986 = vor.u32 %v984, %v982
  %v988 = vshll.u32 %v968, 16
  %v990 = vrot.slane %v988, 1
  %v991 = vsel %vm357, %v986, %v990
  %v992 = vshrl.u32 %v968, 16
  %v994 = vor.u32 %v992, %v990
  %v996 = vshll.u32 %v969, 16
  %v998 = vrot.slane %v996, 1
  %v999 = vsel %vm357, %v994, %v998
  %v1000 = vshrl.u32 %v969, 16
  %v1002 = vor.u32 %v1000, %v998
  %v1004 = vshll.u32 %v970, 16
  %v1006 = vrot.slane %v1004, 1
  %v1007 = vsel %vm357, %v1002, %v1006
  %v1008 = vshrl.u32 %v970, 16
  %v1010 = vor.u32 %v1008, %v1006
  %v1016 = vsel %vm790, %v966, %v983
  %v1017 = vsel %vm790, %v967, %v991
  %v1018 = vsel %vm790, %v968, %v999
  %v1019 = vsel %vm790, %v969, %v1007
  %v1020 = vsel %vm790, %v971, %v1010
  %v1021 = vld [vmem:[#allocation2 + $0x8] sm:$0xff]
  %v1022 = vld [vmem:[#allocation2 + $0x28] sm:$0x1]
  %v1024 = vshrl.u32 %v1016, 16
  %v1026 = vrot.slane %v1024, 1
  %v1027 = vshll.u32 %v1016, 16
  %v1029 = vrot.slane %v1027, 2
  %v1030 = vor.u32 %v1026, %v1029
  %v1032 = vshrl.u32 %v1017, 16
  %v1034 = vrot.slane %v1032, 1
  %v1035 = vshll.u32 %v1017, 16
  %v1037 = vrot.slane %v1035, 2
  %v1038 = vor.u32 %v1034, %v1037
  %v1039 = vsel %vm791, %v1030, %v1038
  %v1041 = vshrl.u32 %v1018, 16
  %v1043 = vrot.slane %v1041, 1
  %v1044 = vshll.u32 %v1018, 16
  %v1046 = vrot.slane %v1044, 2
  %v1047 = vor.u32 %v1043, %v1046
  %v1048 = vsel %vm791, %v1038, %v1047
  %v1050 = vshrl.u32 %v1019, 16
  %v1052 = vrot.slane %v1050, 1
  %v1053 = vshll.u32 %v1019, 16
  %v1055 = vrot.slane %v1053, 2
  %v1056 = vor.u32 %v1052, %v1055
  %v1057 = vsel %vm791, %v1047, %v1056
  %v1059 = vshrl.u32 %v1020, 16
  %v1061 = vrot.slane %v1059, 1
  %v1062 = vshll.u32 %v1020, 16
  %v1064 = vrot.slane %v1062, 2
  %v1065 = vor.u32 %v1061, %v1064
  %v1066 = vsel %vm791, %v1056, %v1065
  %v1072 = vsel %vm356, %v1021, %v1039
  %v1073 = vsel %vm356, %v967, %v1048
  %v1074 = vsel %vm356, %v968, %v1057
  %v1075 = vsel %vm356, %v969, %v1066
  %v1076 = vsel %vm356, %v1022, %v1061
  %v1078 = vshrl.u32 %v1072, 16
  %v1080 = vshll.u32 %v1072, 16
  %v1082 = vrot.slane %v1080, 1
  %v1083 = vor.u32 %v1078, %v1082
  %v1085 = vshll.u32 %v1073, 16
  %v1087 = vrot.slane %v1085, 1
  %v1088 = vsel %vm357, %v1083, %v1087
  %v1089 = vshrl.u32 %v1073, 16
  %v1091 = vor.u32 %v1089, %v1087
  %v1093 = vshll.u32 %v1074, 16
  %v1095 = vrot.slane %v1093, 1
  %v1096 = vsel %vm357, %v1091, %v1095
  %v1097 = vshrl.u32 %v1074, 16
  %v1099 = vor.u32 %v1097, %v1095
  %v1101 = vshll.u32 %v1075, 16
  %v1103 = vrot.slane %v1101, 1
  %v1104 = vsel %vm357, %v1099, %v1103
  %v1105 = vshrl.u32 %v1075, 16
  %v1107 = vor.u32 %v1105, %v1103
  %v1109 = vshll.u32 %v1076, 16
  %v1111 = vrot.slane %v1109, 1
  %v1112 = vsel %vm357, %v1107, %v1111
  %v1117 = vsel %vm900, %v777, %v1088
  %v1118 = vsel %vm900, %v778, %v1096
  %v1119 = vsel %vm900, %v779, %v1104
  %v1120 = vsel %vm900, %v780, %v1112
  %s1121 = scalar_lea.vmem %s7, 64
  %v1122 = vld [vmem:[%s1121] sm:$0xf]
  %v1123 = vld [vmem:[%s1121 + $0x4] sm:$0xf]
  %v1124 = vld [vmem:[%s1121 + $0x8] sm:$0xf]
  %v1125 = vld [vmem:[%s1121 + $0xc] sm:$0xf]
  %v1126 = vld [vmem:[%s1121 + $0x10] sm:$0xf]
  %v1127 = vld [vmem:[%s1121 + $0x14] sm:$0xf]
  %v1128 = vld [vmem:[%s1121 + $0x18] sm:$0xf]
  %v1129 = vld [vmem:[%s1121 + $0x1c] sm:$0xf]
  %v1130 = vld [vmem:[%s1121 + $0x20] sm:$0xf]
  %v1131 = vld [vmem:[%s1121 + $0x24] sm:$0xf]
  %v1132 = vld [vmem:[%s1121 + $0x28] sm:$0xf]
  %v1133 = vld [vmem:[%s1121 + $0x2c] sm:$0xf]
  %v1134 = vld [vmem:[%s1121 + $0x30] sm:$0xf]
  %v1135 = vld [vmem:[%s1121 + $0x34] sm:$0xf]
  %v1136 = vld [vmem:[%s1121 + $0x38] sm:$0xf]
  %v1137 = vld [vmem:[%s1121 + $0x3c] sm:$0xf]
  %v1154 = vunpack.c.l.b16 %v1122
  %v1155 = vunpack.c.l.b16 %v1123
  %v1156 = vunpack.c.l.b16 %v1124
  %v1157 = vunpack.c.l.b16 %v1125
  %v1158 = vunpack.c.l.b16 %v1126
  %v1159 = vunpack.c.l.b16 %v1127
  %v1160 = vunpack.c.l.b16 %v1128
  %v1161 = vunpack.c.l.b16 %v1129
  %v1162 = vunpack.c.l.b16 %v1130
  %v1163 = vunpack.c.l.b16 %v1131
  %v1164 = vunpack.c.l.b16 %v1132
  %v1165 = vunpack.c.l.b16 %v1133
  %v1166 = vunpack.c.l.b16 %v1134
  %v1167 = vunpack.c.l.b16 %v1135
  %v1168 = vunpack.c.l.b16 %v1136
  %v1169 = vunpack.c.l.b16 %v1137
  %v1170 = vpack.c.b16 %v1155, %v1154
  %v1171 = vpack.c.b16 %v1157, %v1156
  %v1172 = vpack.c.b16 %v1159, %v1158
  %v1173 = vpack.c.b16 %v1161, %v1160
  %v1174 = vpack.c.b16 %v1163, %v1162
  %v1175 = vpack.c.b16 %v1165, %v1164
  %v1176 = vpack.c.b16 %v1167, %v1166
  %v1177 = vpack.c.b16 %v1169, %v1168
  %1186 = vmatprep.subr.bf16.mxu0 0
  %1187 = vmatpush1.bf16.msra.mxu0 %v1170
  %1188 = vmatprep.subr.bf16.mxu0 0
  %1189 = vmatpush1.bf16.msra.mxu0 %v1171
  %1190 = vmatprep.subr.bf16.mxu0 0
  %1191 = vmatpush1.bf16.msra.mxu0 %v1172
  %1192 = vmatprep.subr.bf16.mxu0 0
  %1193 = vmatpush1.bf16.msra.mxu0 %v1173
  %1194 = vmatprep.subr.bf16.mxu0 0
  %1195 = vmatpush1.bf16.msra.mxu0 %v1174
  %1196 = vmatprep.subr.bf16.mxu0 0
  %1197 = vmatpush1.bf16.msra.mxu0 %v1175
  %1198 = vmatprep.subr.bf16.mxu0 0
  %1199 = vmatpush1.bf16.msra.mxu0 %v1176
  %1200 = vmatprep.subr.bf16.mxu0 0
  %1201 = vmatpush1.bf16.msra.mxu0 %v1177
  %1202 = vmatprep.subr.bf16.mxu0 0
  %1203 = vmatpush1.bf16.msra.mxu0 0
  %1204 = vmatprep.subr.bf16.mxu0 0
  %1205 = vmatpush1.bf16.msra.mxu0 0
  %1206 = vmatprep.subr.bf16.mxu0 0
  %1207 = vmatpush1.bf16.msra.mxu0 0
  %1208 = vmatprep.subr.bf16.mxu0 0
  %1209 = vmatpush1.bf16.msra.mxu0 0
  %1210 = vmatprep.subr.bf16.mxu0 0
  %1211 = vmatpush1.bf16.msra.mxu0 0
  %1212 = vmatprep.subr.bf16.mxu0 0
  %1213 = vmatpush1.bf16.msra.mxu0 0
  %1214 = vmatprep.subr.bf16.mxu0 0
  %1215 = vmatpush1.bf16.msra.mxu0 0
  %1216 = vmatprep.subr.bf16.mxu0 0
  %1217 = vmatpush1.bf16.msra.mxu0 0
  %1218 = vmatprep.mubr.bf16.mxu0 0
  %1219 = vmatmul.mubr.bf16.gmra.mrb[0].mxu0 %v1117
  %v1220 = vpop.f32.mrb[0].mxu0
  %v1221 = vadd.f32 0.0, %v1220
  %v1222 = vpop.f32.mrb[0].mxu0
  %v1223 = vpop.f32.mrb[0].mxu0
  %v1224 = vadd.f32 0.0, %v1223
  %v1225 = vpop.f32.mrb[0].mxu0
  %1226 = vmatprep.mubr.bf16.mxu0 0
  %1227 = vmatmul.mubr.bf16.gmra.mrb[0].mxu0 %v1118
  %v1228 = vpop.f32.mrb[0].mxu0
  %v1229 = vadd.f32 0.0, %v1228
  %v1230 = vpop.f32.mrb[0].mxu0
  %v1231 = vpop.f32.mrb[0].mxu0
  %v1232 = vadd.f32 0.0, %v1231
  %v1233 = vpop.f32.mrb[0].mxu0
  %1234 = vmatprep.mubr.bf16.mxu0 0
  %1235 = vmatmul.mubr.bf16.gmra.mrb[0].mxu0 %v1119
  %v1236 = vpop.f32.mrb[0].mxu0
  %v1237 = vadd.f32 0.0, %v1236
  %v1238 = vpop.f32.mrb[0].mxu0
  %v1239 = vpop.f32.mrb[0].mxu0
  %v1240 = vadd.f32 0.0, %v1239
  %v1241 = vpop.f32.mrb[0].mxu0
  %1242 = vmatprep.mubr.bf16.mxu0 0
  %1243 = vmatmul.mubr.bf16.gmra.mrb[0].mxu0 %v1120
  %v1244 = vpop.f32.mrb[0].mxu0
  %v1245 = vadd.f32 0.0, %v1244
  %v1246 = vpop.f32.mrb[0].mxu0
  %v1247 = vpop.f32.mrb[0].mxu0
  %v1248 = vadd.f32 0.0, %v1247
  %v1249 = vpop.f32.mrb[0].mxu0
  %1250 = vdwg.mxu0
  %vm1256 = vcmask 1042432
  %v1257 = vrot.slane %v945, 5
  %v1258 = vrot.slane %v946, 5
  %v1259 = vsel %vm1256, %v1257, %v1258
  %v1260 = vrot.slane %v947, 5
  %v1261 = vsel %vm1256, %v1258, %v1260
  %v1262 = vrot.slane %v948, 5
  %v1263 = vsel %vm1256, %v1260, %v1262
  %v1264 = vrot.slane %v949, 5
  %v1265 = vsel %vm1256, %v1262, %v1264
  %v1286 = vunpack.c.l.b16 %v950
  %v1287 = vunpack.c.l.b16 %v951
  %v1288 = vunpack.c.l.b16 %v952
  %v1289 = vunpack.c.l.b16 %v953
  %v1290 = vunpack.c.l.b16 %v954
  %v1291 = vunpack.c.l.b16 %v955
  %v1292 = vunpack.c.l.b16 %v956
  %v1293 = vunpack.c.l.b16 %v957
  %v1294 = vunpack.c.l.b16 %v958
  %v1295 = vunpack.c.l.b16 %v959
  %v1296 = vunpack.c.l.b16 %v960
  %v1297 = vunpack.c.l.b16 %v961
  %v1298 = vunpack.c.l.b16 %v962
  %v1299 = vunpack.c.l.b16 %v963
  %v1300 = vunpack.c.l.b16 %v964
  %v1301 = vunpack.c.l.b16 %v965
  %v1302 = vpack.c.b16 %v1287, %v1286
  %v1303 = vpack.c.b16 %v1289, %v1288
  %v1304 = vpack.c.b16 %v1291, %v1290
  %v1305 = vpack.c.b16 %v1293, %v1292
  %v1306 = vpack.c.b16 %v1295, %v1294
  %v1307 = vpack.c.b16 %v1297, %v1296
  %v1308 = vpack.c.b16 %v1299, %v1298
  %v1309 = vpack.c.b16 %v1301, %v1300
  %1318 = vmatprep.subr.bf16.mxu0 0
  %1319 = vmatpush1.bf16.msra.mxu0 %v1302
  %1320 = vmatprep.subr.bf16.mxu0 0
  %1321 = vmatpush1.bf16.msra.mxu0 %v1303
  %1322 = vmatprep.subr.bf16.mxu0 0
  %1323 = vmatpush1.bf16.msra.mxu0 %v1304
  %1324 = vmatprep.subr.bf16.mxu0 0
  %1325 = vmatpush1.bf16.msra.mxu0 %v1305
  %1326 = vmatprep.subr.bf16.mxu0 0
  %1327 = vmatpush1.bf16.msra.mxu0 %v1306
  %1328 = vmatprep.subr.bf16.mxu0 0
  %1329 = vmatpush1.bf16.msra.mxu0 %v1307
  %1330 = vmatprep.subr.bf16.mxu0 0
  %1331 = vmatpush1.bf16.msra.mxu0 %v1308
  %1332 = vmatprep.subr.bf16.mxu0 0
  %1333 = vmatpush1.bf16.msra.mxu0 %v1309
  %1334 = vmatprep.subr.bf16.mxu0 0
  %1335 = vmatpush1.bf16.msra.mxu0 0
  %1336 = vmatprep.subr.bf16.mxu0 0
  %1337 = vmatpush1.bf16.msra.mxu0 0
  %1338 = vmatprep.subr.bf16.mxu0 0
  %1339 = vmatpush1.bf16.msra.mxu0 0
  %1340 = vmatprep.subr.bf16.mxu0 0
  %1341 = vmatpush1.bf16.msra.mxu0 0
  %1342 = vmatprep.subr.bf16.mxu0 0
  %1343 = vmatpush1.bf16.msra.mxu0 0
  %1344 = vmatprep.subr.bf16.mxu0 0
  %1345 = vmatpush1.bf16.msra.mxu0 0
  %1346 = vmatprep.subr.bf16.mxu0 0
  %1347 = vmatpush1.bf16.msra.mxu0 0
  %1348 = vmatprep.subr.bf16.mxu0 0
  %1349 = vmatpush1.bf16.msra.mxu0 0
  %1350 = vmatprep.mubr.bf16.mxu0 0
  %1351 = vmatmul.mubr.bf16.gmra.mrb[0].mxu0 %v1259
  %v1352 = vpop.f32.mrb[0].mxu0
  %v1353 = vadd.f32 %v1221, %v1352
  %v1354 = vpop.f32.mrb[0].mxu0
  %v1355 = vpop.f32.mrb[0].mxu0
  %v1356 = vadd.f32 %v1224, %v1355
  %v1357 = vpop.f32.mrb[0].mxu0
  %1358 = vmatprep.mubr.bf16.mxu0 0
  %1359 = vmatmul.mubr.bf16.gmra.mrb[0].mxu0 %v1261
  %v1360 = vpop.f32.mrb[0].mxu0
  %v1361 = vadd.f32 %v1229, %v1360
  %v1362 = vpop.f32.mrb[0].mxu0
  %v1363 = vpop.f32.mrb[0].mxu0
  %v1364 = vadd.f32 %v1232, %v1363
  %v1365 = vpop.f32.mrb[0].mxu0
  %1366 = vmatprep.mubr.bf16.mxu0 0
  %1367 = vmatmul.mubr.bf16.gmra.mrb[0].mxu0 %v1263
  %v1368 = vpop.f32.mrb[0].mxu0
  %v1369 = vadd.f32 %v1237, %v1368
  %v1370 = vpop.f32.mrb[0].mxu0
  %v1371 = vpop.f32.mrb[0].mxu0
  %v1372 = vadd.f32 %v1240, %v1371
  %v1373 = vpop.f32.mrb[0].mxu0
  %1374 = vmatprep.mubr.bf16.mxu0 0
  %1375 = vmatmul.mubr.bf16.gmra.mrb[0].mxu0 %v1265
  %v1376 = vpop.f32.mrb[0].mxu0
  %v1377 = vadd.f32 %v1245, %v1376
  %v1378 = vpop.f32.mrb[0].mxu0
  %v1379 = vpop.f32.mrb[0].mxu0
  %v1380 = vadd.f32 %v1248, %v1379
  %v1381 = vpop.f32.mrb[0].mxu0
  %1382 = vdwg.mxu0
  %v1383 = vld [vmem:[#allocation2 + $0x8] sm:$0xf8]
  %s1384 = scalar_lea.vmem %s7, 128
  %v1385 = vld [vmem:[%s1384] sm:$0xf]
  %v1386 = vld [vmem:[%s1384 + $0x4] sm:$0xf]
  %v1387 = vld [vmem:[%s1384 + $0x8] sm:$0xf]
  %v1388 = vld [vmem:[%s1384 + $0xc] sm:$0xf]
  %v1389 = vld [vmem:[%s1384 + $0x10] sm:$0xf]
  %v1390 = vld [vmem:[%s1384 + $0x14] sm:$0xf]
  %v1391 = vld [vmem:[%s1384 + $0x18] sm:$0xf]
  %v1392 = vld [vmem:[%s1384 + $0x1c] sm:$0xf]
  %v1393 = vld [vmem:[%s1384 + $0x20] sm:$0xf]
  %v1394 = vld [vmem:[%s1384 + $0x24] sm:$0xf]
  %v1395 = vld [vmem:[%s1384 + $0x28] sm:$0xf]
  %v1396 = vld [vmem:[%s1384 + $0x2c] sm:$0xf]
  %v1397 = vld [vmem:[%s1384 + $0x30] sm:$0xf]
  %v1398 = vld [vmem:[%s1384 + $0x34] sm:$0xf]
  %v1399 = vld [vmem:[%s1384 + $0x38] sm:$0xf]
  %v1400 = vld [vmem:[%s1384 + $0x3c] sm:$0xf]
  %vm1406 = vcmask 1044480
  %v1407 = vrot.slane %v1383, 3
  %v1408 = vrot.slane %v967, 3
  %v1409 = vsel %vm1406, %v1407, %v1408
  %v1410 = vrot.slane %v968, 3
  %v1411 = vsel %vm1406, %v1408, %v1410
  %v1412 = vrot.slane %v969, 3
  %v1413 = vsel %vm1406, %v1410, %v1412
  %v1414 = vrot.slane %v970, 3
  %v1415 = vsel %vm1406, %v1412, %v1414
  %v1436 = vunpack.c.l.b16 %v1385
  %v1437 = vunpack.c.l.b16 %v1386
  %v1438 = vunpack.c.l.b16 %v1387
  %v1439 = vunpack.c.l.b16 %v1388
  %v1440 = vunpack.c.l.b16 %v1389
  %v1441 = vunpack.c.l.b16 %v1390
  %v1442 = vunpack.c.l.b16 %v1391
  %v1443 = vunpack.c.l.b16 %v1392
  %v1444 = vunpack.c.l.b16 %v1393
  %v1445 = vunpack.c.l.b16 %v1394
  %v1446 = vunpack.c.l.b16 %v1395
  %v1447 = vunpack.c.l.b16 %v1396
  %v1448 = vunpack.c.l.b16 %v1397
  %v1449 = vunpack.c.l.b16 %v1398
  %v1450 = vunpack.c.l.b16 %v1399
  %v1451 = vunpack.c.l.b16 %v1400
  %v1452 = vpack.c.b16 %v1437, %v1436
  %v1453 = vpack.c.b16 %v1439, %v1438
  %v1454 = vpack.c.b16 %v1441, %v1440
  %v1455 = vpack.c.b16 %v1443, %v1442
  %v1456 = vpack.c.b16 %v1445, %v1444
  %v1457 = vpack.c.b16 %v1447, %v1446
  %v1458 = vpack.c.b16 %v1449, %v1448
  %v1459 = vpack.c.b16 %v1451, %v1450
  %1468 = vmatprep.subr.bf16.mxu0 0
  %1469 = vmatpush1.bf16.msra.mxu0 %v1452
  %1470 = vmatprep.subr.bf16.mxu0 0
  %1471 = vmatpush1.bf16.msra.mxu0 %v1453
  %1472 = vmatprep.subr.bf16.mxu0 0
  %1473 = vmatpush1.bf16.msra.mxu0 %v1454
  %1474 = vmatprep.subr.bf16.mxu0 0
  %1475 = vmatpush1.bf16.msra.mxu0 %v1455
  %1476 = vmatprep.subr.bf16.mxu0 0
  %1477 = vmatpush1.bf16.msra.mxu0 %v1456
  %1478 = vmatprep.subr.bf16.mxu0 0
  %1479 = vmatpush1.bf16.msra.mxu0 %v1457
  %1480 = vmatprep.subr.bf16.mxu0 0
  %1481 = vmatpush1.bf16.msra.mxu0 %v1458
  %1482 = vmatprep.subr.bf16.mxu0 0
  %1483 = vmatpush1.bf16.msra.mxu0 %v1459
  %1484 = vmatprep.subr.bf16.mxu0 0
  %1485 = vmatpush1.bf16.msra.mxu0 0
  %1486 = vmatprep.subr.bf16.mxu0 0
  %1487 = vmatpush1.bf16.msra.mxu0 0
  %1488 = vmatprep.subr.bf16.mxu0 0
  %1489 = vmatpush1.bf16.msra.mxu0 0
  %1490 = vmatprep.subr.bf16.mxu0 0
  %1491 = vmatpush1.bf16.msra.mxu0 0
  %1492 = vmatprep.subr.bf16.mxu0 0
  %1493 = vmatpush1.bf16.msra.mxu0 0
  %1494 = vmatprep.subr.bf16.mxu0 0
  %1495 = vmatpush1.bf16.msra.mxu0 0
  %1496 = vmatprep.subr.bf16.mxu0 0
  %1497 = vmatpush1.bf16.msra.mxu0 0
  %1498 = vmatprep.subr.bf16.mxu0 0
  %1499 = vmatpush1.bf16.msra.mxu0 0
  %1500 = vmatprep.mubr.bf16.mxu0 0
  %1501 = vmatmul.mubr.bf16.gmra.mrb[0].mxu0 %v1409
  %v1502 = vpop.f32.mrb[0].mxu0
  %v1503 = vadd.f32 0.0, %v1502
  %v1504 = vpop.f32.mrb[0].mxu0
  %v1505 = vpop.f32.mrb[0].mxu0
  %v1506 = vadd.f32 0.0, %v1505
  %v1507 = vpop.f32.mrb[0].mxu0
  %1508 = vmatprep.mubr.bf16.mxu0 0
  %1509 = vmatmul.mubr.bf16.gmra.mrb[0].mxu0 %v1411
  %v1510 = vpop.f32.mrb[0].mxu0
  %v1511 = vadd.f32 0.0, %v1510
  %v1512 = vpop.f32.mrb[0].mxu0
  %v1513 = vpop.f32.mrb[0].mxu0
  %v1514 = vadd.f32 0.0, %v1513
  %v1515 = vpop.f32.mrb[0].mxu0
  %1516 = vmatprep.mubr.bf16.mxu0 0
  %1517 = vmatmul.mubr.bf16.gmra.mrb[0].mxu0 %v1413
  %v1518 = vpop.f32.mrb[0].mxu0
  %v1519 = vadd.f32 0.0, %v1518
  %v1520 = vpop.f32.mrb[0].mxu0
  %v1521 = vpop.f32.mrb[0].mxu0
  %v1522 = vadd.f32 0.0, %v1521
  %v1523 = vpop.f32.mrb[0].mxu0
  %1524 = vmatprep.mubr.bf16.mxu0 0
  %1525 = vmatmul.mubr.bf16.gmra.mrb[0].mxu0 %v1415
  %v1526 = vpop.f32.mrb[0].mxu0
  %v1527 = vadd.f32 0.0, %v1526
  %v1528 = vpop.f32.mrb[0].mxu0
  %v1529 = vpop.f32.mrb[0].mxu0
  %v1530 = vadd.f32 0.0, %v1529
  %v1531 = vpop.f32.mrb[0].mxu0
  %1532 = vdwg.mxu0
  %v1533 = vadd.f32 %v1353, %v1503
  %v1534 = vadd.f32 %v1356, %v1506
  %v1535 = vadd.f32 %v1361, %v1511
  %v1536 = vadd.f32 %v1364, %v1514
  %v1537 = vadd.f32 %v1369, %v1519
  %v1538 = vadd.f32 %v1372, %v1522
  %v1539 = vadd.f32 %v1377, %v1527
  %v1540 = vadd.f32 %v1380, %v1530
  %v1542 = vlaneseq
  %v1543 = vshrl.u32 %v1542, 7
  %v1544 = vsub.s32 0, %v1543
  %v1545 = vrot.slane %v767, %v1544
  %v1547 = vadd.f32 %v1533, %v1545
  %v1548 = vadd.f32 %v1534, %v1545
  %v1549 = vadd.f32 %v1535, %v1545
  %v1550 = vadd.f32 %v1536, %v1545
  %v1551 = vadd.f32 %v1537, %v1545
  %v1552 = vadd.f32 %v1538, %v1545
  %v1553 = vadd.f32 %v1539, %v1545
  %v1554 = vadd.f32 %v1540, %v1545
  %v1555 = vmax.f32 %v1547, 0.0
  %v1556 = vmax.f32 %v1548, 0.0
  %v1557 = vmax.f32 %v1549, 0.0
  %v1558 = vmax.f32 %v1550, 0.0
  %v1559 = vmax.f32 %v1551, 0.0
  %v1560 = vmax.f32 %v1552, 0.0
  %v1561 = vmax.f32 %v1553, 0.0
  %v1562 = vmax.f32 %v1554, 0.0
  %v1563 = vmul.f32 %v1555, %v51
  %v1564 = vmul.f32 %v1556, %v52
  %v1565 = vmul.f32 %v1557, %v53
  %v1566 = vmul.f32 %v1558, %v54
  %v1567 = vmul.f32 %v1559, %v55
  %v1568 = vmul.f32 %v1560, %v56
  %v1569 = vmul.f32 %v1561, %v57
  %v1570 = vmul.f32 %v1562, %v58
  %v1571 = vmax.f32 %v1563, 0.0
  %v1572 = vmax.f32 %v1564, 0.0
  %v1573 = vmax.f32 %v1565, 0.0
  %v1574 = vmax.f32 %v1566, 0.0
  %v1575 = vmax.f32 %v1567, 0.0
  %v1576 = vmax.f32 %v1568, 0.0
  %v1577 = vmax.f32 %v1569, 0.0
  %v1578 = vmax.f32 %v1570, 0.0
  %v1579 = vld [vmem:[%s10] sm:$0x1]
  %v1580 = vpack.c.bf16 %v1572, %v1571
  %v1581 = vpack.c.bf16 %v1574, %v1573
  %v1582 = vpack.c.bf16 %v1576, %v1575
  %v1583 = vpack.c.bf16 %v1578, %v1577
  %1584 = vst [vmem:[#allocation2 + $0x8] sm:$0xff] %v1580
  %1585 = vst [vmem:[#allocation2 + $0x10] sm:$0xff] %v1581
  %1586 = vst [vmem:[#allocation2 + $0x18] sm:$0xff] %v1582
  %1587 = vst [vmem:[#allocation2 + $0x20] sm:$0xff] %v1583
  %v1588 = vld [vmem:[#allocation2] sm:$0x80]
  %v1589 = vld [vmem:[#allocation2 + $0x8] sm:$0xff]
  %v1590 = vld [vmem:[#allocation2 + $0x10] sm:$0xff]
  %v1591 = vld [vmem:[#allocation2 + $0x18] sm:$0xff]
  %v1592 = vld [vmem:[#allocation2 + $0x20] sm:$0xff]
  %v1593 = vld [vmem:[#allocation2] sm:$0xc0]
  %v1594 = vld [vmem:[#allocation2 + $0x20] sm:$0x3f]
  %v1596 = vshrl.u32 %v1588, 16
  %v1598 = vrot.slane %v1596, 1
  %v1600 = vshrl.u32 %v1589, 16
  %v1602 = vrot.slane %v1600, 1
  %v1603 = vshll.u32 %v1589, 16
  %v1605 = vrot.slane %v1603, 2
  %v1606 = vor.u32 %v1602, %v1605
  %v1607 = vsel %vm791, %v1598, %v1606
  %v1609 = vshrl.u32 %v1590, 16
  %v1611 = vrot.slane %v1609, 1
  %v1612 = vshll.u32 %v1590, 16
  %v1614 = vrot.slane %v1612, 2
  %v1615 = vor.u32 %v1611, %v1614
  %v1616 = vsel %vm791, %v1606, %v1615
  %v1618 = vshrl.u32 %v1591, 16
  %v1620 = vrot.slane %v1618, 1
  %v1621 = vshll.u32 %v1591, 16
  %v1623 = vrot.slane %v1621, 2
  %v1624 = vor.u32 %v1620, %v1623
  %v1625 = vsel %vm791, %v1615, %v1624
  %v1627 = vshrl.u32 %v1592, 16
  %v1629 = vrot.slane %v1627, 1
  %v1630 = vshll.u32 %v1592, 16
  %v1632 = vrot.slane %v1630, 2
  %v1633 = vor.u32 %v1629, %v1632
  %v1634 = vsel %vm791, %v1624, %v1633
  %v1640 = vsel %vm790, %v1593, %v1607
  %v1641 = vsel %vm790, %v1589, %v1616
  %v1642 = vsel %vm790, %v1590, %v1625
  %v1643 = vsel %vm790, %v1591, %v1634
  %v1644 = vsel %vm790, %v1594, %v1633
  %v1645 = vld [vmem:[#allocation2] sm:$0xe0]
  %v1647 = vshrl.u32 %v1640, 16
  %v1649 = vshll.u32 %v1640, 16
  %v1651 = vrot.slane %v1649, 1
  %v1652 = vor.u32 %v1647, %v1651
  %v1654 = vshll.u32 %v1641, 16
  %v1656 = vrot.slane %v1654, 1
  %v1657 = vsel %vm357, %v1652, %v1656
  %v1658 = vshrl.u32 %v1641, 16
  %v1660 = vor.u32 %v1658, %v1656
  %v1662 = vshll.u32 %v1642, 16
  %v1664 = vrot.slane %v1662, 1
  %v1665 = vsel %vm357, %v1660, %v1664
  %v1666 = vshrl.u32 %v1642, 16
  %v1668 = vor.u32 %v1666, %v1664
  %v1670 = vshll.u32 %v1643, 16
  %v1672 = vrot.slane %v1670, 1
  %v1673 = vsel %vm357, %v1668, %v1672
  %v1674 = vshrl.u32 %v1643, 16
  %v1676 = vor.u32 %v1674, %v1672
  %v1678 = vshll.u32 %v1644, 16
  %v1680 = vrot.slane %v1678, 1
  %v1681 = vsel %vm357, %v1676, %v1680
  %v1682 = vshrl.u32 %v1644, 16
  %v1684 = vor.u32 %v1682, %v1680
  %v1690 = vsel %vm356, %v1645, %v1657
  %v1691 = vsel %vm356, %v1589, %v1665
  %v1692 = vsel %vm356, %v1590, %v1673
  %v1693 = vsel %vm356, %v1591, %v1681
  %v1694 = vsel %vm356, %v1594, %v1684
  %v1695 = vld [vmem:[#allocation2 + $0x20] sm:$0x1f]
  %v1697 = vshrl.u32 %v1690, 16
  %v1699 = vshll.u32 %v1690, 16
  %v1701 = vrot.slane %v1699, 1
  %v1702 = vor.u32 %v1697, %v1701
  %v1704 = vshll.u32 %v1691, 16
  %v1706 = vrot.slane %v1704, 1
  %v1707 = vsel %vm357, %v1702, %v1706
  %v1708 = vshrl.u32 %v1691, 16
  %v1710 = vor.u32 %v1708, %v1706
  %v1712 = vshll.u32 %v1692, 16
  %v1714 = vrot.slane %v1712, 1
  %v1715 = vsel %vm357, %v1710, %v1714
  %v1716 = vshrl.u32 %v1692, 16
  %v1718 = vor.u32 %v1716, %v1714
  %v1720 = vshll.u32 %v1693, 16
  %v1722 = vrot.slane %v1720, 1
  %v1723 = vsel %vm357, %v1718, %v1722
  %v1724 = vshrl.u32 %v1693, 16
  %v1726 = vor.u32 %v1724, %v1722
  %v1728 = vshll.u32 %v1694, 16
  %v1730 = vrot.slane %v1728, 1
  %v1731 = vsel %vm357, %v1726, %v1730
  %v1732 = vshrl.u32 %v1694, 16
  %v1734 = vor.u32 %v1732, %v1730
  %v1740 = vsel %vm900, %v1645, %v1707
  %v1741 = vsel %vm900, %v1589, %v1715
  %v1742 = vsel %vm900, %v1590, %v1723
  %v1743 = vsel %vm900, %v1591, %v1731
  %v1744 = vsel %vm900, %v1695, %v1734
  %v1745 = vld [vmem:[%s9] sm:$0xf]
  %v1746 = vld [vmem:[%s9 + $0x4] sm:$0xf]
  %v1747 = vld [vmem:[%s9 + $0x8] sm:$0xf]
  %v1748 = vld [vmem:[%s9 + $0xc] sm:$0xf]
  %v1749 = vld [vmem:[%s9 + $0x10] sm:$0xf]
  %v1750 = vld [vmem:[%s9 + $0x14] sm:$0xf]
  %v1751 = vld [vmem:[%s9 + $0x18] sm:$0xf]
  %v1752 = vld [vmem:[%s9 + $0x1c] sm:$0xf]
  %v1753 = vld [vmem:[%s9 + $0x20] sm:$0xf]
  %v1754 = vld [vmem:[%s9 + $0x24] sm:$0xf]
  %v1755 = vld [vmem:[%s9 + $0x28] sm:$0xf]
  %v1756 = vld [vmem:[%s9 + $0x2c] sm:$0xf]
  %v1757 = vld [vmem:[%s9 + $0x30] sm:$0xf]
  %v1758 = vld [vmem:[%s9 + $0x34] sm:$0xf]
  %v1759 = vld [vmem:[%s9 + $0x38] sm:$0xf]
  %v1760 = vld [vmem:[%s9 + $0x3c] sm:$0xf]
  %v1761 = vld [vmem:[#allocation2 + $0x8] sm:$0xfc]
  %v1762 = vld [vmem:[#allocation2 + $0x10] sm:$0xff]
  %v1763 = vld [vmem:[#allocation2 + $0x18] sm:$0xff]
  %v1764 = vld [vmem:[#allocation2 + $0x20] sm:$0xff]
  %v1765 = vld [vmem:[#allocation2 + $0x28] sm:$0x7]
  %v1766 = vld [vmem:[#allocation2 + $0x28] sm:$0x3]
  %v1768 = vshrl.u32 %v1761, 16
  %v1770 = vshll.u32 %v1761, 16
  %v1772 = vrot.slane %v1770, 1
  %v1773 = vor.u32 %v1768, %v1772
  %v1775 = vshll.u32 %v1762, 16
  %v1777 = vrot.slane %v1775, 1
  %v1778 = vsel %vm357, %v1773, %v1777
  %v1779 = vshrl.u32 %v1762, 16
  %v1781 = vor.u32 %v1779, %v1777
  %v1783 = vshll.u32 %v1763, 16
  %v1785 = vrot.slane %v1783, 1
  %v1786 = vsel %vm357, %v1781, %v1785
  %v1787 = vshrl.u32 %v1763, 16
  %v1789 = vor.u32 %v1787, %v1785
  %v1791 = vshll.u32 %v1764, 16
  %v1793 = vrot.slane %v1791, 1
  %v1794 = vsel %vm357, %v1789, %v1793
  %v1795 = vshrl.u32 %v1764, 16
  %v1797 = vor.u32 %v1795, %v1793
  %v1799 = vshll.u32 %v1765, 16
  %v1801 = vrot.slane %v1799, 1
  %v1802 = vsel %vm357, %v1797, %v1801
  %v1803 = vshrl.u32 %v1765, 16
  %v1805 = vor.u32 %v1803, %v1801
  %v1811 = vsel %vm790, %v1761, %v1778
  %v1812 = vsel %vm790, %v1762, %v1786
  %v1813 = vsel %vm790, %v1763, %v1794
  %v1814 = vsel %vm790, %v1764, %v1802
  %v1815 = vsel %vm790, %v1766, %v1805
  %v1816 = vld [vmem:[#allocation2 + $0x8] sm:$0xff]
  %v1817 = vld [vmem:[#allocation2 + $0x28] sm:$0x1]
  %v1819 = vshrl.u32 %v1811, 16
  %v1821 = vrot.slane %v1819, 1
  %v1822 = vshll.u32 %v1811, 16
  %v1824 = vrot.slane %v1822, 2
  %v1825 = vor.u32 %v1821, %v1824
  %v1827 = vshrl.u32 %v1812, 16
  %v1829 = vrot.slane %v1827, 1
  %v1830 = vshll.u32 %v1812, 16
  %v1832 = vrot.slane %v1830, 2
  %v1833 = vor.u32 %v1829, %v1832
  %v1834 = vsel %vm791, %v1825, %v1833
  %v1836 = vshrl.u32 %v1813, 16
  %v1838 = vrot.slane %v1836, 1
  %v1839 = vshll.u32 %v1813, 16
  %v1841 = vrot.slane %v1839, 2
  %v1842 = vor.u32 %v1838, %v1841
  %v1843 = vsel %vm791, %v1833, %v1842
  %v1845 = vshrl.u32 %v1814, 16
  %v1847 = vrot.slane %v1845, 1
  %v1848 = vshll.u32 %v1814, 16
  %v1850 = vrot.slane %v1848, 2
  %v1851 = vor.u32 %v1847, %v1850
  %v1852 = vsel %vm791, %v1842, %v1851
  %v1854 = vshrl.u32 %v1815, 16
  %v1856 = vrot.slane %v1854, 1
  %v1857 = vshll.u32 %v1815, 16
  %v1859 = vrot.slane %v1857, 2
  %v1860 = vor.u32 %v1856, %v1859
  %v1861 = vsel %vm791, %v1851, %v1860
  %v1867 = vsel %vm356, %v1816, %v1834
  %v1868 = vsel %vm356, %v1762, %v1843
  %v1869 = vsel %vm356, %v1763, %v1852
  %v1870 = vsel %vm356, %v1764, %v1861
  %v1871 = vsel %vm356, %v1817, %v1856
  %v1873 = vshrl.u32 %v1867, 16
  %v1875 = vshll.u32 %v1867, 16
  %v1877 = vrot.slane %v1875, 1
  %v1878 = vor.u32 %v1873, %v1877
  %v1880 = vshll.u32 %v1868, 16
  %v1882 = vrot.slane %v1880, 1
  %v1883 = vsel %vm357, %v1878, %v1882
  %v1884 = vshrl.u32 %v1868, 16
  %v1886 = vor.u32 %v1884, %v1882
  %v1888 = vshll.u32 %v1869, 16
  %v1890 = vrot.slane %v1888, 1
  %v1891 = vsel %vm357, %v1886, %v1890
  %v1892 = vshrl.u32 %v1869, 16
  %v1894 = vor.u32 %v1892, %v1890
  %v1896 = vshll.u32 %v1870, 16
  %v1898 = vrot.slane %v1896, 1
  %v1899 = vsel %vm357, %v1894, %v1898
  %v1900 = vshrl.u32 %v1870, 16
  %v1902 = vor.u32 %v1900, %v1898
  %v1904 = vshll.u32 %v1871, 16
  %v1906 = vrot.slane %v1904, 1
  %v1907 = vsel %vm357, %v1902, %v1906
  %v1912 = vsel %vm900, %v1589, %v1883
  %v1913 = vsel %vm900, %v1590, %v1891
  %v1914 = vsel %vm900, %v1591, %v1899
  %v1915 = vsel %vm900, %v1592, %v1907
  %s1916 = scalar_lea.vmem %s9, 64
  %v1917 = vld [vmem:[%s1916] sm:$0xf]
  %v1918 = vld [vmem:[%s1916 + $0x4] sm:$0xf]
  %v1919 = vld [vmem:[%s1916 + $0x8] sm:$0xf]
  %v1920 = vld [vmem:[%s1916 + $0xc] sm:$0xf]
  %v1921 = vld [vmem:[%s1916 + $0x10] sm:$0xf]
  %v1922 = vld [vmem:[%s1916 + $0x14] sm:$0xf]
  %v1923 = vld [vmem:[%s1916 + $0x18] sm:$0xf]
  %v1924 = vld [vmem:[%s1916 + $0x1c] sm:$0xf]
  %v1925 = vld [vmem:[%s1916 + $0x20] sm:$0xf]
  %v1926 = vld [vmem:[%s1916 + $0x24] sm:$0xf]
  %v1927 = vld [vmem:[%s1916 + $0x28] sm:$0xf]
  %v1928 = vld [vmem:[%s1916 + $0x2c] sm:$0xf]
  %v1929 = vld [vmem:[%s1916 + $0x30] sm:$0xf]
  %v1930 = vld [vmem:[%s1916 + $0x34] sm:$0xf]
  %v1931 = vld [vmem:[%s1916 + $0x38] sm:$0xf]
  %v1932 = vld [vmem:[%s1916 + $0x3c] sm:$0xf]
  %v1949 = vunpack.c.l.b16 %v1917
  %v1950 = vunpack.c.l.b16 %v1918
  %v1951 = vunpack.c.l.b16 %v1919
  %v1952 = vunpack.c.l.b16 %v1920
  %v1953 = vunpack.c.l.b16 %v1921
  %v1954 = vunpack.c.l.b16 %v1922
  %v1955 = vunpack.c.l.b16 %v1923
  %v1956 = vunpack.c.l.b16 %v1924
  %v1957 = vunpack.c.l.b16 %v1925
  %v1958 = vunpack.c.l.b16 %v1926
  %v1959 = vunpack.c.l.b16 %v1927
  %v1960 = vunpack.c.l.b16 %v1928
  %v1961 = vunpack.c.l.b16 %v1929
  %v1962 = vunpack.c.l.b16 %v1930
  %v1963 = vunpack.c.l.b16 %v1931
  %v1964 = vunpack.c.l.b16 %v1932
  %v1965 = vpack.c.b16 %v1950, %v1949
  %v1966 = vpack.c.b16 %v1952, %v1951
  %v1967 = vpack.c.b16 %v1954, %v1953
  %v1968 = vpack.c.b16 %v1956, %v1955
  %v1969 = vpack.c.b16 %v1958, %v1957
  %v1970 = vpack.c.b16 %v1960, %v1959
  %v1971 = vpack.c.b16 %v1962, %v1961
  %v1972 = vpack.c.b16 %v1964, %v1963
  %1981 = vmatprep.subr.bf16.mxu0 0
  %1982 = vmatpush1.bf16.msra.mxu0 %v1965
  %1983 = vmatprep.subr.bf16.mxu0 0
  %1984 = vmatpush1.bf16.msra.mxu0 %v1966
  %1985 = vmatprep.subr.bf16.mxu0 0
  %1986 = vmatpush1.bf16.msra.mxu0 %v1967
  %1987 = vmatprep.subr.bf16.mxu0 0
  %1988 = vmatpush1.bf16.msra.mxu0 %v1968
  %1989 = vmatprep.subr.bf16.mxu0 0
  %1990 = vmatpush1.bf16.msra.mxu0 %v1969
  %1991 = vmatprep.subr.bf16.mxu0 0
  %1992 = vmatpush1.bf16.msra.mxu0 %v1970
  %1993 = vmatprep.subr.bf16.mxu0 0
  %1994 = vmatpush1.bf16.msra.mxu0 %v1971
  %1995 = vmatprep.subr.bf16.mxu0 0
  %1996 = vmatpush1.bf16.msra.mxu0 %v1972
  %1997 = vmatprep.subr.bf16.mxu0 0
  %1998 = vmatpush1.bf16.msra.mxu0 0
  %1999 = vmatprep.subr.bf16.mxu0 0
  %2000 = vmatpush1.bf16.msra.mxu0 0
  %2001 = vmatprep.subr.bf16.mxu0 0
  %2002 = vmatpush1.bf16.msra.mxu0 0
  %2003 = vmatprep.subr.bf16.mxu0 0
  %2004 = vmatpush1.bf16.msra.mxu0 0
  %2005 = vmatprep.subr.bf16.mxu0 0
  %2006 = vmatpush1.bf16.msra.mxu0 0
  %2007 = vmatprep.subr.bf16.mxu0 0
  %2008 = vmatpush1.bf16.msra.mxu0 0
  %2009 = vmatprep.subr.bf16.mxu0 0
  %2010 = vmatpush1.bf16.msra.mxu0 0
  %2011 = vmatprep.subr.bf16.mxu0 0
  %2012 = vmatpush1.bf16.msra.mxu0 0
  %2013 = vmatprep.mubr.bf16.mxu0 0
  %2014 = vmatmul.mubr.bf16.gmra.mrb[0].mxu0 %v1912
  %v2015 = vpop.f32.mrb[0].mxu0
  %v2016 = vadd.f32 0.0, %v2015
  %v2017 = vpop.f32.mrb[0].mxu0
  %v2018 = vpop.f32.mrb[0].mxu0
  %v2019 = vadd.f32 0.0, %v2018
  %v2020 = vpop.f32.mrb[0].mxu0
  %2021 = vmatprep.mubr.bf16.mxu0 0
  %2022 = vmatmul.mubr.bf16.gmra.mrb[0].mxu0 %v1913
  %v2023 = vpop.f32.mrb[0].mxu0
  %v2024 = vadd.f32 0.0, %v2023
  %v2025 = vpop.f32.mrb[0].mxu0
  %v2026 = vpop.f32.mrb[0].mxu0
  %v2027 = vadd.f32 0.0, %v2026
  %v2028 = vpop.f32.mrb[0].mxu0
  %2029 = vmatprep.mubr.bf16.mxu0 0
  %2030 = vmatmul.mubr.bf16.gmra.mrb[0].mxu0 %v1914
  %v2031 = vpop.f32.mrb[0].mxu0
  %v2032 = vadd.f32 0.0, %v2031
  %v2033 = vpop.f32.mrb[0].mxu0
  %v2034 = vpop.f32.mrb[0].mxu0
  %v2035 = vadd.f32 0.0, %v2034
  %v2036 = vpop.f32.mrb[0].mxu0
  %2037 = vmatprep.mubr.bf16.mxu0 0
  %2038 = vmatmul.mubr.bf16.gmra.mrb[0].mxu0 %v1915
  %v2039 = vpop.f32.mrb[0].mxu0
  %v2040 = vadd.f32 0.0, %v2039
  %v2041 = vpop.f32.mrb[0].mxu0
  %v2042 = vpop.f32.mrb[0].mxu0
  %v2043 = vadd.f32 0.0, %v2042
  %v2044 = vpop.f32.mrb[0].mxu0
  %2045 = vdwg.mxu0
  %v2051 = vrot.slane %v1740, 5
  %v2052 = vrot.slane %v1741, 5
  %v2053 = vsel %vm1256, %v2051, %v2052
  %v2054 = vrot.slane %v1742, 5
  %v2055 = vsel %vm1256, %v2052, %v2054
  %v2056 = vrot.slane %v1743, 5
  %v2057 = vsel %vm1256, %v2054, %v2056
  %v2058 = vrot.slane %v1744, 5
  %v2059 = vsel %vm1256, %v2056, %v2058
  %v2080 = vunpack.c.l.b16 %v1745
  %v2081 = vunpack.c.l.b16 %v1746
  %v2082 = vunpack.c.l.b16 %v1747
  %v2083 = vunpack.c.l.b16 %v1748
  %v2084 = vunpack.c.l.b16 %v1749
  %v2085 = vunpack.c.l.b16 %v1750
  %v2086 = vunpack.c.l.b16 %v1751
  %v2087 = vunpack.c.l.b16 %v1752
  %v2088 = vunpack.c.l.b16 %v1753
  %v2089 = vunpack.c.l.b16 %v1754
  %v2090 = vunpack.c.l.b16 %v1755
  %v2091 = vunpack.c.l.b16 %v1756
  %v2092 = vunpack.c.l.b16 %v1757
  %v2093 = vunpack.c.l.b16 %v1758
  %v2094 = vunpack.c.l.b16 %v1759
  %v2095 = vunpack.c.l.b16 %v1760
  %v2096 = vpack.c.b16 %v2081, %v2080
  %v2097 = vpack.c.b16 %v2083, %v2082
  %v2098 = vpack.c.b16 %v2085, %v2084
  %v2099 = vpack.c.b16 %v2087, %v2086
  %v2100 = vpack.c.b16 %v2089, %v2088
  %v2101 = vpack.c.b16 %v2091, %v2090
  %v2102 = vpack.c.b16 %v2093, %v2092
  %v2103 = vpack.c.b16 %v2095, %v2094
  %2112 = vmatprep.subr.bf16.mxu0 0
  %2113 = vmatpush1.bf16.msra.mxu0 %v2096
  %2114 = vmatprep.subr.bf16.mxu0 0
  %2115 = vmatpush1.bf16.msra.mxu0 %v2097
  %2116 = vmatprep.subr.bf16.mxu0 0
  %2117 = vmatpush1.bf16.msra.mxu0 %v2098
  %2118 = vmatprep.subr.bf16.mxu0 0
  %2119 = vmatpush1.bf16.msra.mxu0 %v2099
  %2120 = vmatprep.subr.bf16.mxu0 0
  %2121 = vmatpush1.bf16.msra.mxu0 %v2100
  %2122 = vmatprep.subr.bf16.mxu0 0
  %2123 = vmatpush1.bf16.msra.mxu0 %v2101
  %2124 = vmatprep.subr.bf16.mxu0 0
  %2125 = vmatpush1.bf16.msra.mxu0 %v2102
  %2126 = vmatprep.subr.bf16.mxu0 0
  %2127 = vmatpush1.bf16.msra.mxu0 %v2103
  %2128 = vmatprep.subr.bf16.mxu0 0
  %2129 = vmatpush1.bf16.msra.mxu0 0
  %2130 = vmatprep.subr.bf16.mxu0 0
  %2131 = vmatpush1.bf16.msra.mxu0 0
  %2132 = vmatprep.subr.bf16.mxu0 0
  %2133 = vmatpush1.bf16.msra.mxu0 0
  %2134 = vmatprep.subr.bf16.mxu0 0
  %2135 = vmatpush1.bf16.msra.mxu0 0
  %2136 = vmatprep.subr.bf16.mxu0 0
  %2137 = vmatpush1.bf16.msra.mxu0 0
  %2138 = vmatprep.subr.bf16.mxu0 0
  %2139 = vmatpush1.bf16.msra.mxu0 0
  %2140 = vmatprep.subr.bf16.mxu0 0
  %2141 = vmatpush1.bf16.msra.mxu0 0
  %2142 = vmatprep.subr.bf16.mxu0 0
  %2143 = vmatpush1.bf16.msra.mxu0 0
  %2144 = vmatprep.mubr.bf16.mxu0 0
  %2145 = vmatmul.mubr.bf16.gmra.mrb[0].mxu0 %v2053
  %v2146 = vpop.f32.mrb[0].mxu0
  %v2147 = vadd.f32 %v2016, %v2146
  %v2148 = vpop.f32.mrb[0].mxu0
  %v2149 = vpop.f32.mrb[0].mxu0
  %v2150 = vadd.f32 %v2019, %v2149
  %v2151 = vpop.f32.mrb[0].mxu0
  %2152 = vmatprep.mubr.bf16.mxu0 0
  %2153 = vmatmul.mubr.bf16.gmra.mrb[0].mxu0 %v2055
  %v2154 = vpop.f32.mrb[0].mxu0
  %v2155 = vadd.f32 %v2024, %v2154
  %v2156 = vpop.f32.mrb[0].mxu0
  %v2157 = vpop.f32.mrb[0].mxu0
  %v2158 = vadd.f32 %v2027, %v2157
  %v2159 = vpop.f32.mrb[0].mxu0
  %2160 = vmatprep.mubr.bf16.mxu0 0
  %2161 = vmatmul.mubr.bf16.gmra.mrb[0].mxu0 %v2057
  %v2162 = vpop.f32.mrb[0].mxu0
  %v2163 = vadd.f32 %v2032, %v2162
  %v2164 = vpop.f32.mrb[0].mxu0
  %v2165 = vpop.f32.mrb[0].mxu0
  %v2166 = vadd.f32 %v2035, %v2165
  %v2167 = vpop.f32.mrb[0].mxu0
  %2168 = vmatprep.mubr.bf16.mxu0 0
  %2169 = vmatmul.mubr.bf16.gmra.mrb[0].mxu0 %v2059
  %v2170 = vpop.f32.mrb[0].mxu0
  %v2171 = vadd.f32 %v2040, %v2170
  %v2172 = vpop.f32.mrb[0].mxu0
  %v2173 = vpop.f32.mrb[0].mxu0
  %v2174 = vadd.f32 %v2043, %v2173
  %v2175 = vpop.f32.mrb[0].mxu0
  %2176 = vdwg.mxu0
  %v2177 = vld [vmem:[#allocation2 + $0x8] sm:$0xf8]
  %s2178 = scalar_lea.vmem %s9, 128
  %v2179 = vld [vmem:[%s2178] sm:$0xf]
  %v2180 = vld [vmem:[%s2178 + $0x4] sm:$0xf]
  %v2181 = vld [vmem:[%s2178 + $0x8] sm:$0xf]
  %v2182 = vld [vmem:[%s2178 + $0xc] sm:$0xf]
  %v2183 = vld [vmem:[%s2178 + $0x10] sm:$0xf]
  %v2184 = vld [vmem:[%s2178 + $0x14] sm:$0xf]
  %v2185 = vld [vmem:[%s2178 + $0x18] sm:$0xf]
  %v2186 = vld [vmem:[%s2178 + $0x1c] sm:$0xf]
  %v2187 = vld [vmem:[%s2178 + $0x20] sm:$0xf]
  %v2188 = vld [vmem:[%s2178 + $0x24] sm:$0xf]
  %v2189 = vld [vmem:[%s2178 + $0x28] sm:$0xf]
  %v2190 = vld [vmem:[%s2178 + $0x2c] sm:$0xf]
  %v2191 = vld [vmem:[%s2178 + $0x30] sm:$0xf]
  %v2192 = vld [vmem:[%s2178 + $0x34] sm:$0xf]
  %v2193 = vld [vmem:[%s2178 + $0x38] sm:$0xf]
  %v2194 = vld [vmem:[%s2178 + $0x3c] sm:$0xf]
  %v2200 = vrot.slane %v2177, 3
  %v2201 = vrot.slane %v1762, 3
  %v2202 = vsel %vm1406, %v2200, %v2201
  %v2203 = vrot.slane %v1763, 3
  %v2204 = vsel %vm1406, %v2201, %v2203
  %v2205 = vrot.slane %v1764, 3
  %v2206 = vsel %vm1406, %v2203, %v2205
  %v2207 = vrot.slane %v1765, 3
  %v2208 = vsel %vm1406, %v2205, %v2207
  %v2229 = vunpack.c.l.b16 %v2179
  %v2230 = vunpack.c.l.b16 %v2180
  %v2231 = vunpack.c.l.b16 %v2181
  %v2232 = vunpack.c.l.b16 %v2182
  %v2233 = vunpack.c.l.b16 %v2183
  %v2234 = vunpack.c.l.b16 %v2184
  %v2235 = vunpack.c.l.b16 %v2185
  %v2236 = vunpack.c.l.b16 %v2186
  %v2237 = vunpack.c.l.b16 %v2187
  %v2238 = vunpack.c.l.b16 %v2188
  %v2239 = vunpack.c.l.b16 %v2189
  %v2240 = vunpack.c.l.b16 %v2190
  %v2241 = vunpack.c.l.b16 %v2191
  %v2242 = vunpack.c.l.b16 %v2192
  %v2243 = vunpack.c.l.b16 %v2193
  %v2244 = vunpack.c.l.b16 %v2194
  %v2245 = vpack.c.b16 %v2230, %v2229
  %v2246 = vpack.c.b16 %v2232, %v2231
  %v2247 = vpack.c.b16 %v2234, %v2233
  %v2248 = vpack.c.b16 %v2236, %v2235
  %v2249 = vpack.c.b16 %v2238, %v2237
  %v2250 = vpack.c.b16 %v2240, %v2239
  %v2251 = vpack.c.b16 %v2242, %v2241
  %v2252 = vpack.c.b16 %v2244, %v2243
  %2261 = vmatprep.subr.bf16.mxu0 0
  %2262 = vmatpush1.bf16.msra.mxu0 %v2245
  %2263 = vmatprep.subr.bf16.mxu0 0
  %2264 = vmatpush1.bf16.msra.mxu0 %v2246
  %2265 = vmatprep.subr.bf16.mxu0 0
  %2266 = vmatpush1.bf16.msra.mxu0 %v2247
  %2267 = vmatprep.subr.bf16.mxu0 0
  %2268 = vmatpush1.bf16.msra.mxu0 %v2248
  %2269 = vmatprep.subr.bf16.mxu0 0
  %2270 = vmatpush1.bf16.msra.mxu0 %v2249
  %2271 = vmatprep.subr.bf16.mxu0 0
  %2272 = vmatpush1.bf16.msra.mxu0 %v2250
  %2273 = vmatprep.subr.bf16.mxu0 0
  %2274 = vmatpush1.bf16.msra.mxu0 %v2251
  %2275 = vmatprep.subr.bf16.mxu0 0
  %2276 = vmatpush1.bf16.msra.mxu0 %v2252
  %2277 = vmatprep.subr.bf16.mxu0 0
  %2278 = vmatpush1.bf16.msra.mxu0 0
  %2279 = vmatprep.subr.bf16.mxu0 0
  %2280 = vmatpush1.bf16.msra.mxu0 0
  %2281 = vmatprep.subr.bf16.mxu0 0
  %2282 = vmatpush1.bf16.msra.mxu0 0
  %2283 = vmatprep.subr.bf16.mxu0 0
  %2284 = vmatpush1.bf16.msra.mxu0 0
  %2285 = vmatprep.subr.bf16.mxu0 0
  %2286 = vmatpush1.bf16.msra.mxu0 0
  %2287 = vmatprep.subr.bf16.mxu0 0
  %2288 = vmatpush1.bf16.msra.mxu0 0
  %2289 = vmatprep.subr.bf16.mxu0 0
  %2290 = vmatpush1.bf16.msra.mxu0 0
  %2291 = vmatprep.subr.bf16.mxu0 0
  %2292 = vmatpush1.bf16.msra.mxu0 0
  %2293 = vmatprep.mubr.bf16.mxu0 0
  %2294 = vmatmul.mubr.bf16.gmra.mrb[0].mxu0 %v2202
  %v2295 = vpop.f32.mrb[0].mxu0
  %v2296 = vadd.f32 0.0, %v2295
  %v2297 = vpop.f32.mrb[0].mxu0
  %v2298 = vpop.f32.mrb[0].mxu0
  %v2299 = vadd.f32 0.0, %v2298
  %v2300 = vpop.f32.mrb[0].mxu0
  %2301 = vmatprep.mubr.bf16.mxu0 0
  %2302 = vmatmul.mubr.bf16.gmra.mrb[0].mxu0 %v2204
  %v2303 = vpop.f32.mrb[0].mxu0
  %v2304 = vadd.f32 0.0, %v2303
  %v2305 = vpop.f32.mrb[0].mxu0
  %v2306 = vpop.f32.mrb[0].mxu0
  %v2307 = vadd.f32 0.0, %v2306
  %v2308 = vpop.f32.mrb[0].mxu0
  %2309 = vmatprep.mubr.bf16.mxu0 0
  %2310 = vmatmul.mubr.bf16.gmra.mrb[0].mxu0 %v2206
  %v2311 = vpop.f32.mrb[0].mxu0
  %v2312 = vadd.f32 0.0, %v2311
  %v2313 = vpop.f32.mrb[0].mxu0
  %v2314 = vpop.f32.mrb[0].mxu0
  %v2315 = vadd.f32 0.0, %v2314
  %v2316 = vpop.f32.mrb[0].mxu0
  %2317 = vmatprep.mubr.bf16.mxu0 0
  %2318 = vmatmul.mubr.bf16.gmra.mrb[0].mxu0 %v2208
  %v2319 = vpop.f32.mrb[0].mxu0
  %v2320 = vadd.f32 0.0, %v2319
  %v2321 = vpop.f32.mrb[0].mxu0
  %v2322 = vpop.f32.mrb[0].mxu0
  %v2323 = vadd.f32 0.0, %v2322
  %v2324 = vpop.f32.mrb[0].mxu0
  %2325 = vdwg.mxu0
  %v2326 = vadd.f32 %v2147, %v2296
  %v2327 = vadd.f32 %v2150, %v2299
  %v2328 = vadd.f32 %v2155, %v2304
  %v2329 = vadd.f32 %v2158, %v2307
  %v2330 = vadd.f32 %v2163, %v2312
  %v2331 = vadd.f32 %v2166, %v2315
  %v2332 = vadd.f32 %v2171, %v2320
  %v2333 = vadd.f32 %v2174, %v2323
  %v2335 = vlaneseq
  %v2336 = vshrl.u32 %v2335, 7
  %v2337 = vsub.s32 0, %v2336
  %v2338 = vrot.slane %v1579, %v2337
  %v2340 = vadd.f32 %v2326, %v2338
  %v2341 = vadd.f32 %v2327, %v2338
  %v2342 = vadd.f32 %v2328, %v2338
  %v2343 = vadd.f32 %v2329, %v2338
  %v2344 = vadd.f32 %v2330, %v2338
  %v2345 = vadd.f32 %v2331, %v2338
  %v2346 = vadd.f32 %v2332, %v2338
  %v2347 = vadd.f32 %v2333, %v2338
  %v2348 = vmax.f32 %v2340, 0.0
  %v2349 = vmax.f32 %v2341, 0.0
  %v2350 = vmax.f32 %v2342, 0.0
  %v2351 = vmax.f32 %v2343, 0.0
  %v2352 = vmax.f32 %v2344, 0.0
  %v2353 = vmax.f32 %v2345, 0.0
  %v2354 = vmax.f32 %v2346, 0.0
  %v2355 = vmax.f32 %v2347, 0.0
  %v2356 = vpack.c.bf16 %v2349, %v2348
  %v2357 = vpack.c.bf16 %v2351, %v2350
  %v2358 = vpack.c.bf16 %v2353, %v2352
  %v2359 = vpack.c.bf16 %v2355, %v2354
  %v2360 = vld [vmem:[%s11] sm:$0xf]
  %v2361 = vld [vmem:[%s11 + $0x4] sm:$0xf]
  %v2362 = vld [vmem:[%s11 + $0x8] sm:$0xf]
  %v2363 = vld [vmem:[%s11 + $0xc] sm:$0xf]
  %v2364 = vld [vmem:[%s11 + $0x10] sm:$0xf]
  %v2365 = vld [vmem:[%s11 + $0x14] sm:$0xf]
  %v2366 = vld [vmem:[%s11 + $0x18] sm:$0xf]
  %v2367 = vld [vmem:[%s11 + $0x1c] sm:$0xf]
  %v2368 = vld [vmem:[%s11 + $0x20] sm:$0xf]
  %v2369 = vld [vmem:[%s11 + $0x24] sm:$0xf]
  %v2370 = vld [vmem:[%s11 + $0x28] sm:$0xf]
  %v2371 = vld [vmem:[%s11 + $0x2c] sm:$0xf]
  %v2372 = vld [vmem:[%s11 + $0x30] sm:$0xf]
  %v2373 = vld [vmem:[%s11 + $0x34] sm:$0xf]
  %v2374 = vld [vmem:[%s11 + $0x38] sm:$0xf]
  %v2375 = vld [vmem:[%s11 + $0x3c] sm:$0xf]
  %v2392 = vunpack.c.l.b16 %v2360
  %v2393 = vunpack.c.l.b16 %v2361
  %v2394 = vunpack.c.l.b16 %v2362
  %v2395 = vunpack.c.l.b16 %v2363
  %v2396 = vunpack.c.l.b16 %v2364
  %v2397 = vunpack.c.l.b16 %v2365
  %v2398 = vunpack.c.l.b16 %v2366
  %v2399 = vunpack.c.l.b16 %v2367
  %v2400 = vunpack.c.l.b16 %v2368
  %v2401 = vunpack.c.l.b16 %v2369
  %v2402 = vunpack.c.l.b16 %v2370
  %v2403 = vunpack.c.l.b16 %v2371
  %v2404 = vunpack.c.l.b16 %v2372
  %v2405 = vunpack.c.l.b16 %v2373
  %v2406 = vunpack.c.l.b16 %v2374
  %v2407 = vunpack.c.l.b16 %v2375
  %v2408 = vpack.c.b16 %v2393, %v2392
  %v2409 = vpack.c.b16 %v2395, %v2394
  %v2410 = vpack.c.b16 %v2397, %v2396
  %v2411 = vpack.c.b16 %v2399, %v2398
  %v2412 = vpack.c.b16 %v2401, %v2400
  %v2413 = vpack.c.b16 %v2403, %v2402
  %v2414 = vpack.c.b16 %v2405, %v2404
  %v2415 = vpack.c.b16 %v2407, %v2406
  %2424 = vmatprep.subr.bf16.mxu0 0
  %2425 = vmatpush1.bf16.msra.mxu0 %v2408
  %2426 = vmatprep.subr.bf16.mxu0 0
  %2427 = vmatpush1.bf16.msra.mxu0 %v2409
  %2428 = vmatprep.subr.bf16.mxu0 0
  %2429 = vmatpush1.bf16.msra.mxu0 %v2410
  %2430 = vmatprep.subr.bf16.mxu0 0
  %2431 = vmatpush1.bf16.msra.mxu0 %v2411
  %2432 = vmatprep.subr.bf16.mxu0 0
  %2433 = vmatpush1.bf16.msra.mxu0 %v2412
  %2434 = vmatprep.subr.bf16.mxu0 0
  %2435 = vmatpush1.bf16.msra.mxu0 %v2413
  %2436 = vmatprep.subr.bf16.mxu0 0
  %2437 = vmatpush1.bf16.msra.mxu0 %v2414
  %2438 = vmatprep.subr.bf16.mxu0 0
  %2439 = vmatpush1.bf16.msra.mxu0 %v2415
  %2440 = vmatprep.subr.bf16.mxu0 0
  %2441 = vmatpush1.bf16.msra.mxu0 0
  %2442 = vmatprep.subr.bf16.mxu0 0
  %2443 = vmatpush1.bf16.msra.mxu0 0
  %2444 = vmatprep.subr.bf16.mxu0 0
  %2445 = vmatpush1.bf16.msra.mxu0 0
  %2446 = vmatprep.subr.bf16.mxu0 0
  %2447 = vmatpush1.bf16.msra.mxu0 0
  %2448 = vmatprep.subr.bf16.mxu0 0
  %2449 = vmatpush1.bf16.msra.mxu0 0
  %2450 = vmatprep.subr.bf16.mxu0 0
  %2451 = vmatpush1.bf16.msra.mxu0 0
  %2452 = vmatprep.subr.bf16.mxu0 0
  %2453 = vmatpush1.bf16.msra.mxu0 0
  %2454 = vmatprep.subr.bf16.mxu0 0
  %2455 = vmatpush1.bf16.msra.mxu0 0
  %2456 = vmatprep.mubr.bf16.mxu0 0
  %2457 = vmatmul.mubr.bf16.gmra.mrb[0].mxu0 %v2356
  %v2458 = vpop.f32.mrb[0].mxu0
  %v2459 = vadd.f32 0.0, %v2458
  %v2460 = vpop.f32.mrb[0].mxu0
  %v2461 = vpop.f32.mrb[0].mxu0
  %v2462 = vadd.f32 0.0, %v2461
  %v2463 = vpop.f32.mrb[0].mxu0
  %2464 = vmatprep.mubr.bf16.mxu0 0
  %2465 = vmatmul.mubr.bf16.gmra.mrb[0].mxu0 %v2357
  %v2466 = vpop.f32.mrb[0].mxu0
  %v2467 = vadd.f32 0.0, %v2466
  %v2468 = vpop.f32.mrb[0].mxu0
  %v2469 = vpop.f32.mrb[0].mxu0
  %v2470 = vadd.f32 0.0, %v2469
  %v2471 = vpop.f32.mrb[0].mxu0
  %2472 = vmatprep.mubr.bf16.mxu0 0
  %2473 = vmatmul.mubr.bf16.gmra.mrb[0].mxu0 %v2358
  %v2474 = vpop.f32.mrb[0].mxu0
  %v2475 = vadd.f32 0.0, %v2474
  %v2476 = vpop.f32.mrb[0].mxu0
  %v2477 = vpop.f32.mrb[0].mxu0
  %v2478 = vadd.f32 0.0, %v2477
  %v2479 = vpop.f32.mrb[0].mxu0
  %2480 = vmatprep.mubr.bf16.mxu0 0
  %2481 = vmatmul.mubr.bf16.gmra.mrb[0].mxu0 %v2359
  %v2482 = vpop.f32.mrb[0].mxu0
  %v2483 = vadd.f32 0.0, %v2482
  %v2484 = vpop.f32.mrb[0].mxu0
  %v2485 = vpop.f32.mrb[0].mxu0
  %v2486 = vadd.f32 0.0, %v2485
  %v2487 = vpop.f32.mrb[0].mxu0
  %2488 = vdwg.mxu0
  %v2489 = vadd.f32 %v1563, %v2459
  %v2490 = vadd.f32 %v1564, %v2462
  %v2491 = vadd.f32 %v1565, %v2467
  %v2492 = vadd.f32 %v1566, %v2470
  %v2493 = vadd.f32 %v1567, %v2475
  %v2494 = vadd.f32 %v1568, %v2478
  %v2495 = vadd.f32 %v1569, %v2483
  %v2496 = vadd.f32 %v1570, %v2486
  %v2497 = vld [vmem:[%s12] sm:$0x1]
  %v2499 = vlaneseq
  %v2500 = vshrl.u32 %v2499, 7
  %v2501 = vsub.s32 0, %v2500
  %v2502 = vrot.slane %v2497, %v2501
  %v2504 = vadd.f32 %v2489, %v2502
  %v2505 = vadd.f32 %v2490, %v2502
  %v2506 = vadd.f32 %v2491, %v2502
  %v2507 = vadd.f32 %v2492, %v2502
  %v2508 = vadd.f32 %v2493, %v2502
  %v2509 = vadd.f32 %v2494, %v2502
  %v2510 = vadd.f32 %v2495, %v2502
  %v2511 = vadd.f32 %v2496, %v2502
  %v2512 = vmul.f32 %v2504, %v51
  %v2513 = vmul.f32 %v2505, %v52
  %v2514 = vmul.f32 %v2506, %v53
  %v2515 = vmul.f32 %v2507, %v54
  %v2516 = vmul.f32 %v2508, %v55
  %v2517 = vmul.f32 %v2509, %v56
  %v2518 = vmul.f32 %v2510, %v57
  %v2519 = vmul.f32 %v2511, %v58
  %v2520 = vmax.f32 %v2512, 0.0
  %v2521 = vmax.f32 %v2513, 0.0
  %v2522 = vmax.f32 %v2514, 0.0
  %v2523 = vmax.f32 %v2515, 0.0
  %v2524 = vmax.f32 %v2516, 0.0
  %v2525 = vmax.f32 %v2517, 0.0
  %v2526 = vmax.f32 %v2518, 0.0
  %v2527 = vmax.f32 %v2519, 0.0
  %s2528 = scalar_lea.vmem %s10, 1
  %v2529 = vld [vmem:[%s2528] sm:$0x1]
  %v2530 = vpack.c.bf16 %v2521, %v2520
  %v2531 = vpack.c.bf16 %v2523, %v2522
  %v2532 = vpack.c.bf16 %v2525, %v2524
  %v2533 = vpack.c.bf16 %v2527, %v2526
  %2534 = vst [vmem:[#allocation2 + $0x8] sm:$0xff] %v2530
  %2535 = vst [vmem:[#allocation2 + $0x10] sm:$0xff] %v2531
  %2536 = vst [vmem:[#allocation2 + $0x18] sm:$0xff] %v2532
  %2537 = vst [vmem:[#allocation2 + $0x20] sm:$0xff] %v2533
  %v2538 = vld [vmem:[#allocation2] sm:$0x80]
  %v2539 = vld [vmem:[#allocation2 + $0x8] sm:$0xff]
  %v2540 = vld [vmem:[#allocation2 + $0x10] sm:$0xff]
  %v2541 = vld [vmem:[#allocation2 + $0x18] sm:$0xff]
  %v2542 = vld [vmem:[#allocation2 + $0x20] sm:$0xff]
  %v2543 = vld [vmem:[#allocation2] sm:$0xc0]
  %v2544 = vld [vmem:[#allocation2 + $0x20] sm:$0x3f]
  %v2546 = vshrl.u32 %v2538, 16
  %v2548 = vrot.slane %v2546, 1
  %v2550 = vshrl.u32 %v2539, 16
  %v2552 = vrot.slane %v2550, 1
  %v2553 = vshll.u32 %v2539, 16
  %v2555 = vrot.slane %v2553, 2
  %v2556 = vor.u32 %v2552, %v2555
  %v2557 = vsel %vm791, %v2548, %v2556
  %v2559 = vshrl.u32 %v2540, 16
  %v2561 = vrot.slane %v2559, 1
  %v2562 = vshll.u32 %v2540, 16
  %v2564 = vrot.slane %v2562, 2
  %v2565 = vor.u32 %v2561, %v2564
  %v2566 = vsel %vm791, %v2556, %v2565
  %v2568 = vshrl.u32 %v2541, 16
  %v2570 = vrot.slane %v2568, 1
  %v2571 = vshll.u32 %v2541, 16
  %v2573 = vrot.slane %v2571, 2
  %v2574 = vor.u32 %v2570, %v2573
  %v2575 = vsel %vm791, %v2565, %v2574
  %v2577 = vshrl.u32 %v2542, 16
  %v2579 = vrot.slane %v2577, 1
  %v2580 = vshll.u32 %v2542, 16
  %v2582 = vrot.slane %v2580, 2
  %v2583 = vor.u32 %v2579, %v2582
  %v2584 = vsel %vm791, %v2574, %v2583
  %v2590 = vsel %vm790, %v2543, %v2557
  %v2591 = vsel %vm790, %v2539, %v2566
  %v2592 = vsel %vm790, %v2540, %v2575
  %v2593 = vsel %vm790, %v2541, %v2584
  %v2594 = vsel %vm790, %v2544, %v2583
  %v2595 = vld [vmem:[#allocation2] sm:$0xe0]
  %v2597 = vshrl.u32 %v2590, 16
  %v2599 = vshll.u32 %v2590, 16
  %v2601 = vrot.slane %v2599, 1
  %v2602 = vor.u32 %v2597, %v2601
  %v2604 = vshll.u32 %v2591, 16
  %v2606 = vrot.slane %v2604, 1
  %v2607 = vsel %vm357, %v2602, %v2606
  %v2608 = vshrl.u32 %v2591, 16
  %v2610 = vor.u32 %v2608, %v2606
  %v2612 = vshll.u32 %v2592, 16
  %v2614 = vrot.slane %v2612, 1
  %v2615 = vsel %vm357, %v2610, %v2614
  %v2616 = vshrl.u32 %v2592, 16
  %v2618 = vor.u32 %v2616, %v2614
  %v2620 = vshll.u32 %v2593, 16
  %v2622 = vrot.slane %v2620, 1
  %v2623 = vsel %vm357, %v2618, %v2622
  %v2624 = vshrl.u32 %v2593, 16
  %v2626 = vor.u32 %v2624, %v2622
  %v2628 = vshll.u32 %v2594, 16
  %v2630 = vrot.slane %v2628, 1
  %v2631 = vsel %vm357, %v2626, %v2630
  %v2632 = vshrl.u32 %v2594, 16
  %v2634 = vor.u32 %v2632, %v2630
  %v2640 = vsel %vm356, %v2595, %v2607
  %v2641 = vsel %vm356, %v2539, %v2615
  %v2642 = vsel %vm356, %v2540, %v2623
  %v2643 = vsel %vm356, %v2541, %v2631
  %v2644 = vsel %vm356, %v2544, %v2634
  %v2645 = vld [vmem:[#allocation2 + $0x20] sm:$0x1f]
  %v2647 = vshrl.u32 %v2640, 16
  %v2649 = vshll.u32 %v2640, 16
  %v2651 = vrot.slane %v2649, 1
  %v2652 = vor.u32 %v2647, %v2651
  %v2654 = vshll.u32 %v2641, 16
  %v2656 = vrot.slane %v2654, 1
  %v2657 = vsel %vm357, %v2652, %v2656
  %v2658 = vshrl.u32 %v2641, 16
  %v2660 = vor.u32 %v2658, %v2656
  %v2662 = vshll.u32 %v2642, 16
  %v2664 = vrot.slane %v2662, 1
  %v2665 = vsel %vm357, %v2660, %v2664
  %v2666 = vshrl.u32 %v2642, 16
  %v2668 = vor.u32 %v2666, %v2664
  %v2670 = vshll.u32 %v2643, 16
  %v2672 = vrot.slane %v2670, 1
  %v2673 = vsel %vm357, %v2668, %v2672
  %v2674 = vshrl.u32 %v2643, 16
  %v2676 = vor.u32 %v2674, %v2672
  %v2678 = vshll.u32 %v2644, 16
  %v2680 = vrot.slane %v2678, 1
  %v2681 = vsel %vm357, %v2676, %v2680
  %v2682 = vshrl.u32 %v2644, 16
  %v2684 = vor.u32 %v2682, %v2680
  %v2690 = vsel %vm900, %v2595, %v2657
  %v2691 = vsel %vm900, %v2539, %v2665
  %v2692 = vsel %vm900, %v2540, %v2673
  %v2693 = vsel %vm900, %v2541, %v2681
  %v2694 = vsel %vm900, %v2645, %v2684
  %s2695 = scalar_lea.vmem %s9, 192
  %v2696 = vld [vmem:[%s2695] sm:$0xf]
  %v2697 = vld [vmem:[%s2695 + $0x4] sm:$0xf]
  %v2698 = vld [vmem:[%s2695 + $0x8] sm:$0xf]
  %v2699 = vld [vmem:[%s2695 + $0xc] sm:$0xf]
  %v2700 = vld [vmem:[%s2695 + $0x10] sm:$0xf]
  %v2701 = vld [vmem:[%s2695 + $0x14] sm:$0xf]
  %v2702 = vld [vmem:[%s2695 + $0x18] sm:$0xf]
  %v2703 = vld [vmem:[%s2695 + $0x1c] sm:$0xf]
  %v2704 = vld [vmem:[%s2695 + $0x20] sm:$0xf]
  %v2705 = vld [vmem:[%s2695 + $0x24] sm:$0xf]
  %v2706 = vld [vmem:[%s2695 + $0x28] sm:$0xf]
  %v2707 = vld [vmem:[%s2695 + $0x2c] sm:$0xf]
  %v2708 = vld [vmem:[%s2695 + $0x30] sm:$0xf]
  %v2709 = vld [vmem:[%s2695 + $0x34] sm:$0xf]
  %v2710 = vld [vmem:[%s2695 + $0x38] sm:$0xf]
  %v2711 = vld [vmem:[%s2695 + $0x3c] sm:$0xf]
  %v2712 = vld [vmem:[#allocation2 + $0x8] sm:$0xfc]
  %v2713 = vld [vmem:[#allocation2 + $0x10] sm:$0xff]
  %v2714 = vld [vmem:[#allocation2 + $0x18] sm:$0xff]
  %v2715 = vld [vmem:[#allocation2 + $0x20] sm:$0xff]
  %v2716 = vld [vmem:[#allocation2 + $0x28] sm:$0x7]
  %v2717 = vld [vmem:[#allocation2 + $0x28] sm:$0x3]
  %v2719 = vshrl.u32 %v2712, 16
  %v2721 = vshll.u32 %v2712, 16
  %v2723 = vrot.slane %v2721, 1
  %v2724 = vor.u32 %v2719, %v2723
  %v2726 = vshll.u32 %v2713, 16
  %v2728 = vrot.slane %v2726, 1
  %v2729 = vsel %vm357, %v2724, %v2728
  %v2730 = vshrl.u32 %v2713, 16
  %v2732 = vor.u32 %v2730, %v2728
  %v2734 = vshll.u32 %v2714, 16
  %v2736 = vrot.slane %v2734, 1
  %v2737 = vsel %vm357, %v2732, %v2736
  %v2738 = vshrl.u32 %v2714, 16
  %v2740 = vor.u32 %v2738, %v2736
  %v2742 = vshll.u32 %v2715, 16
  %v2744 = vrot.slane %v2742, 1
  %v2745 = vsel %vm357, %v2740, %v2744
  %v2746 = vshrl.u32 %v2715, 16
  %v2748 = vor.u32 %v2746, %v2744
  %v2750 = vshll.u32 %v2716, 16
  %v2752 = vrot.slane %v2750, 1
  %v2753 = vsel %vm357, %v2748, %v2752
  %v2754 = vshrl.u32 %v2716, 16
  %v2756 = vor.u32 %v2754, %v2752
  %v2762 = vsel %vm790, %v2712, %v2729
  %v2763 = vsel %vm790, %v2713, %v2737
  %v2764 = vsel %vm790, %v2714, %v2745
  %v2765 = vsel %vm790, %v2715, %v2753
  %v2766 = vsel %vm790, %v2717, %v2756
  %v2767 = vld [vmem:[#allocation2 + $0x8] sm:$0xff]
  %v2768 = vld [vmem:[#allocation2 + $0x28] sm:$0x1]
  %v2770 = vshrl.u32 %v2762, 16
  %v2772 = vrot.slane %v2770, 1
  %v2773 = vshll.u32 %v2762, 16
  %v2775 = vrot.slane %v2773, 2
  %v2776 = vor.u32 %v2772, %v2775
  %v2778 = vshrl.u32 %v2763, 16
  %v2780 = vrot.slane %v2778, 1
  %v2781 = vshll.u32 %v2763, 16
  %v2783 = vrot.slane %v2781, 2
  %v2784 = vor.u32 %v2780, %v2783
  %v2785 = vsel %vm791, %v2776, %v2784
  %v2787 = vshrl.u32 %v2764, 16
  %v2789 = vrot.slane %v2787, 1
  %v2790 = vshll.u32 %v2764, 16
  %v2792 = vrot.slane %v2790, 2
  %v2793 = vor.u32 %v2789, %v2792
  %v2794 = vsel %vm791, %v2784, %v2793
  %v2796 = vshrl.u32 %v2765, 16
  %v2798 = vrot.slane %v2796, 1
  %v2799 = vshll.u32 %v2765, 16
  %v2801 = vrot.slane %v2799, 2
  %v2802 = vor.u32 %v2798, %v2801
  %v2803 = vsel %vm791, %v2793, %v2802
  %v2805 = vshrl.u32 %v2766, 16
  %v2807 = vrot.slane %v2805, 1
  %v2808 = vshll.u32 %v2766, 16
  %v2810 = vrot.slane %v2808, 2
  %v2811 = vor.u32 %v2807, %v2810
  %v2812 = vsel %vm791, %v2802, %v2811
  %v2818 = vsel %vm356, %v2767, %v2785
  %v2819 = vsel %vm356, %v2713, %v2794
  %v2820 = vsel %vm356, %v2714, %v2803
  %v2821 = vsel %vm356, %v2715, %v2812
  %v2822 = vsel %vm356, %v2768, %v2807
  %v2824 = vshrl.u32 %v2818, 16
  %v2826 = vshll.u32 %v2818, 16
  %v2828 = vrot.slane %v2826, 1
  %v2829 = vor.u32 %v2824, %v2828
  %v2831 = vshll.u32 %v2819, 16
  %v2833 = vrot.slane %v2831, 1
  %v2834 = vsel %vm357, %v2829, %v2833
  %v2835 = vshrl.u32 %v2819, 16
  %v2837 = vor.u32 %v2835, %v2833
  %v2839 = vshll.u32 %v2820, 16
  %v2841 = vrot.slane %v2839, 1
  %v2842 = vsel %vm357, %v2837, %v2841
  %v2843 = vshrl.u32 %v2820, 16
  %v2845 = vor.u32 %v2843, %v2841
  %v2847 = vshll.u32 %v2821, 16
  %v2849 = vrot.slane %v2847, 1
  %v2850 = vsel %vm357, %v2845, %v2849
  %v2851 = vshrl.u32 %v2821, 16
  %v2853 = vor.u32 %v2851, %v2849
  %v2855 = vshll.u32 %v2822, 16
  %v2857 = vrot.slane %v2855, 1
  %v2858 = vsel %vm357, %v2853, %v2857
  %v2863 = vsel %vm900, %v2539, %v2834
  %v2864 = vsel %vm900, %v2540, %v2842
  %v2865 = vsel %vm900, %v2541, %v2850
  %v2866 = vsel %vm900, %v2542, %v2858
  %s2867 = scalar_lea.vmem %s9, 256
  %v2868 = vld [vmem:[%s2867] sm:$0xf]
  %v2869 = vld [vmem:[%s2867 + $0x4] sm:$0xf]
  %v2870 = vld [vmem:[%s2867 + $0x8] sm:$0xf]
  %v2871 = vld [vmem:[%s2867 + $0xc] sm:$0xf]
  %v2872 = vld [vmem:[%s2867 + $0x10] sm:$0xf]
  %v2873 = vld [vmem:[%s2867 + $0x14] sm:$0xf]
  %v2874 = vld [vmem:[%s2867 + $0x18] sm:$0xf]
  %v2875 = vld [vmem:[%s2867 + $0x1c] sm:$0xf]
  %v2876 = vld [vmem:[%s2867 + $0x20] sm:$0xf]
  %v2877 = vld [vmem:[%s2867 + $0x24] sm:$0xf]
  %v2878 = vld [vmem:[%s2867 + $0x28] sm:$0xf]
  %v2879 = vld [vmem:[%s2867 + $0x2c] sm:$0xf]
  %v2880 = vld [vmem:[%s2867 + $0x30] sm:$0xf]
  %v2881 = vld [vmem:[%s2867 + $0x34] sm:$0xf]
  %v2882 = vld [vmem:[%s2867 + $0x38] sm:$0xf]
  %v2883 = vld [vmem:[%s2867 + $0x3c] sm:$0xf]
  %v2900 = vunpack.c.l.b16 %v2868
  %v2901 = vunpack.c.l.b16 %v2869
  %v2902 = vunpack.c.l.b16 %v2870
  %v2903 = vunpack.c.l.b16 %v2871
  %v2904 = vunpack.c.l.b16 %v2872
  %v2905 = vunpack.c.l.b16 %v2873
  %v2906 = vunpack.c.l.b16 %v2874
  %v2907 = vunpack.c.l.b16 %v2875
  %v2908 = vunpack.c.l.b16 %v2876
  %v2909 = vunpack.c.l.b16 %v2877
  %v2910 = vunpack.c.l.b16 %v2878
  %v2911 = vunpack.c.l.b16 %v2879
  %v2912 = vunpack.c.l.b16 %v2880
  %v2913 = vunpack.c.l.b16 %v2881
  %v2914 = vunpack.c.l.b16 %v2882
  %v2915 = vunpack.c.l.b16 %v2883
  %v2916 = vpack.c.b16 %v2901, %v2900
  %v2917 = vpack.c.b16 %v2903, %v2902
  %v2918 = vpack.c.b16 %v2905, %v2904
  %v2919 = vpack.c.b16 %v2907, %v2906
  %v2920 = vpack.c.b16 %v2909, %v2908
  %v2921 = vpack.c.b16 %v2911, %v2910
  %v2922 = vpack.c.b16 %v2913, %v2912
  %v2923 = vpack.c.b16 %v2915, %v2914
  %2932 = vmatprep.subr.bf16.mxu0 0
  %2933 = vmatpush1.bf16.msra.mxu0 %v2916
  %2934 = vmatprep.subr.bf16.mxu0 0
  %2935 = vmatpush1.bf16.msra.mxu0 %v2917
  %2936 = vmatprep.subr.bf16.mxu0 0
  %2937 = vmatpush1.bf16.msra.mxu0 %v2918
  %2938 = vmatprep.subr.bf16.mxu0 0
  %2939 = vmatpush1.bf16.msra.mxu0 %v2919
  %2940 = vmatprep.subr.bf16.mxu0 0
  %2941 = vmatpush1.bf16.msra.mxu0 %v2920
  %2942 = vmatprep.subr.bf16.mxu0 0
  %2943 = vmatpush1.bf16.msra.mxu0 %v2921
  %2944 = vmatprep.subr.bf16.mxu0 0
  %2945 = vmatpush1.bf16.msra.mxu0 %v2922
  %2946 = vmatprep.subr.bf16.mxu0 0
  %2947 = vmatpush1.bf16.msra.mxu0 %v2923
  %2948 = vmatprep.subr.bf16.mxu0 0
  %2949 = vmatpush1.bf16.msra.mxu0 0
  %2950 = vmatprep.subr.bf16.mxu0 0
  %2951 = vmatpush1.bf16.msra.mxu0 0
  %2952 = vmatprep.subr.bf16.mxu0 0
  %2953 = vmatpush1.bf16.msra.mxu0 0
  %2954 = vmatprep.subr.bf16.mxu0 0
  %2955 = vmatpush1.bf16.msra.mxu0 0
  %2956 = vmatprep.subr.bf16.mxu0 0
  %2957 = vmatpush1.bf16.msra.mxu0 0
  %2958 = vmatprep.subr.bf16.mxu0 0
  %2959 = vmatpush1.bf16.msra.mxu0 0
  %2960 = vmatprep.subr.bf16.mxu0 0
  %2961 = vmatpush1.bf16.msra.mxu0 0
  %2962 = vmatprep.subr.bf16.mxu0 0
  %2963 = vmatpush1.bf16.msra.mxu0 0
  %2964 = vmatprep.mubr.bf16.mxu0 0
  %2965 = vmatmul.mubr.bf16.gmra.mrb[0].mxu0 %v2863
  %v2966 = vpop.f32.mrb[0].mxu0
  %v2967 = vadd.f32 0.0, %v2966
  %v2968 = vpop.f32.mrb[0].mxu0
  %v2969 = vpop.f32.mrb[0].mxu0
  %v2970 = vadd.f32 0.0, %v2969
  %v2971 = vpop.f32.mrb[0].mxu0
  %2972 = vmatprep.mubr.bf16.mxu0 0
  %2973 = vmatmul.mubr.bf16.gmra.mrb[0].mxu0 %v2864
  %v2974 = vpop.f32.mrb[0].mxu0
  %v2975 = vadd.f32 0.0, %v2974
  %v2976 = vpop.f32.mrb[0].mxu0
  %v2977 = vpop.f32.mrb[0].mxu0
  %v2978 = vadd.f32 0.0, %v2977
  %v2979 = vpop.f32.mrb[0].mxu0
  %2980 = vmatprep.mubr.bf16.mxu0 0
  %2981 = vmatmul.mubr.bf16.gmra.mrb[0].mxu0 %v2865
  %v2982 = vpop.f32.mrb[0].mxu0
  %v2983 = vadd.f32 0.0, %v2982
  %v2984 = vpop.f32.mrb[0].mxu0
  %v2985 = vpop.f32.mrb[0].mxu0
  %v2986 = vadd.f32 0.0, %v2985
  %v2987 = vpop.f32.mrb[0].mxu0
  %2988 = vmatprep.mubr.bf16.mxu0 0
  %2989 = vmatmul.mubr.bf16.gmra.mrb[0].mxu0 %v2866
  %v2990 = vpop.f32.mrb[0].mxu0
  %v2991 = vadd.f32 0.0, %v2990
  %v2992 = vpop.f32.mrb[0].mxu0
  %v2993 = vpop.f32.mrb[0].mxu0
  %v2994 = vadd.f32 0.0, %v2993
  %v2995 = vpop.f32.mrb[0].mxu0
  %2996 = vdwg.mxu0
  %v3002 = vrot.slane %v2690, 5
  %v3003 = vrot.slane %v2691, 5
  %v3004 = vsel %vm1256, %v3002, %v3003
  %v3005 = vrot.slane %v2692, 5
  %v3006 = vsel %vm1256, %v3003, %v3005
  %v3007 = vrot.slane %v2693, 5
  %v3008 = vsel %vm1256, %v3005, %v3007
  %v3009 = vrot.slane %v2694, 5
  %v3010 = vsel %vm1256, %v3007, %v3009
  %v3031 = vunpack.c.l.b16 %v2696
  %v3032 = vunpack.c.l.b16 %v2697
  %v3033 = vunpack.c.l.b16 %v2698
  %v3034 = vunpack.c.l.b16 %v2699
  %v3035 = vunpack.c.l.b16 %v2700
  %v3036 = vunpack.c.l.b16 %v2701
  %v3037 = vunpack.c.l.b16 %v2702
  %v3038 = vunpack.c.l.b16 %v2703
  %v3039 = vunpack.c.l.b16 %v2704
  %v3040 = vunpack.c.l.b16 %v2705
  %v3041 = vunpack.c.l.b16 %v2706
  %v3042 = vunpack.c.l.b16 %v2707
  %v3043 = vunpack.c.l.b16 %v2708
  %v3044 = vunpack.c.l.b16 %v2709
  %v3045 = vunpack.c.l.b16 %v2710
  %v3046 = vunpack.c.l.b16 %v2711
  %v3047 = vpack.c.b16 %v3032, %v3031
  %v3048 = vpack.c.b16 %v3034, %v3033
  %v3049 = vpack.c.b16 %v3036, %v3035
  %v3050 = vpack.c.b16 %v3038, %v3037
  %v3051 = vpack.c.b16 %v3040, %v3039
  %v3052 = vpack.c.b16 %v3042, %v3041
  %v3053 = vpack.c.b16 %v3044, %v3043
  %v3054 = vpack.c.b16 %v3046, %v3045
  %3063 = vmatprep.subr.bf16.mxu0 0
  %3064 = vmatpush1.bf16.msra.mxu0 %v3047
  %3065 = vmatprep.subr.bf16.mxu0 0
  %3066 = vmatpush1.bf16.msra.mxu0 %v3048
  %3067 = vmatprep.subr.bf16.mxu0 0
  %3068 = vmatpush1.bf16.msra.mxu0 %v3049
  %3069 = vmatprep.subr.bf16.mxu0 0
  %3070 = vmatpush1.bf16.msra.mxu0 %v3050
  %3071 = vmatprep.subr.bf16.mxu0 0
  %3072 = vmatpush1.bf16.msra.mxu0 %v3051
  %3073 = vmatprep.subr.bf16.mxu0 0
  %3074 = vmatpush1.bf16.msra.mxu0 %v3052
  %3075 = vmatprep.subr.bf16.mxu0 0
  %3076 = vmatpush1.bf16.msra.mxu0 %v3053
  %3077 = vmatprep.subr.bf16.mxu0 0
  %3078 = vmatpush1.bf16.msra.mxu0 %v3054
  %3079 = vmatprep.subr.bf16.mxu0 0
  %3080 = vmatpush1.bf16.msra.mxu0 0
  %3081 = vmatprep.subr.bf16.mxu0 0
  %3082 = vmatpush1.bf16.msra.mxu0 0
  %3083 = vmatprep.subr.bf16.mxu0 0
  %3084 = vmatpush1.bf16.msra.mxu0 0
  %3085 = vmatprep.subr.bf16.mxu0 0
  %3086 = vmatpush1.bf16.msra.mxu0 0
  %3087 = vmatprep.subr.bf16.mxu0 0
  %3088 = vmatpush1.bf16.msra.mxu0 0
  %3089 = vmatprep.subr.bf16.mxu0 0
  %3090 = vmatpush1.bf16.msra.mxu0 0
  %3091 = vmatprep.subr.bf16.mxu0 0
  %3092 = vmatpush1.bf16.msra.mxu0 0
  %3093 = vmatprep.subr.bf16.mxu0 0
  %3094 = vmatpush1.bf16.msra.mxu0 0
  %3095 = vmatprep.mubr.bf16.mxu0 0
  %3096 = vmatmul.mubr.bf16.gmra.mrb[0].mxu0 %v3004
  %v3097 = vpop.f32.mrb[0].mxu0
  %v3098 = vadd.f32 %v2967, %v3097
  %v3099 = vpop.f32.mrb[0].mxu0
  %v3100 = vpop.f32.mrb[0].mxu0
  %v3101 = vadd.f32 %v2970, %v3100
  %v3102 = vpop.f32.mrb[0].mxu0
  %3103 = vmatprep.mubr.bf16.mxu0 0
  %3104 = vmatmul.mubr.bf16.gmra.mrb[0].mxu0 %v3006
  %v3105 = vpop.f32.mrb[0].mxu0
  %v3106 = vadd.f32 %v2975, %v3105
  %v3107 = vpop.f32.mrb[0].mxu0
  %v3108 = vpop.f32.mrb[0].mxu0
  %v3109 = vadd.f32 %v2978, %v3108
  %v3110 = vpop.f32.mrb[0].mxu0
  %3111 = vmatprep.mubr.bf16.mxu0 0
  %3112 = vmatmul.mubr.bf16.gmra.mrb[0].mxu0 %v3008
  %v3113 = vpop.f32.mrb[0].mxu0
  %v3114 = vadd.f32 %v2983, %v3113
  %v3115 = vpop.f32.mrb[0].mxu0
  %v3116 = vpop.f32.mrb[0].mxu0
  %v3117 = vadd.f32 %v2986, %v3116
  %v3118 = vpop.f32.mrb[0].mxu0
  %3119 = vmatprep.mubr.bf16.mxu0 0
  %3120 = vmatmul.mubr.bf16.gmra.mrb[0].mxu0 %v3010
  %v3121 = vpop.f32.mrb[0].mxu0
  %v3122 = vadd.f32 %v2991, %v3121
  %v3123 = vpop.f32.mrb[0].mxu0
  %v3124 = vpop.f32.mrb[0].mxu0
  %v3125 = vadd.f32 %v2994, %v3124
  %v3126 = vpop.f32.mrb[0].mxu0
  %3127 = vdwg.mxu0
  %v3128 = vld [vmem:[#allocation2 + $0x8] sm:$0xf8]
  %s3129 = scalar_lea.vmem %s9, 320
  %v3130 = vld [vmem:[%s3129] sm:$0xf]
  %v3131 = vld [vmem:[%s3129 + $0x4] sm:$0xf]
  %v3132 = vld [vmem:[%s3129 + $0x8] sm:$0xf]
  %v3133 = vld [vmem:[%s3129 + $0xc] sm:$0xf]
  %v3134 = vld [vmem:[%s3129 + $0x10] sm:$0xf]
  %v3135 = vld [vmem:[%s3129 + $0x14] sm:$0xf]
  %v3136 = vld [vmem:[%s3129 + $0x18] sm:$0xf]
  %v3137 = vld [vmem:[%s3129 + $0x1c] sm:$0xf]
  %v3138 = vld [vmem:[%s3129 + $0x20] sm:$0xf]
  %v3139 = vld [vmem:[%s3129 + $0x24] sm:$0xf]
  %v3140 = vld [vmem:[%s3129 + $0x28] sm:$0xf]
  %v3141 = vld [vmem:[%s3129 + $0x2c] sm:$0xf]
  %v3142 = vld [vmem:[%s3129 + $0x30] sm:$0xf]
  %v3143 = vld [vmem:[%s3129 + $0x34] sm:$0xf]
  %v3144 = vld [vmem:[%s3129 + $0x38] sm:$0xf]
  %v3145 = vld [vmem:[%s3129 + $0x3c] sm:$0xf]
  %v3151 = vrot.slane %v3128, 3
  %v3152 = vrot.slane %v2713, 3
  %v3153 = vsel %vm1406, %v3151, %v3152
  %v3154 = vrot.slane %v2714, 3
  %v3155 = vsel %vm1406, %v3152, %v3154
  %v3156 = vrot.slane %v2715, 3
  %v3157 = vsel %vm1406, %v3154, %v3156
  %v3158 = vrot.slane %v2716, 3
  %v3159 = vsel %vm1406, %v3156, %v3158
  %v3180 = vunpack.c.l.b16 %v3130
  %v3181 = vunpack.c.l.b16 %v3131
  %v3182 = vunpack.c.l.b16 %v3132
  %v3183 = vunpack.c.l.b16 %v3133
  %v3184 = vunpack.c.l.b16 %v3134
  %v3185 = vunpack.c.l.b16 %v3135
  %v3186 = vunpack.c.l.b16 %v3136
  %v3187 = vunpack.c.l.b16 %v3137
  %v3188 = vunpack.c.l.b16 %v3138
  %v3189 = vunpack.c.l.b16 %v3139
  %v3190 = vunpack.c.l.b16 %v3140
  %v3191 = vunpack.c.l.b16 %v3141
  %v3192 = vunpack.c.l.b16 %v3142
  %v3193 = vunpack.c.l.b16 %v3143
  %v3194 = vunpack.c.l.b16 %v3144
  %v3195 = vunpack.c.l.b16 %v3145
  %v3196 = vpack.c.b16 %v3181, %v3180
  %v3197 = vpack.c.b16 %v3183, %v3182
  %v3198 = vpack.c.b16 %v3185, %v3184
  %v3199 = vpack.c.b16 %v3187, %v3186
  %v3200 = vpack.c.b16 %v3189, %v3188
  %v3201 = vpack.c.b16 %v3191, %v3190
  %v3202 = vpack.c.b16 %v3193, %v3192
  %v3203 = vpack.c.b16 %v3195, %v3194
  %3212 = vmatprep.subr.bf16.mxu0 0
  %3213 = vmatpush1.bf16.msra.mxu0 %v3196
  %3214 = vmatprep.subr.bf16.mxu0 0
  %3215 = vmatpush1.bf16.msra.mxu0 %v3197
  %3216 = vmatprep.subr.bf16.mxu0 0
  %3217 = vmatpush1.bf16.msra.mxu0 %v3198
  %3218 = vmatprep.subr.bf16.mxu0 0
  %3219 = vmatpush1.bf16.msra.mxu0 %v3199
  %3220 = vmatprep.subr.bf16.mxu0 0
  %3221 = vmatpush1.bf16.msra.mxu0 %v3200
  %3222 = vmatprep.subr.bf16.mxu0 0
  %3223 = vmatpush1.bf16.msra.mxu0 %v3201
  %3224 = vmatprep.subr.bf16.mxu0 0
  %3225 = vmatpush1.bf16.msra.mxu0 %v3202
  %3226 = vmatprep.subr.bf16.mxu0 0
  %3227 = vmatpush1.bf16.msra.mxu0 %v3203
  %3228 = vmatprep.subr.bf16.mxu0 0
  %3229 = vmatpush1.bf16.msra.mxu0 0
  %3230 = vmatprep.subr.bf16.mxu0 0
  %3231 = vmatpush1.bf16.msra.mxu0 0
  %3232 = vmatprep.subr.bf16.mxu0 0
  %3233 = vmatpush1.bf16.msra.mxu0 0
  %3234 = vmatprep.subr.bf16.mxu0 0
  %3235 = vmatpush1.bf16.msra.mxu0 0
  %3236 = vmatprep.subr.bf16.mxu0 0
  %3237 = vmatpush1.bf16.msra.mxu0 0
  %3238 = vmatprep.subr.bf16.mxu0 0
  %3239 = vmatpush1.bf16.msra.mxu0 0
  %3240 = vmatprep.subr.bf16.mxu0 0
  %3241 = vmatpush1.bf16.msra.mxu0 0
  %3242 = vmatprep.subr.bf16.mxu0 0
  %3243 = vmatpush1.bf16.msra.mxu0 0
  %3244 = vmatprep.mubr.bf16.mxu0 0
  %3245 = vmatmul.mubr.bf16.gmra.mrb[0].mxu0 %v3153
  %v3246 = vpop.f32.mrb[0].mxu0
  %v3247 = vadd.f32 0.0, %v3246
  %v3248 = vpop.f32.mrb[0].mxu0
  %v3249 = vpop.f32.mrb[0].mxu0
  %v3250 = vadd.f32 0.0, %v3249
  %v3251 = vpop.f32.mrb[0].mxu0
  %3252 = vmatprep.mubr.bf16.mxu0 0
  %3253 = vmatmul.mubr.bf16.gmra.mrb[0].mxu0 %v3155
  %v3254 = vpop.f32.mrb[0].mxu0
  %v3255 = vadd.f32 0.0, %v3254
  %v3256 = vpop.f32.mrb[0].mxu0
  %v3257 = vpop.f32.mrb[0].mxu0
  %v3258 = vadd.f32 0.0, %v3257
  %v3259 = vpop.f32.mrb[0].mxu0
  %3260 = vmatprep.mubr.bf16.mxu0 0
  %3261 = vmatmul.mubr.bf16.gmra.mrb[0].mxu0 %v3157
  %v3262 = vpop.f32.mrb[0].mxu0
  %v3263 = vadd.f32 0.0, %v3262
  %v3264 = vpop.f32.mrb[0].mxu0
  %v3265 = vpop.f32.mrb[0].mxu0
  %v3266 = vadd.f32 0.0, %v3265
  %v3267 = vpop.f32.mrb[0].mxu0
  %3268 = vmatprep.mubr.bf16.mxu0 0
  %3269 = vmatmul.mubr.bf16.gmra.mrb[0].mxu0 %v3159
  %v3270 = vpop.f32.mrb[0].mxu0
  %v3271 = vadd.f32 0.0, %v3270
  %v3272 = vpop.f32.mrb[0].mxu0
  %v3273 = vpop.f32.mrb[0].mxu0
  %v3274 = vadd.f32 0.0, %v3273
  %v3275 = vpop.f32.mrb[0].mxu0
  %3276 = vdwg.mxu0
  %v3277 = vadd.f32 %v3098, %v3247
  %v3278 = vadd.f32 %v3101, %v3250
  %v3279 = vadd.f32 %v3106, %v3255
  %v3280 = vadd.f32 %v3109, %v3258
  %v3281 = vadd.f32 %v3114, %v3263
  %v3282 = vadd.f32 %v3117, %v3266
  %v3283 = vadd.f32 %v3122, %v3271
  %v3284 = vadd.f32 %v3125, %v3274
  %v3286 = vlaneseq
  %v3287 = vshrl.u32 %v3286, 7
  %v3288 = vsub.s32 0, %v3287
  %v3289 = vrot.slane %v2529, %v3288
  %v3291 = vadd.f32 %v3277, %v3289
  %v3292 = vadd.f32 %v3278, %v3289
  %v3293 = vadd.f32 %v3279, %v3289
  %v3294 = vadd.f32 %v3280, %v3289
  %v3295 = vadd.f32 %v3281, %v3289
  %v3296 = vadd.f32 %v3282, %v3289
  %v3297 = vadd.f32 %v3283, %v3289
  %v3298 = vadd.f32 %v3284, %v3289
  %v3299 = vmax.f32 %v3291, 0.0
  %v3300 = vmax.f32 %v3292, 0.0
  %v3301 = vmax.f32 %v3293, 0.0
  %v3302 = vmax.f32 %v3294, 0.0
  %v3303 = vmax.f32 %v3295, 0.0
  %v3304 = vmax.f32 %v3296, 0.0
  %v3305 = vmax.f32 %v3297, 0.0
  %v3306 = vmax.f32 %v3298, 0.0
  %v3307 = vpack.c.bf16 %v3300, %v3299
  %v3308 = vpack.c.bf16 %v3302, %v3301
  %v3309 = vpack.c.bf16 %v3304, %v3303
  %v3310 = vpack.c.bf16 %v3306, %v3305
  %s3311 = scalar_lea.vmem %s11, 64
  %v3312 = vld [vmem:[%s3311] sm:$0xf]
  %v3313 = vld [vmem:[%s3311 + $0x4] sm:$0xf]
  %v3314 = vld [vmem:[%s3311 + $0x8] sm:$0xf]
  %v3315 = vld [vmem:[%s3311 + $0xc] sm:$0xf]
  %v3316 = vld [vmem:[%s3311 + $0x10] sm:$0xf]
  %v3317 = vld [vmem:[%s3311 + $0x14] sm:$0xf]
  %v3318 = vld [vmem:[%s3311 + $0x18] sm:$0xf]
  %v3319 = vld [vmem:[%s3311 + $0x1c] sm:$0xf]
  %v3320 = vld [vmem:[%s3311 + $0x20] sm:$0xf]
  %v3321 = vld [vmem:[%s3311 + $0x24] sm:$0xf]
  %v3322 = vld [vmem:[%s3311 + $0x28] sm:$0xf]
  %v3323 = vld [vmem:[%s3311 + $0x2c] sm:$0xf]
  %v3324 = vld [vmem:[%s3311 + $0x30] sm:$0xf]
  %v3325 = vld [vmem:[%s3311 + $0x34] sm:$0xf]
  %v3326 = vld [vmem:[%s3311 + $0x38] sm:$0xf]
  %v3327 = vld [vmem:[%s3311 + $0x3c] sm:$0xf]
  %v3344 = vunpack.c.l.b16 %v3312
  %v3345 = vunpack.c.l.b16 %v3313
  %v3346 = vunpack.c.l.b16 %v3314
  %v3347 = vunpack.c.l.b16 %v3315
  %v3348 = vunpack.c.l.b16 %v3316
  %v3349 = vunpack.c.l.b16 %v3317
  %v3350 = vunpack.c.l.b16 %v3318
  %v3351 = vunpack.c.l.b16 %v3319
  %v3352 = vunpack.c.l.b16 %v3320
  %v3353 = vunpack.c.l.b16 %v3321
  %v3354 = vunpack.c.l.b16 %v3322
  %v3355 = vunpack.c.l.b16 %v3323
  %v3356 = vunpack.c.l.b16 %v3324
  %v3357 = vunpack.c.l.b16 %v3325
  %v3358 = vunpack.c.l.b16 %v3326
  %v3359 = vunpack.c.l.b16 %v3327
  %v3360 = vpack.c.b16 %v3345, %v3344
  %v3361 = vpack.c.b16 %v3347, %v3346
  %v3362 = vpack.c.b16 %v3349, %v3348
  %v3363 = vpack.c.b16 %v3351, %v3350
  %v3364 = vpack.c.b16 %v3353, %v3352
  %v3365 = vpack.c.b16 %v3355, %v3354
  %v3366 = vpack.c.b16 %v3357, %v3356
  %v3367 = vpack.c.b16 %v3359, %v3358
  %3376 = vmatprep.subr.bf16.mxu0 0
  %3377 = vmatpush1.bf16.msra.mxu0 %v3360
  %3378 = vmatprep.subr.bf16.mxu0 0
  %3379 = vmatpush1.bf16.msra.mxu0 %v3361
  %3380 = vmatprep.subr.bf16.mxu0 0
  %3381 = vmatpush1.bf16.msra.mxu0 %v3362
  %3382 = vmatprep.subr.bf16.mxu0 0
  %3383 = vmatpush1.bf16.msra.mxu0 %v3363
  %3384 = vmatprep.subr.bf16.mxu0 0
  %3385 = vmatpush1.bf16.msra.mxu0 %v3364
  %3386 = vmatprep.subr.bf16.mxu0 0
  %3387 = vmatpush1.bf16.msra.mxu0 %v3365
  %3388 = vmatprep.subr.bf16.mxu0 0
  %3389 = vmatpush1.bf16.msra.mxu0 %v3366
  %3390 = vmatprep.subr.bf16.mxu0 0
  %3391 = vmatpush1.bf16.msra.mxu0 %v3367
  %3392 = vmatprep.subr.bf16.mxu0 0
  %3393 = vmatpush1.bf16.msra.mxu0 0
  %3394 = vmatprep.subr.bf16.mxu0 0
  %3395 = vmatpush1.bf16.msra.mxu0 0
  %3396 = vmatprep.subr.bf16.mxu0 0
  %3397 = vmatpush1.bf16.msra.mxu0 0
  %3398 = vmatprep.subr.bf16.mxu0 0
  %3399 = vmatpush1.bf16.msra.mxu0 0
  %3400 = vmatprep.subr.bf16.mxu0 0
  %3401 = vmatpush1.bf16.msra.mxu0 0
  %3402 = vmatprep.subr.bf16.mxu0 0
  %3403 = vmatpush1.bf16.msra.mxu0 0
  %3404 = vmatprep.subr.bf16.mxu0 0
  %3405 = vmatpush1.bf16.msra.mxu0 0
  %3406 = vmatprep.subr.bf16.mxu0 0
  %3407 = vmatpush1.bf16.msra.mxu0 0
  %3408 = vmatprep.mubr.bf16.mxu0 0
  %3409 = vmatmul.mubr.bf16.gmra.mrb[0].mxu0 %v3307
  %v3410 = vpop.f32.mrb[0].mxu0
  %v3411 = vadd.f32 0.0, %v3410
  %v3412 = vpop.f32.mrb[0].mxu0
  %v3413 = vpop.f32.mrb[0].mxu0
  %v3414 = vadd.f32 0.0, %v3413
  %v3415 = vpop.f32.mrb[0].mxu0
  %3416 = vmatprep.mubr.bf16.mxu0 0
  %3417 = vmatmul.mubr.bf16.gmra.mrb[0].mxu0 %v3308
  %v3418 = vpop.f32.mrb[0].mxu0
  %v3419 = vadd.f32 0.0, %v3418
  %v3420 = vpop.f32.mrb[0].mxu0
  %v3421 = vpop.f32.mrb[0].mxu0
  %v3422 = vadd.f32 0.0, %v3421
  %v3423 = vpop.f32.mrb[0].mxu0
  %3424 = vmatprep.mubr.bf16.mxu0 0
  %3425 = vmatmul.mubr.bf16.gmra.mrb[0].mxu0 %v3309
  %v3426 = vpop.f32.mrb[0].mxu0
  %v3427 = vadd.f32 0.0, %v3426
  %v3428 = vpop.f32.mrb[0].mxu0
  %v3429 = vpop.f32.mrb[0].mxu0
  %v3430 = vadd.f32 0.0, %v3429
  %v3431 = vpop.f32.mrb[0].mxu0
  %3432 = vmatprep.mubr.bf16.mxu0 0
  %3433 = vmatmul.mubr.bf16.gmra.mrb[0].mxu0 %v3310
  %v3434 = vpop.f32.mrb[0].mxu0
  %v3435 = vadd.f32 0.0, %v3434
  %v3436 = vpop.f32.mrb[0].mxu0
  %v3437 = vpop.f32.mrb[0].mxu0
  %v3438 = vadd.f32 0.0, %v3437
  %v3439 = vpop.f32.mrb[0].mxu0
  %3440 = vdwg.mxu0
  %v3441 = vadd.f32 %v2512, %v3411
  %v3442 = vadd.f32 %v2513, %v3414
  %v3443 = vadd.f32 %v2514, %v3419
  %v3444 = vadd.f32 %v2515, %v3422
  %v3445 = vadd.f32 %v2516, %v3427
  %v3446 = vadd.f32 %v2517, %v3430
  %v3447 = vadd.f32 %v2518, %v3435
  %v3448 = vadd.f32 %v2519, %v3438
  %s3449 = scalar_lea.vmem %s12, 1
  %v3450 = vld [vmem:[%s3449] sm:$0x1]
  %v3452 = vlaneseq
  %v3453 = vshrl.u32 %v3452, 7
  %v3454 = vsub.s32 0, %v3453
  %v3455 = vrot.slane %v3450, %v3454
  %v3457 = vadd.f32 %v3441, %v3455
  %v3458 = vadd.f32 %v3442, %v3455
  %v3459 = vadd.f32 %v3443, %v3455
  %v3460 = vadd.f32 %v3444, %v3455
  %v3461 = vadd.f32 %v3445, %v3455
  %v3462 = vadd.f32 %v3446, %v3455
  %v3463 = vadd.f32 %v3447, %v3455
  %v3464 = vadd.f32 %v3448, %v3455
  %v3465 = vmul.f32 %v3457, %v51
  %v3466 = vmul.f32 %v3458, %v52
  %v3467 = vmul.f32 %v3459, %v53
  %v3468 = vmul.f32 %v3460, %v54
  %v3469 = vmul.f32 %v3461, %v55
  %v3470 = vmul.f32 %v3462, %v56
  %v3471 = vmul.f32 %v3463, %v57
  %v3472 = vmul.f32 %v3464, %v58
  %v3473 = vmax.f32 %v3465, 0.0
  %v3474 = vmax.f32 %v3466, 0.0
  %v3475 = vmax.f32 %v3467, 0.0
  %v3476 = vmax.f32 %v3468, 0.0
  %v3477 = vmax.f32 %v3469, 0.0
  %v3478 = vmax.f32 %v3470, 0.0
  %v3479 = vmax.f32 %v3471, 0.0
  %v3480 = vmax.f32 %v3472, 0.0
  %3481 = vst [vmem:[%s13] sm:$0xff] %v3473
  %3482 = vst [vmem:[%s13 + $0x8] sm:$0xff] %v3474
  %3483 = vst [vmem:[%s13 + $0x10] sm:$0xff] %v3475
  %3484 = vst [vmem:[%s13 + $0x18] sm:$0xff] %v3476
  %3485 = vst [vmem:[%s13 + $0x20] sm:$0xff] %v3477
  %3486 = vst [vmem:[%s13 + $0x28] sm:$0xff] %v3478
  %3487 = vst [vmem:[%s13 + $0x30] sm:$0xff] %v3479
  %3488 = vst [vmem:[%s13 + $0x38] sm:$0xff] %v3480
  // Predicated region
  $region54: #{forward.1} parent=0 // pred_check
    _
  $region55: #{forward.1} parent=0 // pred_check_branch
    %3490 = sbr.rel (0) target = $region57
  $region56: #{forward.1} parent=0 // pred_region
    _
  $region57: #{forward.1} parent=0 // pred_fallthru
    _
  // Predicated region
  $region58: #{forward.1} parent=0 // pred_check
    _
  $region59: #{forward.1} parent=0 // pred_check_branch
    %3492 = sbr.rel (0) target = $region61
  $region60: #{forward.1} parent=0 // pred_region
    _
  $region61: #{forward.1} parent=0 // pred_fallthru
    _

</llo_original>
